<compile_context>
chip_gen: v5e
topology: v5e:2x2
jax: 0.10.0
libtpu: 0.0.40
codegen_flags: <defaults>
</compile_context>

<pallas_src>
import jax
import jax.numpy as jnp
from jax import lax
from jax.experimental import pallas as pl
from jax.experimental.pallas import tpu as pltpu

# ----------------------------- configuration -----------------------------
D_MODEL = 32          # d_model
NHEAD = 4             # heads for all three MultiheadAttention modules
HEAD_DIM = D_MODEL // NHEAD
L_IMG = 16            # flattened image tokens
L_WORD = 8            # word tokens
BATCH = 2
FUSION_SCALE = 1.0    # fusion_args['scale']
LN_EPS = 1e-5
L1_EPS = 1e-12        # F.normalize default eps
NEG_INF = -1e30


# ----------------------------- Pallas kernel -----------------------------
def cross_modal_enc_layer_kernel(
        img_ref, word_ref, pos_ref, wpad_ref, ipad_ref,
        w_word_ref, b_word_ref, w_img_ref, b_img_ref,
        w_q1_ref, b_q1_ref, w_qk3_ref, b_qk3_ref,
        w_out_ref, b_out_ref, w_mlp_ref, b_mlp_ref,
        norm_w_ref, norm_b_ref, scale_ref, out_ref):
    img = img_ref[...]        # (Nq, D) f32, seq-first flattened (row = token*B + batch)
    word = word_ref[...]      # (Nk, D) f32
    pos = pos_ref[...]        # (Nq, D) f32
    scale = scale_ref[0]      # SMEM scalar (fusion scale)

    nq = img.shape[0]
    nk_w = word.shape[0]
    D, H, hd = D_MODEL, NHEAD, HEAD_DIM

    def mm(x, w):
        # dense projection on the MXU: bf16 operands, f32 accumulation
        return jnp.dot(x.astype(jnp.bfloat16), w, preferred_element_type=jnp.float32)

    def make_bias(pad, nk):
        # additive bias = block-diagonal batch mask (seq-first interleave: batch = index % B)
        # combined with the key padding mask (1 = padded / ignored)
        rb = lax.broadcasted_iota(jnp.int32, (nq, nk), 0) % BATCH
        cb = lax.broadcasted_iota(jnp.int32, (nq, nk), 1) % BATCH
        allowed = (rb == cb) & (pad == 0)
        return jnp.where(allowed, 0.0, NEG_INF).astype(jnp.float32)

    # TODO(synk): PyTorch yields NaN when an entire key row is masked; here such rows fall back
    # to uniform attention instead.
    word_bias = make_bias(wpad_ref[...], nk_w)   # (Nq, Nk_word)
    img_bias = make_bias(ipad_ref[...], nq)      # (Nq, Nq)

    def attention(q2d, k2d, v2d, bias, wo, bo):
        # q2d (Nq, D), k2d/v2d (Nk, D): lane-packed, head-contiguous columns; bias (Nq, Nk)
        ctxs = []
        for h in range(H):                       # static unroll over 4 heads
            sl = slice(h * hd, (h + 1) * hd)
            s = jnp.einsum('qd,kd->qk', q2d[:, sl], k2d[:, sl],
                           preferred_element_type=jnp.float32)
            s = s + bias
            s = s - jnp.max(s, axis=-1, keepdims=True)
            p = jnp.exp(s)
            p = p * pl.reciprocal(jnp.sum(p, axis=-1, keepdims=True), approx=True)
            ctxs.append(jnp.dot(p, v2d[:, sl], preferred_element_type=jnp.float32))
        ctx = jnp.concatenate(ctxs, axis=-1)      # (Nq, H*hd) stays lane-packed
        return mm(ctx, wo) + bo                   # single (Nq,D)@(D,D) output projection

    def layer_norm(x, n):
        mean = jnp.mean(x, axis=-1, keepdims=True)
        var = jnp.mean(jnp.square(x - mean), axis=-1, keepdims=True)
        return (x - mean) * lax.rsqrt(var + LN_EPS) * norm_w_ref[n] + norm_b_ref[n]

    # ---- lane-packed shared-input projections ----
    wp = mm(word, w_word_ref[...]) + b_word_ref[...]           # (Nk, 4D): K1|V1|K2|V2
    k1, v1 = wp[:, :D], wp[:, D:2 * D]
    k2, v2 = wp[:, 2 * D:3 * D], wp[:, 3 * D:]

    ip = mm(img, w_img_ref[...]) + b_img_ref[...]              # (Nq, 3D): Q2(scaled)|V3|img_proj L1
    q2, v3, img_h = ip[:, :D], ip[:, D:2 * D], ip[:, 2 * D:]

    # ---- img2text_attn1 (query = img + pos; softmax scale folded into W/b) ----
    q1 = mm(img + pos, w_q1_ref[...]) + b_q1_ref[...]
    text_info = attention(q1, k1, v1, word_bias, w_out_ref[0], b_out_ref[0])

    # ---- text_proj / img_proj MLPs (num_layers=2: relu(L1) -> L2) ----
    th = jnp.maximum(mm(text_info, w_mlp_ref[0]) + b_mlp_ref[0], 0.0)
    text_embed = mm(th, w_mlp_ref[1]) + b_mlp_ref[1]
    img_embed = mm(jnp.maximum(img_h, 0.0), w_mlp_ref[2]) + b_mlp_ref[2]

    diff = img_embed - text_embed
    l1 = jnp.maximum(jnp.sum(jnp.abs(diff), axis=-1, keepdims=True), L1_EPS)
    fusion_score = jnp.exp(-scale * (diff / l1))               # exp(-scale * F.normalize(p=1))

    # ---- img2text_attn2 (query = img) ----
    tgvi = attention(q2, k2, v2, word_bias, w_out_ref[1], b_out_ref[1])

    # ---- img2img_attn (q = k = img + tgvi, value = img) ----
    qk = mm(img + tgvi, w_qk3_ref[...]) + b_qk3_ref[...]       # (Nq, 2D): Q3(scaled)|K3
    modulated = attention(qk[:, :D], qk[:, D:], v3, img_bias,
                          w_out_ref[2], b_out_ref[2])

    fuse = (layer_norm(img, 0) + layer_norm(modulated, 1)) * fusion_score

    # fused concat [orig_img_feat, fuse_img_feat]: one 64-lane store, no wrapper-side concat
    out_ref[...] = jnp.concatenate([img, fuse], axis=-1)


# ----------------------------- wrapper -----------------------------------
def vg_encoder_forward(img_feat, mask, pos_embed, word_feat, word_mask, params):
    Li, B, D = img_feat.shape
    Lw = word_feat.shape[0]

    # seq-first flattening (row = token*B + batch): pure reshapes, no transposes
    img2 = img_feat.astype(jnp.float32).reshape(Li * B, D)
    word2 = word_feat.astype(jnp.float32).reshape(Lw * B, D)
    pos2 = pos_embed.astype(jnp.float32).reshape(Li * B, D)

    # key padding masks in the same (token, batch) flattening, as int32 (bias built in-kernel)
    wpad = jnp.transpose(word_mask).reshape(1, Lw * B).astype(jnp.int32)
    ipad = jnp.transpose(mask).reshape(1, Li * B).astype(jnp.int32)

    vmem = pl.BlockSpec(memory_space=pltpu.MemorySpace.VMEM)
    smem = pl.BlockSpec(memory_space=pltpu.MemorySpace.SMEM)

    out = pl.pallas_call(
        cross_modal_enc_layer_kernel,
        out_shape=jax.ShapeDtypeStruct((Li * B, 2 * D), jnp.float32),
        in_specs=[vmem] * 19 + [smem],            # last input (fusion scale) lives in SMEM
        out_specs=vmem,
    )(img2, word2, pos2, wpad, ipad,
      params["w_word"], params["b_word"], params["w_img"], params["b_img"],
      params["w_q1"], params["b_q1"], params["w_qk3"], params["b_qk3"],
      params["w_out"], params["b_out"], params["w_mlp"], params["b_mlp"],
      params["norm_w"], params["norm_b"], params["scale"])

    return out.reshape(Li, B, 2 * D)              # (Li, B, 2D) seq-first, reshape only


# ----------------------------- parameter init + host-side repacking -------
def init_params(key):
    D, hd = D_MODEL, HEAD_DIM
    ks = jax.random.split(key, 4)
    std = 0.02
    # PyTorch-equivalent raw weights stored (in, out) orientation (= W^T of the nn.Linear slices)
    attn_w = std * jax.random.normal(ks[0], (3, 4, D, D), jnp.float32)   # [attn, q/k/v/o, in, out]
    attn_b = std * jax.random.normal(ks[1], (3, 4, D), jnp.float32)
    mlp_w = std * jax.random.normal(ks[2], (2, 2, D, D), jnp.float32)    # [text/img, layer, in, out]
    mlp_b = std * jax.random.normal(ks[3], (2, 2, D), jnp.float32)
    inv = 1.0 / (hd ** 0.5)        # softmax scale, folded into the Q weights AND biases

    (wq1, wk1, wv1, wo1), (wq2, wk2, wv2, wo2), (wq3, wk3, wv3, wo3) = attn_w
    (bq1, bk1, bv1, bo1), (bq2, bk2, bv2, bo2), (bq3, bk3, bv3, bo3) = attn_b

    bf = lambda w: w.astype(jnp.bfloat16)    # matmul operands in bf16 (f32 accumulation in-kernel)
    row = lambda b: b[None, :]

    return {
        # lane-packed shared-input projection weights
        "w_word": bf(jnp.concatenate([wk1, wv1, wk2, wv2], axis=1)),           # (D, 4D)
        "b_word": row(jnp.concatenate([bk1, bv1, bk2, bv2])),                  # (1, 4D)
        "w_img": bf(jnp.concatenate([wq2 * inv, wv3, mlp_w[1, 0]], axis=1)),   # (D, 3D)
        "b_img": row(jnp.concatenate([bq2 * inv, bv3, mlp_b[1, 0]])),          # (1, 3D)
        "w_q1": bf(wq1 * inv), "b_q1": row(bq1 * inv),                         # (D, D) / (1, D)
        "w_qk3": bf(jnp.concatenate([wq3 * inv, wk3], axis=1)),                # (D, 2D)
        "b_qk3": row(jnp.concatenate([bq3 * inv, bk3])),                       # (1, 2D)
        "w_out": bf(jnp.stack([wo1, wo2, wo3])),                               # (3, D, D)
        "b_out": jnp.stack([bo1, bo2, bo3])[:, None, :],                       # (3, 1, D)
        "w_mlp": bf(jnp.stack([mlp_w[0, 0], mlp_w[0, 1], mlp_w[1, 1]])),       # text L1, text L2, img L2
        "b_mlp": jnp.stack([mlp_b[0, 0], mlp_b[0, 1], mlp_b[1, 1]])[:, None, :],
        "norm_w": jnp.ones((2, 1, D), jnp.float32),                            # LayerNorm default init
        "norm_b": jnp.zeros((2, 1, D), jnp.float32),
        "scale": jnp.full((1,), FUSION_SCALE, jnp.float32),                    # Parameter([scale])
    }


# ----------------------------- main ---------------------------------------
if __name__ == "__main__":
    key = jax.random.PRNGKey(0)
    k_img, k_pos, k_word, k_param = jax.random.split(key, 4)

    img_feat = jax.random.normal(k_img, (L_IMG, BATCH, D_MODEL), jnp.float32)
    pos_embed = jax.random.normal(k_pos, (L_IMG, BATCH, D_MODEL), jnp.float32)
    word_feat = jax.random.normal(k_word, (L_WORD, BATCH, D_MODEL), jnp.float32)

    # key_padding_masks (True = padded / ignored)
    mask = jnp.zeros((BATCH, L_IMG), dtype=bool)
    word_mask = jnp.zeros((BATCH, L_WORD), dtype=bool).at[1, -2:].set(True)

    params = init_params(k_param)

    # num_layers=1 CrossModalEncoder -> single layer application
    out = vg_encoder_forward(img_feat, mask, pos_embed, word_feat, word_mask, params)
    out = jax.block_until_ready(out)

    assert out.shape == (L_IMG, BATCH, 2 * D_MODEL), out.shape
    assert bool(jnp.all(jnp.isfinite(out)))
    print("KERNEL_OK")
</pallas_src>

<mosaic_0001>
module attributes {stable_mosaic.version = 11 : i64} {
  func.func @cross_modal_enc_layer_kernel(%arg0: memref<32x32xf32, #tpu.memory_space<vmem>>, %arg1: memref<16x32xf32, #tpu.memory_space<vmem>>, %arg2: memref<32x32xf32, #tpu.memory_space<vmem>>, %arg3: memref<1x16xi32, #tpu.memory_space<vmem>>, %arg4: memref<1x32xi32, #tpu.memory_space<vmem>>, %arg5: memref<32x128xbf16, #tpu.memory_space<vmem>>, %arg6: memref<1x128xf32, #tpu.memory_space<vmem>>, %arg7: memref<32x96xbf16, #tpu.memory_space<vmem>>, %arg8: memref<1x96xf32, #tpu.memory_space<vmem>>, %arg9: memref<32x32xbf16, #tpu.memory_space<vmem>>, %arg10: memref<1x32xf32, #tpu.memory_space<vmem>>, %arg11: memref<32x64xbf16, #tpu.memory_space<vmem>>, %arg12: memref<1x64xf32, #tpu.memory_space<vmem>>, %arg13: memref<3x32x32xbf16, #tpu.memory_space<vmem>>, %arg14: memref<3x1x32xf32, #tpu.memory_space<vmem>>, %arg15: memref<3x32x32xbf16, #tpu.memory_space<vmem>>, %arg16: memref<3x1x32xf32, #tpu.memory_space<vmem>>, %arg17: memref<2x1x32xf32, #tpu.memory_space<vmem>>, %arg18: memref<2x1x32xf32, #tpu.memory_space<vmem>>, %arg19: memref<1xf32, #tpu.memory_space<smem>>, %arg20: memref<32x64xf32, #tpu.memory_space<vmem>>) attributes {dimension_semantics = [], scalar_prefetch = 0 : i64, scratch_operands = 0 : i64, tpu.core_type = #tpu.core_type<tc>} {
    %c0 = arith.constant 0 : index
    %c0_0 = arith.constant 0 : index
    %0 = vector.load %arg0[%c0, %c0_0] : memref<32x32xf32, #tpu.memory_space<vmem>>, vector<32x32xf32>
    %c0_1 = arith.constant 0 : index
    %c0_2 = arith.constant 0 : index
    %1 = vector.load %arg1[%c0_1, %c0_2] : memref<16x32xf32, #tpu.memory_space<vmem>>, vector<16x32xf32>
    %c0_3 = arith.constant 0 : index
    %c0_4 = arith.constant 0 : index
    %2 = vector.load %arg2[%c0_3, %c0_4] : memref<32x32xf32, #tpu.memory_space<vmem>>, vector<32x32xf32>
    %c0_5 = arith.constant 0 : index
    %3 = memref.load %arg19[%c0_5] : memref<1xf32, #tpu.memory_space<smem>>
    %c0_6 = arith.constant 0 : index
    %c0_7 = arith.constant 0 : index
    %4 = vector.load %arg3[%c0_6, %c0_7] : memref<1x16xi32, #tpu.memory_space<vmem>>, vector<1x16xi32>
    %5 = tpu.iota {dimensions = array<i32: 0>} : vector<32x16xi32>
    %c2_i32 = arith.constant 2 : i32
    %c0_i32 = arith.constant 0 : i32
    %6 = arith.cmpi eq, %c2_i32, %c0_i32 : i32
    %c1_i32 = arith.constant 1 : i32
    %7 = arith.select %6, %c1_i32, %c2_i32 : i32
    %8 = vector.broadcast %7 : i32 to vector<32x16xi32>
    %9 = arith.remsi %5, %8 : vector<32x16xi32>
    %c0_i32_8 = arith.constant 0 : i32
    %10 = vector.broadcast %c0_i32_8 : i32 to vector<32x16xi32>
    %11 = arith.cmpi ne, %9, %10 : vector<32x16xi32>
    %c0_i32_9 = arith.constant 0 : i32
    %12 = vector.broadcast %c0_i32_9 : i32 to vector<32x16xi32>
    %13 = arith.cmpi slt, %9, %12 : vector<32x16xi32>
    %c0_i32_10 = arith.constant 0 : i32
    %14 = arith.cmpi slt, %7, %c0_i32_10 : i32
    %15 = vector.broadcast %14 : i1 to vector<32x16xi1>
    %16 = vector.broadcast %15 : vector<32x16xi1> to vector<32x16xi1>
    %17 = arith.xori %13, %16 : vector<32x16xi1>
    %18 = arith.andi %17, %11 : vector<32x16xi1>
    %19 = vector.broadcast %7 : i32 to vector<32x16xi32>
    %20 = arith.addi %9, %19 : vector<32x16xi32>
    %21 = arith.select %18, %20, %9 : vector<32x16xi1>, vector<32x16xi32>
    %22 = tpu.iota {dimensions = array<i32: 1>} : vector<32x16xi32>
    %c2_i32_11 = arith.constant 2 : i32
    %c0_i32_12 = arith.constant 0 : i32
    %23 = arith.cmpi eq, %c2_i32_11, %c0_i32_12 : i32
    %c1_i32_13 = arith.constant 1 : i32
    %24 = arith.select %23, %c1_i32_13, %c2_i32_11 : i32
    %25 = vector.broadcast %24 : i32 to vector<32x16xi32>
    %26 = arith.remsi %22, %25 : vector<32x16xi32>
    %c0_i32_14 = arith.constant 0 : i32
    %27 = vector.broadcast %c0_i32_14 : i32 to vector<32x16xi32>
    %28 = arith.cmpi ne, %26, %27 : vector<32x16xi32>
    %c0_i32_15 = arith.constant 0 : i32
    %29 = vector.broadcast %c0_i32_15 : i32 to vector<32x16xi32>
    %30 = arith.cmpi slt, %26, %29 : vector<32x16xi32>
    %c0_i32_16 = arith.constant 0 : i32
    %31 = arith.cmpi slt, %24, %c0_i32_16 : i32
    %32 = vector.broadcast %31 : i1 to vector<32x16xi1>
    %33 = vector.broadcast %32 : vector<32x16xi1> to vector<32x16xi1>
    %34 = arith.xori %30, %33 : vector<32x16xi1>
    %35 = arith.andi %34, %28 : vector<32x16xi1>
    %36 = vector.broadcast %24 : i32 to vector<32x16xi32>
    %37 = arith.addi %26, %36 : vector<32x16xi32>
    %38 = arith.select %35, %37, %26 : vector<32x16xi1>, vector<32x16xi32>
    %39 = arith.cmpi eq, %21, %38 : vector<32x16xi32>
    %c0_i32_17 = arith.constant 0 : i32
    %40 = vector.broadcast %c0_i32_17 : i32 to vector<1x16xi32>
    %41 = arith.cmpi eq, %4, %40 : vector<1x16xi32>
    %42 = vector.broadcast %41 : vector<1x16xi1> to vector<32x16xi1>
    %43 = arith.andi %39, %42 : vector<32x16xi1>
    %cst = arith.constant 0.000000e+00 : f32
    %cst_18 = arith.constant -1.000000e+30 : f32
    %44 = vector.broadcast %cst : f32 to vector<32x16xf32>
    %45 = vector.broadcast %cst_18 : f32 to vector<32x16xf32>
    %46 = arith.select %43, %44, %45 : vector<32x16xi1>, vector<32x16xf32>
    %c0_19 = arith.constant 0 : index
    %c0_20 = arith.constant 0 : index
    %47 = vector.load %arg4[%c0_19, %c0_20] : memref<1x32xi32, #tpu.memory_space<vmem>>, vector<1x32xi32>
    %48 = tpu.iota {dimensions = array<i32: 0>} : vector<32x32xi32>
    %c2_i32_21 = arith.constant 2 : i32
    %c0_i32_22 = arith.constant 0 : i32
    %49 = arith.cmpi eq, %c2_i32_21, %c0_i32_22 : i32
    %c1_i32_23 = arith.constant 1 : i32
    %50 = arith.select %49, %c1_i32_23, %c2_i32_21 : i32
    %51 = vector.broadcast %50 : i32 to vector<32x32xi32>
    %52 = arith.remsi %48, %51 : vector<32x32xi32>
    %c0_i32_24 = arith.constant 0 : i32
    %53 = vector.broadcast %c0_i32_24 : i32 to vector<32x32xi32>
    %54 = arith.cmpi ne, %52, %53 : vector<32x32xi32>
    %c0_i32_25 = arith.constant 0 : i32
    %55 = vector.broadcast %c0_i32_25 : i32 to vector<32x32xi32>
    %56 = arith.cmpi slt, %52, %55 : vector<32x32xi32>
    %c0_i32_26 = arith.constant 0 : i32
    %57 = arith.cmpi slt, %50, %c0_i32_26 : i32
    %58 = vector.broadcast %57 : i1 to vector<32x32xi1>
    %59 = vector.broadcast %58 : vector<32x32xi1> to vector<32x32xi1>
    %60 = arith.xori %56, %59 : vector<32x32xi1>
    %61 = arith.andi %60, %54 : vector<32x32xi1>
    %62 = vector.broadcast %50 : i32 to vector<32x32xi32>
    %63 = arith.addi %52, %62 : vector<32x32xi32>
    %64 = arith.select %61, %63, %52 : vector<32x32xi1>, vector<32x32xi32>
    %65 = tpu.iota {dimensions = array<i32: 1>} : vector<32x32xi32>
    %c2_i32_27 = arith.constant 2 : i32
    %c0_i32_28 = arith.constant 0 : i32
    %66 = arith.cmpi eq, %c2_i32_27, %c0_i32_28 : i32
    %c1_i32_29 = arith.constant 1 : i32
    %67 = arith.select %66, %c1_i32_29, %c2_i32_27 : i32
    %68 = vector.broadcast %67 : i32 to vector<32x32xi32>
    %69 = arith.remsi %65, %68 : vector<32x32xi32>
    %c0_i32_30 = arith.constant 0 : i32
    %70 = vector.broadcast %c0_i32_30 : i32 to vector<32x32xi32>
    %71 = arith.cmpi ne, %69, %70 : vector<32x32xi32>
    %c0_i32_31 = arith.constant 0 : i32
    %72 = vector.broadcast %c0_i32_31 : i32 to vector<32x32xi32>
    %73 = arith.cmpi slt, %69, %72 : vector<32x32xi32>
    %c0_i32_32 = arith.constant 0 : i32
    %74 = arith.cmpi slt, %67, %c0_i32_32 : i32
    %75 = vector.broadcast %74 : i1 to vector<32x32xi1>
    %76 = vector.broadcast %75 : vector<32x32xi1> to vector<32x32xi1>
    %77 = arith.xori %73, %76 : vector<32x32xi1>
    %78 = arith.andi %77, %71 : vector<32x32xi1>
    %79 = vector.broadcast %67 : i32 to vector<32x32xi32>
    %80 = arith.addi %69, %79 : vector<32x32xi32>
    %81 = arith.select %78, %80, %69 : vector<32x32xi1>, vector<32x32xi32>
    %82 = arith.cmpi eq, %64, %81 : vector<32x32xi32>
    %c0_i32_33 = arith.constant 0 : i32
    %83 = vector.broadcast %c0_i32_33 : i32 to vector<1x32xi32>
    %84 = arith.cmpi eq, %47, %83 : vector<1x32xi32>
    %85 = vector.broadcast %84 : vector<1x32xi1> to vector<32x32xi1>
    %86 = arith.andi %82, %85 : vector<32x32xi1>
    %cst_34 = arith.constant 0.000000e+00 : f32
    %cst_35 = arith.constant -1.000000e+30 : f32
    %87 = vector.broadcast %cst_34 : f32 to vector<32x32xf32>
    %88 = vector.broadcast %cst_35 : f32 to vector<32x32xf32>
    %89 = arith.select %86, %87, %88 : vector<32x32xi1>, vector<32x32xf32>
    %c0_36 = arith.constant 0 : index
    %c0_37 = arith.constant 0 : index
    %90 = vector.load %arg5[%c0_36, %c0_37] : memref<32x128xbf16, #tpu.memory_space<vmem>>, vector<32x128xbf16>
    %91 = arith.truncf %1 : vector<16x32xf32> to vector<16x32xbf16>
    %cst_38 = arith.constant dense<0.000000e+00> : vector<16x128xf32>
    %92 = tpu.matmul %91, %90, %cst_38 {dimension_numbers = #tpu.dot_dimension_numbers<[1], [0], [0], [1], [0, 0, 1, 1], [], []>} : vector<16x32xbf16>, vector<32x128xbf16>, vector<16x128xf32> -> vector<16x128xf32>
    %c0_39 = arith.constant 0 : index
    %c0_40 = arith.constant 0 : index
    %93 = vector.load %arg6[%c0_39, %c0_40] : memref<1x128xf32, #tpu.memory_space<vmem>>, vector<1x128xf32>
    %94 = vector.broadcast %93 : vector<1x128xf32> to vector<16x128xf32>
    %95 = arith.addf %92, %94 : vector<16x128xf32>
    %96 = vector.extract_strided_slice %95 {offsets = [0, 0], sizes = [16, 32], strides = [1, 1]} : vector<16x128xf32> to vector<16x32xf32>
    %97 = vector.extract_strided_slice %95 {offsets = [0, 32], sizes = [16, 32], strides = [1, 1]} : vector<16x128xf32> to vector<16x32xf32>
    %98 = vector.extract_strided_slice %95 {offsets = [0, 64], sizes = [16, 32], strides = [1, 1]} : vector<16x128xf32> to vector<16x32xf32>
    %99 = vector.extract_strided_slice %95 {offsets = [0, 96], sizes = [16, 32], strides = [1, 1]} : vector<16x128xf32> to vector<16x32xf32>
    %c0_41 = arith.constant 0 : index
    %c0_42 = arith.constant 0 : index
    %100 = vector.load %arg7[%c0_41, %c0_42] : memref<32x96xbf16, #tpu.memory_space<vmem>>, vector<32x96xbf16>
    %101 = arith.truncf %0 : vector<32x32xf32> to vector<32x32xbf16>
    %cst_43 = arith.constant dense<0.000000e+00> : vector<32x96xf32>
    %102 = tpu.matmul %101, %100, %cst_43 {dimension_numbers = #tpu.dot_dimension_numbers<[1], [0], [0], [1], [0, 0, 1, 1], [], []>} : vector<32x32xbf16>, vector<32x96xbf16>, vector<32x96xf32> -> vector<32x96xf32>
    %c0_44 = arith.constant 0 : index
    %c0_45 = arith.constant 0 : index
    %103 = vector.load %arg8[%c0_44, %c0_45] : memref<1x96xf32, #tpu.memory_space<vmem>>, vector<1x96xf32>
    %104 = vector.broadcast %103 : vector<1x96xf32> to vector<32x96xf32>
    %105 = arith.addf %102, %104 : vector<32x96xf32>
    %106 = vector.extract_strided_slice %105 {offsets = [0, 0], sizes = [32, 32], strides = [1, 1]} : vector<32x96xf32> to vector<32x32xf32>
    %107 = vector.extract_strided_slice %105 {offsets = [0, 32], sizes = [32, 32], strides = [1, 1]} : vector<32x96xf32> to vector<32x32xf32>
    %108 = vector.extract_strided_slice %105 {offsets = [0, 64], sizes = [32, 32], strides = [1, 1]} : vector<32x96xf32> to vector<32x32xf32>
    %109 = arith.addf %0, %2 : vector<32x32xf32>
    %c0_46 = arith.constant 0 : index
    %c0_47 = arith.constant 0 : index
    %110 = vector.load %arg9[%c0_46, %c0_47] : memref<32x32xbf16, #tpu.memory_space<vmem>>, vector<32x32xbf16>
    %111 = arith.truncf %109 : vector<32x32xf32> to vector<32x32xbf16>
    %cst_48 = arith.constant dense<0.000000e+00> : vector<32x32xf32>
    %112 = tpu.matmul %111, %110, %cst_48 {dimension_numbers = #tpu.dot_dimension_numbers<[1], [0], [0], [1], [0, 0, 1, 1], [], []>} : vector<32x32xbf16>, vector<32x32xbf16>, vector<32x32xf32> -> vector<32x32xf32>
    %c0_49 = arith.constant 0 : index
    %c0_50 = arith.constant 0 : index
    %113 = vector.load %arg10[%c0_49, %c0_50] : memref<1x32xf32, #tpu.memory_space<vmem>>, vector<1x32xf32>
    %114 = vector.broadcast %113 : vector<1x32xf32> to vector<32x32xf32>
    %115 = arith.addf %112, %114 : vector<32x32xf32>
    %c0_51 = arith.constant 0 : index
    %c0_52 = arith.constant 0 : index
    %c0_53 = arith.constant 0 : index
    %116 = vector.load %arg13[%c0_51, %c0_52, %c0_53] : memref<3x32x32xbf16, #tpu.memory_space<vmem>>, vector<1x32x32xbf16>
    %117 = vector.shape_cast %116 : vector<1x32x32xbf16> to vector<32x32xbf16>
    %c0_54 = arith.constant 0 : index
    %c0_55 = arith.constant 0 : index
    %c0_56 = arith.constant 0 : index
    %118 = vector.load %arg14[%c0_54, %c0_55, %c0_56] : memref<3x1x32xf32, #tpu.memory_space<vmem>>, vector<1x1x32xf32>
    %119 = vector.shape_cast %118 : vector<1x1x32xf32> to vector<1x32xf32>
    %120 = vector.extract_strided_slice %115 {offsets = [0, 0], sizes = [32, 8], strides = [1, 1]} : vector<32x32xf32> to vector<32x8xf32>
    %121 = vector.extract_strided_slice %96 {offsets = [0, 0], sizes = [16, 8], strides = [1, 1]} : vector<16x32xf32> to vector<16x8xf32>
    "tpu.trace_start"() <{level = 10 : i32, message = "qd,kd->qk"}> : () -> ()
    %cst_57 = arith.constant dense<0.000000e+00> : vector<32x16xf32>
    %122 = tpu.matmul %120, %121, %cst_57 {dimension_numbers = #tpu.dot_dimension_numbers<[1], [1], [0], [0], [0, 0, 1, 0], [], []>} : vector<32x8xf32>, vector<16x8xf32>, vector<32x16xf32> -> vector<32x16xf32>
    "tpu.trace_stop"() : () -> ()
    %123 = arith.addf %122, %46 : vector<32x16xf32>
    %cst_58 = arith.constant dense<0xFF800000> : vector<32xf32>
    %124 = vector.multi_reduction <maximumf>, %123, %cst_58 [1] : vector<32x16xf32> to vector<32xf32>
    %125 = vector.shape_cast %124 : vector<32xf32> to vector<32x1xf32>
    %126 = vector.broadcast %125 : vector<32x1xf32> to vector<32x16xf32>
    %127 = arith.subf %123, %126 : vector<32x16xf32>
    %128 = math.exp %127 : vector<32x16xf32>
    %cst_59 = arith.constant dense<0.000000e+00> : vector<32xf32>
    %129 = vector.multi_reduction <add>, %128, %cst_59 [1] : vector<32x16xf32> to vector<32xf32>
    %130 = vector.shape_cast %129 : vector<32xf32> to vector<32x1xf32>
    %131 = tpu.reciprocal %130 {approx = true} : vector<32x1xf32> -> vector<32x1xf32>
    %132 = vector.broadcast %131 : vector<32x1xf32> to vector<32x16xf32>
    %133 = arith.mulf %128, %132 : vector<32x16xf32>
    %134 = vector.extract_strided_slice %97 {offsets = [0, 0], sizes = [16, 8], strides = [1, 1]} : vector<16x32xf32> to vector<16x8xf32>
    %cst_60 = arith.constant dense<0.000000e+00> : vector<32x8xf32>
    %135 = tpu.matmul %133, %134, %cst_60 {dimension_numbers = #tpu.dot_dimension_numbers<[1], [0], [0], [1], [0, 0, 1, 1], [], []>} : vector<32x16xf32>, vector<16x8xf32>, vector<32x8xf32> -> vector<32x8xf32>
    %136 = vector.extract_strided_slice %115 {offsets = [0, 8], sizes = [32, 8], strides = [1, 1]} : vector<32x32xf32> to vector<32x8xf32>
    %137 = vector.extract_strided_slice %96 {offsets = [0, 8], sizes = [16, 8], strides = [1, 1]} : vector<16x32xf32> to vector<16x8xf32>
    "tpu.trace_start"() <{level = 10 : i32, message = "qd,kd->qk"}> : () -> ()
    %cst_61 = arith.constant dense<0.000000e+00> : vector<32x16xf32>
    %138 = tpu.matmul %136, %137, %cst_61 {dimension_numbers = #tpu.dot_dimension_numbers<[1], [1], [0], [0], [0, 0, 1, 0], [], []>} : vector<32x8xf32>, vector<16x8xf32>, vector<32x16xf32> -> vector<32x16xf32>
    "tpu.trace_stop"() : () -> ()
    %139 = arith.addf %138, %46 : vector<32x16xf32>
    %cst_62 = arith.constant dense<0xFF800000> : vector<32xf32>
    %140 = vector.multi_reduction <maximumf>, %139, %cst_62 [1] : vector<32x16xf32> to vector<32xf32>
    %141 = vector.shape_cast %140 : vector<32xf32> to vector<32x1xf32>
    %142 = vector.broadcast %141 : vector<32x1xf32> to vector<32x16xf32>
    %143 = arith.subf %139, %142 : vector<32x16xf32>
    %144 = math.exp %143 : vector<32x16xf32>
    %cst_63 = arith.constant dense<0.000000e+00> : vector<32xf32>
    %145 = vector.multi_reduction <add>, %144, %cst_63 [1] : vector<32x16xf32> to vector<32xf32>
    %146 = vector.shape_cast %145 : vector<32xf32> to vector<32x1xf32>
    %147 = tpu.reciprocal %146 {approx = true} : vector<32x1xf32> -> vector<32x1xf32>
    %148 = vector.broadcast %147 : vector<32x1xf32> to vector<32x16xf32>
    %149 = arith.mulf %144, %148 : vector<32x16xf32>
    %150 = vector.extract_strided_slice %97 {offsets = [0, 8], sizes = [16, 8], strides = [1, 1]} : vector<16x32xf32> to vector<16x8xf32>
    %cst_64 = arith.constant dense<0.000000e+00> : vector<32x8xf32>
    %151 = tpu.matmul %149, %150, %cst_64 {dimension_numbers = #tpu.dot_dimension_numbers<[1], [0], [0], [1], [0, 0, 1, 1], [], []>} : vector<32x16xf32>, vector<16x8xf32>, vector<32x8xf32> -> vector<32x8xf32>
    %152 = vector.extract_strided_slice %115 {offsets = [0, 16], sizes = [32, 8], strides = [1, 1]} : vector<32x32xf32> to vector<32x8xf32>
    %153 = vector.extract_strided_slice %96 {offsets = [0, 16], sizes = [16, 8], strides = [1, 1]} : vector<16x32xf32> to vector<16x8xf32>
    "tpu.trace_start"() <{level = 10 : i32, message = "qd,kd->qk"}> : () -> ()
    %cst_65 = arith.constant dense<0.000000e+00> : vector<32x16xf32>
    %154 = tpu.matmul %152, %153, %cst_65 {dimension_numbers = #tpu.dot_dimension_numbers<[1], [1], [0], [0], [0, 0, 1, 0], [], []>} : vector<32x8xf32>, vector<16x8xf32>, vector<32x16xf32> -> vector<32x16xf32>
    "tpu.trace_stop"() : () -> ()
    %155 = arith.addf %154, %46 : vector<32x16xf32>
    %cst_66 = arith.constant dense<0xFF800000> : vector<32xf32>
    %156 = vector.multi_reduction <maximumf>, %155, %cst_66 [1] : vector<32x16xf32> to vector<32xf32>
    %157 = vector.shape_cast %156 : vector<32xf32> to vector<32x1xf32>
    %158 = vector.broadcast %157 : vector<32x1xf32> to vector<32x16xf32>
    %159 = arith.subf %155, %158 : vector<32x16xf32>
    %160 = math.exp %159 : vector<32x16xf32>
    %cst_67 = arith.constant dense<0.000000e+00> : vector<32xf32>
    %161 = vector.multi_reduction <add>, %160, %cst_67 [1] : vector<32x16xf32> to vector<32xf32>
    %162 = vector.shape_cast %161 : vector<32xf32> to vector<32x1xf32>
    %163 = tpu.reciprocal %162 {approx = true} : vector<32x1xf32> -> vector<32x1xf32>
    %164 = vector.broadcast %163 : vector<32x1xf32> to vector<32x16xf32>
    %165 = arith.mulf %160, %164 : vector<32x16xf32>
    %166 = vector.extract_strided_slice %97 {offsets = [0, 16], sizes = [16, 8], strides = [1, 1]} : vector<16x32xf32> to vector<16x8xf32>
    %cst_68 = arith.constant dense<0.000000e+00> : vector<32x8xf32>
    %167 = tpu.matmul %165, %166, %cst_68 {dimension_numbers = #tpu.dot_dimension_numbers<[1], [0], [0], [1], [0, 0, 1, 1], [], []>} : vector<32x16xf32>, vector<16x8xf32>, vector<32x8xf32> -> vector<32x8xf32>
    %168 = vector.extract_strided_slice %115 {offsets = [0, 24], sizes = [32, 8], strides = [1, 1]} : vector<32x32xf32> to vector<32x8xf32>
    %169 = vector.extract_strided_slice %96 {offsets = [0, 24], sizes = [16, 8], strides = [1, 1]} : vector<16x32xf32> to vector<16x8xf32>
    "tpu.trace_start"() <{level = 10 : i32, message = "qd,kd->qk"}> : () -> ()
    %cst_69 = arith.constant dense<0.000000e+00> : vector<32x16xf32>
    %170 = tpu.matmul %168, %169, %cst_69 {dimension_numbers = #tpu.dot_dimension_numbers<[1], [1], [0], [0], [0, 0, 1, 0], [], []>} : vector<32x8xf32>, vector<16x8xf32>, vector<32x16xf32> -> vector<32x16xf32>
    "tpu.trace_stop"() : () -> ()
    %171 = arith.addf %170, %46 : vector<32x16xf32>
    %cst_70 = arith.constant dense<0xFF800000> : vector<32xf32>
    %172 = vector.multi_reduction <maximumf>, %171, %cst_70 [1] : vector<32x16xf32> to vector<32xf32>
    %173 = vector.shape_cast %172 : vector<32xf32> to vector<32x1xf32>
    %174 = vector.broadcast %173 : vector<32x1xf32> to vector<32x16xf32>
    %175 = arith.subf %171, %174 : vector<32x16xf32>
    %176 = math.exp %175 : vector<32x16xf32>
    %cst_71 = arith.constant dense<0.000000e+00> : vector<32xf32>
    %177 = vector.multi_reduction <add>, %176, %cst_71 [1] : vector<32x16xf32> to vector<32xf32>
    %178 = vector.shape_cast %177 : vector<32xf32> to vector<32x1xf32>
    %179 = tpu.reciprocal %178 {approx = true} : vector<32x1xf32> -> vector<32x1xf32>
    %180 = vector.broadcast %179 : vector<32x1xf32> to vector<32x16xf32>
    %181 = arith.mulf %176, %180 : vector<32x16xf32>
    %182 = vector.extract_strided_slice %97 {offsets = [0, 24], sizes = [16, 8], strides = [1, 1]} : vector<16x32xf32> to vector<16x8xf32>
    %cst_72 = arith.constant dense<0.000000e+00> : vector<32x8xf32>
    %183 = tpu.matmul %181, %182, %cst_72 {dimension_numbers = #tpu.dot_dimension_numbers<[1], [0], [0], [1], [0, 0, 1, 1], [], []>} : vector<32x16xf32>, vector<16x8xf32>, vector<32x8xf32> -> vector<32x8xf32>
    %184 = tpu.concatenate %135, %151, %167, %183 in 1 : vector<32x8xf32>, vector<32x8xf32>, vector<32x8xf32>, vector<32x8xf32> -> vector<32x32xf32>
    %185 = arith.truncf %184 : vector<32x32xf32> to vector<32x32xbf16>
    %cst_73 = arith.constant dense<0.000000e+00> : vector<32x32xf32>
    %186 = tpu.matmul %185, %117, %cst_73 {dimension_numbers = #tpu.dot_dimension_numbers<[1], [0], [0], [1], [0, 0, 1, 1], [], []>} : vector<32x32xbf16>, vector<32x32xbf16>, vector<32x32xf32> -> vector<32x32xf32>
    %187 = vector.broadcast %119 : vector<1x32xf32> to vector<32x32xf32>
    %188 = arith.addf %186, %187 : vector<32x32xf32>
    %c0_74 = arith.constant 0 : index
    %c0_75 = arith.constant 0 : index
    %c0_76 = arith.constant 0 : index
    %189 = vector.load %arg15[%c0_74, %c0_75, %c0_76] : memref<3x32x32xbf16, #tpu.memory_space<vmem>>, vector<1x32x32xbf16>
    %190 = vector.shape_cast %189 : vector<1x32x32xbf16> to vector<32x32xbf16>
    %191 = arith.truncf %188 : vector<32x32xf32> to vector<32x32xbf16>
    %cst_77 = arith.constant dense<0.000000e+00> : vector<32x32xf32>
    %192 = tpu.matmul %191, %190, %cst_77 {dimension_numbers = #tpu.dot_dimension_numbers<[1], [0], [0], [1], [0, 0, 1, 1], [], []>} : vector<32x32xbf16>, vector<32x32xbf16>, vector<32x32xf32> -> vector<32x32xf32>
    %c0_78 = arith.constant 0 : index
    %c0_79 = arith.constant 0 : index
    %c0_80 = arith.constant 0 : index
    %193 = vector.load %arg16[%c0_78, %c0_79, %c0_80] : memref<3x1x32xf32, #tpu.memory_space<vmem>>, vector<1x1x32xf32>
    %194 = vector.shape_cast %193 : vector<1x1x32xf32> to vector<1x32xf32>
    %195 = vector.broadcast %194 : vector<1x32xf32> to vector<32x32xf32>
    %196 = arith.addf %192, %195 : vector<32x32xf32>
    %cst_81 = arith.constant 0.000000e+00 : f32
    %197 = vector.broadcast %cst_81 : f32 to vector<32x32xf32>
    %198 = arith.maximumf %196, %197 : vector<32x32xf32>
    %c1 = arith.constant 1 : index
    %c0_82 = arith.constant 0 : index
    %c0_83 = arith.constant 0 : index
    %199 = vector.load %arg15[%c1, %c0_82, %c0_83] : memref<3x32x32xbf16, #tpu.memory_space<vmem>>, vector<1x32x32xbf16>
    %200 = vector.shape_cast %199 : vector<1x32x32xbf16> to vector<32x32xbf16>
    %201 = arith.truncf %198 : vector<32x32xf32> to vector<32x32xbf16>
    %cst_84 = arith.constant dense<0.000000e+00> : vector<32x32xf32>
    %202 = tpu.matmul %201, %200, %cst_84 {dimension_numbers = #tpu.dot_dimension_numbers<[1], [0], [0], [1], [0, 0, 1, 1], [], []>} : vector<32x32xbf16>, vector<32x32xbf16>, vector<32x32xf32> -> vector<32x32xf32>
    %c1_85 = arith.constant 1 : index
    %c0_86 = arith.constant 0 : index
    %c0_87 = arith.constant 0 : index
    %203 = vector.load %arg16[%c1_85, %c0_86, %c0_87] : memref<3x1x32xf32, #tpu.memory_space<vmem>>, vector<1x1x32xf32>
    %204 = vector.shape_cast %203 : vector<1x1x32xf32> to vector<1x32xf32>
    %205 = vector.broadcast %204 : vector<1x32xf32> to vector<32x32xf32>
    %206 = arith.addf %202, %205 : vector<32x32xf32>
    %cst_88 = arith.constant 0.000000e+00 : f32
    %207 = vector.broadcast %cst_88 : f32 to vector<32x32xf32>
    %208 = arith.maximumf %108, %207 : vector<32x32xf32>
    %c2 = arith.constant 2 : index
    %c0_89 = arith.constant 0 : index
    %c0_90 = arith.constant 0 : index
    %209 = vector.load %arg15[%c2, %c0_89, %c0_90] : memref<3x32x32xbf16, #tpu.memory_space<vmem>>, vector<1x32x32xbf16>
    %210 = vector.shape_cast %209 : vector<1x32x32xbf16> to vector<32x32xbf16>
    %211 = arith.truncf %208 : vector<32x32xf32> to vector<32x32xbf16>
    %cst_91 = arith.constant dense<0.000000e+00> : vector<32x32xf32>
    %212 = tpu.matmul %211, %210, %cst_91 {dimension_numbers = #tpu.dot_dimension_numbers<[1], [0], [0], [1], [0, 0, 1, 1], [], []>} : vector<32x32xbf16>, vector<32x32xbf16>, vector<32x32xf32> -> vector<32x32xf32>
    %c2_92 = arith.constant 2 : index
    %c0_93 = arith.constant 0 : index
    %c0_94 = arith.constant 0 : index
    %213 = vector.load %arg16[%c2_92, %c0_93, %c0_94] : memref<3x1x32xf32, #tpu.memory_space<vmem>>, vector<1x1x32xf32>
    %214 = vector.shape_cast %213 : vector<1x1x32xf32> to vector<1x32xf32>
    %215 = vector.broadcast %214 : vector<1x32xf32> to vector<32x32xf32>
    %216 = arith.addf %212, %215 : vector<32x32xf32>
    %217 = arith.subf %216, %206 : vector<32x32xf32>
    %218 = math.absf %217 : vector<32x32xf32>
    %cst_95 = arith.constant dense<0.000000e+00> : vector<32xf32>
    %219 = vector.multi_reduction <add>, %218, %cst_95 [1] : vector<32x32xf32> to vector<32xf32>
    %220 = vector.shape_cast %219 : vector<32xf32> to vector<32x1xf32>
    %cst_96 = arith.constant 9.99999996E-13 : f32
    %221 = vector.broadcast %cst_96 : f32 to vector<32x1xf32>
    %222 = arith.maximumf %220, %221 : vector<32x1xf32>
    %cst_97 = arith.constant 0.000000e+00 : f32
    %223 = arith.subf %cst_97, %3 : f32
    %224 = vector.broadcast %222 : vector<32x1xf32> to vector<32x32xf32>
    %225 = arith.divf %217, %224 : vector<32x32xf32>
    %226 = vector.broadcast %223 : f32 to vector<32x32xf32>
    %227 = arith.mulf %226, %225 : vector<32x32xf32>
    %228 = math.exp %227 : vector<32x32xf32>
    %c1_98 = arith.constant 1 : index
    %c0_99 = arith.constant 0 : index
    %c0_100 = arith.constant 0 : index
    %229 = vector.load %arg13[%c1_98, %c0_99, %c0_100] : memref<3x32x32xbf16, #tpu.memory_space<vmem>>, vector<1x32x32xbf16>
    %230 = vector.shape_cast %229 : vector<1x32x32xbf16> to vector<32x32xbf16>
    %c1_101 = arith.constant 1 : index
    %c0_102 = arith.constant 0 : index
    %c0_103 = arith.constant 0 : index
    %231 = vector.load %arg14[%c1_101, %c0_102, %c0_103] : memref<3x1x32xf32, #tpu.memory_space<vmem>>, vector<1x1x32xf32>
    %232 = vector.shape_cast %231 : vector<1x1x32xf32> to vector<1x32xf32>
    %233 = vector.extract_strided_slice %106 {offsets = [0, 0], sizes = [32, 8], strides = [1, 1]} : vector<32x32xf32> to vector<32x8xf32>
    %234 = vector.extract_strided_slice %98 {offsets = [0, 0], sizes = [16, 8], strides = [1, 1]} : vector<16x32xf32> to vector<16x8xf32>
    "tpu.trace_start"() <{level = 10 : i32, message = "qd,kd->qk"}> : () -> ()
    %cst_104 = arith.constant dense<0.000000e+00> : vector<32x16xf32>
    %235 = tpu.matmul %233, %234, %cst_104 {dimension_numbers = #tpu.dot_dimension_numbers<[1], [1], [0], [0], [0, 0, 1, 0], [], []>} : vector<32x8xf32>, vector<16x8xf32>, vector<32x16xf32> -> vector<32x16xf32>
    "tpu.trace_stop"() : () -> ()
    %236 = arith.addf %235, %46 : vector<32x16xf32>
    %cst_105 = arith.constant dense<0xFF800000> : vector<32xf32>
    %237 = vector.multi_reduction <maximumf>, %236, %cst_105 [1] : vector<32x16xf32> to vector<32xf32>
    %238 = vector.shape_cast %237 : vector<32xf32> to vector<32x1xf32>
    %239 = vector.broadcast %238 : vector<32x1xf32> to vector<32x16xf32>
    %240 = arith.subf %236, %239 : vector<32x16xf32>
    %241 = math.exp %240 : vector<32x16xf32>
    %cst_106 = arith.constant dense<0.000000e+00> : vector<32xf32>
    %242 = vector.multi_reduction <add>, %241, %cst_106 [1] : vector<32x16xf32> to vector<32xf32>
    %243 = vector.shape_cast %242 : vector<32xf32> to vector<32x1xf32>
    %244 = tpu.reciprocal %243 {approx = true} : vector<32x1xf32> -> vector<32x1xf32>
    %245 = vector.broadcast %244 : vector<32x1xf32> to vector<32x16xf32>
    %246 = arith.mulf %241, %245 : vector<32x16xf32>
    %247 = vector.extract_strided_slice %99 {offsets = [0, 0], sizes = [16, 8], strides = [1, 1]} : vector<16x32xf32> to vector<16x8xf32>
    %cst_107 = arith.constant dense<0.000000e+00> : vector<32x8xf32>
    %248 = tpu.matmul %246, %247, %cst_107 {dimension_numbers = #tpu.dot_dimension_numbers<[1], [0], [0], [1], [0, 0, 1, 1], [], []>} : vector<32x16xf32>, vector<16x8xf32>, vector<32x8xf32> -> vector<32x8xf32>
    %249 = vector.extract_strided_slice %106 {offsets = [0, 8], sizes = [32, 8], strides = [1, 1]} : vector<32x32xf32> to vector<32x8xf32>
    %250 = vector.extract_strided_slice %98 {offsets = [0, 8], sizes = [16, 8], strides = [1, 1]} : vector<16x32xf32> to vector<16x8xf32>
    "tpu.trace_start"() <{level = 10 : i32, message = "qd,kd->qk"}> : () -> ()
    %cst_108 = arith.constant dense<0.000000e+00> : vector<32x16xf32>
    %251 = tpu.matmul %249, %250, %cst_108 {dimension_numbers = #tpu.dot_dimension_numbers<[1], [1], [0], [0], [0, 0, 1, 0], [], []>} : vector<32x8xf32>, vector<16x8xf32>, vector<32x16xf32> -> vector<32x16xf32>
    "tpu.trace_stop"() : () -> ()
    %252 = arith.addf %251, %46 : vector<32x16xf32>
    %cst_109 = arith.constant dense<0xFF800000> : vector<32xf32>
    %253 = vector.multi_reduction <maximumf>, %252, %cst_109 [1] : vector<32x16xf32> to vector<32xf32>
    %254 = vector.shape_cast %253 : vector<32xf32> to vector<32x1xf32>
    %255 = vector.broadcast %254 : vector<32x1xf32> to vector<32x16xf32>
    %256 = arith.subf %252, %255 : vector<32x16xf32>
    %257 = math.exp %256 : vector<32x16xf32>
    %cst_110 = arith.constant dense<0.000000e+00> : vector<32xf32>
    %258 = vector.multi_reduction <add>, %257, %cst_110 [1] : vector<32x16xf32> to vector<32xf32>
    %259 = vector.shape_cast %258 : vector<32xf32> to vector<32x1xf32>
    %260 = tpu.reciprocal %259 {approx = true} : vector<32x1xf32> -> vector<32x1xf32>
    %261 = vector.broadcast %260 : vector<32x1xf32> to vector<32x16xf32>
    %262 = arith.mulf %257, %261 : vector<32x16xf32>
    %263 = vector.extract_strided_slice %99 {offsets = [0, 8], sizes = [16, 8], strides = [1, 1]} : vector<16x32xf32> to vector<16x8xf32>
    %cst_111 = arith.constant dense<0.000000e+00> : vector<32x8xf32>
    %264 = tpu.matmul %262, %263, %cst_111 {dimension_numbers = #tpu.dot_dimension_numbers<[1], [0], [0], [1], [0, 0, 1, 1], [], []>} : vector<32x16xf32>, vector<16x8xf32>, vector<32x8xf32> -> vector<32x8xf32>
    %265 = vector.extract_strided_slice %106 {offsets = [0, 16], sizes = [32, 8], strides = [1, 1]} : vector<32x32xf32> to vector<32x8xf32>
    %266 = vector.extract_strided_slice %98 {offsets = [0, 16], sizes = [16, 8], strides = [1, 1]} : vector<16x32xf32> to vector<16x8xf32>
    "tpu.trace_start"() <{level = 10 : i32, message = "qd,kd->qk"}> : () -> ()
    %cst_112 = arith.constant dense<0.000000e+00> : vector<32x16xf32>
    %267 = tpu.matmul %265, %266, %cst_112 {dimension_numbers = #tpu.dot_dimension_numbers<[1], [1], [0], [0], [0, 0, 1, 0], [], []>} : vector<32x8xf32>, vector<16x8xf32>, vector<32x16xf32> -> vector<32x16xf32>
    "tpu.trace_stop"() : () -> ()
    %268 = arith.addf %267, %46 : vector<32x16xf32>
    %cst_113 = arith.constant dense<0xFF800000> : vector<32xf32>
    %269 = vector.multi_reduction <maximumf>, %268, %cst_113 [1] : vector<32x16xf32> to vector<32xf32>
    %270 = vector.shape_cast %269 : vector<32xf32> to vector<32x1xf32>
    %271 = vector.broadcast %270 : vector<32x1xf32> to vector<32x16xf32>
    %272 = arith.subf %268, %271 : vector<32x16xf32>
    %273 = math.exp %272 : vector<32x16xf32>
    %cst_114 = arith.constant dense<0.000000e+00> : vector<32xf32>
    %274 = vector.multi_reduction <add>, %273, %cst_114 [1] : vector<32x16xf32> to vector<32xf32>
    %275 = vector.shape_cast %274 : vector<32xf32> to vector<32x1xf32>
    %276 = tpu.reciprocal %275 {approx = true} : vector<32x1xf32> -> vector<32x1xf32>
    %277 = vector.broadcast %276 : vector<32x1xf32> to vector<32x16xf32>
    %278 = arith.mulf %273, %277 : vector<32x16xf32>
    %279 = vector.extract_strided_slice %99 {offsets = [0, 16], sizes = [16, 8], strides = [1, 1]} : vector<16x32xf32> to vector<16x8xf32>
    %cst_115 = arith.constant dense<0.000000e+00> : vector<32x8xf32>
    %280 = tpu.matmul %278, %279, %cst_115 {dimension_numbers = #tpu.dot_dimension_numbers<[1], [0], [0], [1], [0, 0, 1, 1], [], []>} : vector<32x16xf32>, vector<16x8xf32>, vector<32x8xf32> -> vector<32x8xf32>
    %281 = vector.extract_strided_slice %106 {offsets = [0, 24], sizes = [32, 8], strides = [1, 1]} : vector<32x32xf32> to vector<32x8xf32>
    %282 = vector.extract_strided_slice %98 {offsets = [0, 24], sizes = [16, 8], strides = [1, 1]} : vector<16x32xf32> to vector<16x8xf32>
    "tpu.trace_start"() <{level = 10 : i32, message = "qd,kd->qk"}> : () -> ()
    %cst_116 = arith.constant dense<0.000000e+00> : vector<32x16xf32>
    %283 = tpu.matmul %281, %282, %cst_116 {dimension_numbers = #tpu.dot_dimension_numbers<[1], [1], [0], [0], [0, 0, 1, 0], [], []>} : vector<32x8xf32>, vector<16x8xf32>, vector<32x16xf32> -> vector<32x16xf32>
    "tpu.trace_stop"() : () -> ()
    %284 = arith.addf %283, %46 : vector<32x16xf32>
    %cst_117 = arith.constant dense<0xFF800000> : vector<32xf32>
    %285 = vector.multi_reduction <maximumf>, %284, %cst_117 [1] : vector<32x16xf32> to vector<32xf32>
    %286 = vector.shape_cast %285 : vector<32xf32> to vector<32x1xf32>
    %287 = vector.broadcast %286 : vector<32x1xf32> to vector<32x16xf32>
    %288 = arith.subf %284, %287 : vector<32x16xf32>
    %289 = math.exp %288 : vector<32x16xf32>
    %cst_118 = arith.constant dense<0.000000e+00> : vector<32xf32>
    %290 = vector.multi_reduction <add>, %289, %cst_118 [1] : vector<32x16xf32> to vector<32xf32>
    %291 = vector.shape_cast %290 : vector<32xf32> to vector<32x1xf32>
    %292 = tpu.reciprocal %291 {approx = true} : vector<32x1xf32> -> vector<32x1xf32>
    %293 = vector.broadcast %292 : vector<32x1xf32> to vector<32x16xf32>
    %294 = arith.mulf %289, %293 : vector<32x16xf32>
    %295 = vector.extract_strided_slice %99 {offsets = [0, 24], sizes = [16, 8], strides = [1, 1]} : vector<16x32xf32> to vector<16x8xf32>
    %cst_119 = arith.constant dense<0.000000e+00> : vector<32x8xf32>
    %296 = tpu.matmul %294, %295, %cst_119 {dimension_numbers = #tpu.dot_dimension_numbers<[1], [0], [0], [1], [0, 0, 1, 1], [], []>} : vector<32x16xf32>, vector<16x8xf32>, vector<32x8xf32> -> vector<32x8xf32>
    %297 = tpu.concatenate %248, %264, %280, %296 in 1 : vector<32x8xf32>, vector<32x8xf32>, vector<32x8xf32>, vector<32x8xf32> -> vector<32x32xf32>
    %298 = arith.truncf %297 : vector<32x32xf32> to vector<32x32xbf16>
    %cst_120 = arith.constant dense<0.000000e+00> : vector<32x32xf32>
    %299 = tpu.matmul %298, %230, %cst_120 {dimension_numbers = #tpu.dot_dimension_numbers<[1], [0], [0], [1], [0, 0, 1, 1], [], []>} : vector<32x32xbf16>, vector<32x32xbf16>, vector<32x32xf32> -> vector<32x32xf32>
    %300 = vector.broadcast %232 : vector<1x32xf32> to vector<32x32xf32>
    %301 = arith.addf %299, %300 : vector<32x32xf32>
    %302 = arith.addf %0, %301 : vector<32x32xf32>
    %c0_121 = arith.constant 0 : index
    %c0_122 = arith.constant 0 : index
    %303 = vector.load %arg11[%c0_121, %c0_122] : memref<32x64xbf16, #tpu.memory_space<vmem>>, vector<32x64xbf16>
    %304 = arith.truncf %302 : vector<32x32xf32> to vector<32x32xbf16>
    %cst_123 = arith.constant dense<0.000000e+00> : vector<32x64xf32>
    %305 = tpu.matmul %304, %303, %cst_123 {dimension_numbers = #tpu.dot_dimension_numbers<[1], [0], [0], [1], [0, 0, 1, 1], [], []>} : vector<32x32xbf16>, vector<32x64xbf16>, vector<32x64xf32> -> vector<32x64xf32>
    %c0_124 = arith.constant 0 : index
    %c0_125 = arith.constant 0 : index
    %306 = vector.load %arg12[%c0_124, %c0_125] : memref<1x64xf32, #tpu.memory_space<vmem>>, vector<1x64xf32>
    %307 = vector.broadcast %306 : vector<1x64xf32> to vector<32x64xf32>
    %308 = arith.addf %305, %307 : vector<32x64xf32>
    %309 = vector.extract_strided_slice %308 {offsets = [0, 0], sizes = [32, 32], strides = [1, 1]} : vector<32x64xf32> to vector<32x32xf32>
    %310 = vector.extract_strided_slice %308 {offsets = [0, 32], sizes = [32, 32], strides = [1, 1]} : vector<32x64xf32> to vector<32x32xf32>
    %c2_126 = arith.constant 2 : index
    %c0_127 = arith.constant 0 : index
    %c0_128 = arith.constant 0 : index
    %311 = vector.load %arg13[%c2_126, %c0_127, %c0_128] : memref<3x32x32xbf16, #tpu.memory_space<vmem>>, vector<1x32x32xbf16>
    %312 = vector.shape_cast %311 : vector<1x32x32xbf16> to vector<32x32xbf16>
    %c2_129 = arith.constant 2 : index
    %c0_130 = arith.constant 0 : index
    %c0_131 = arith.constant 0 : index
    %313 = vector.load %arg14[%c2_129, %c0_130, %c0_131] : memref<3x1x32xf32, #tpu.memory_space<vmem>>, vector<1x1x32xf32>
    %314 = vector.shape_cast %313 : vector<1x1x32xf32> to vector<1x32xf32>
    %315 = vector.extract_strided_slice %309 {offsets = [0, 0], sizes = [32, 8], strides = [1, 1]} : vector<32x32xf32> to vector<32x8xf32>
    %316 = vector.extract_strided_slice %310 {offsets = [0, 0], sizes = [32, 8], strides = [1, 1]} : vector<32x32xf32> to vector<32x8xf32>
    "tpu.trace_start"() <{level = 10 : i32, message = "qd,kd->qk"}> : () -> ()
    %cst_132 = arith.constant dense<0.000000e+00> : vector<32x32xf32>
    %317 = tpu.matmul %315, %316, %cst_132 {dimension_numbers = #tpu.dot_dimension_numbers<[1], [1], [0], [0], [0, 0, 1, 0], [], []>} : vector<32x8xf32>, vector<32x8xf32>, vector<32x32xf32> -> vector<32x32xf32>
    "tpu.trace_stop"() : () -> ()
    %318 = arith.addf %317, %89 : vector<32x32xf32>
    %cst_133 = arith.constant dense<0xFF800000> : vector<32xf32>
    %319 = vector.multi_reduction <maximumf>, %318, %cst_133 [1] : vector<32x32xf32> to vector<32xf32>
    %320 = vector.shape_cast %319 : vector<32xf32> to vector<32x1xf32>
    %321 = vector.broadcast %320 : vector<32x1xf32> to vector<32x32xf32>
    %322 = arith.subf %318, %321 : vector<32x32xf32>
    %323 = math.exp %322 : vector<32x32xf32>
    %cst_134 = arith.constant dense<0.000000e+00> : vector<32xf32>
    %324 = vector.multi_reduction <add>, %323, %cst_134 [1] : vector<32x32xf32> to vector<32xf32>
    %325 = vector.shape_cast %324 : vector<32xf32> to vector<32x1xf32>
    %326 = tpu.reciprocal %325 {approx = true} : vector<32x1xf32> -> vector<32x1xf32>
    %327 = vector.broadcast %326 : vector<32x1xf32> to vector<32x32xf32>
    %328 = arith.mulf %323, %327 : vector<32x32xf32>
    %329 = vector.extract_strided_slice %107 {offsets = [0, 0], sizes = [32, 8], strides = [1, 1]} : vector<32x32xf32> to vector<32x8xf32>
    %cst_135 = arith.constant dense<0.000000e+00> : vector<32x8xf32>
    %330 = tpu.matmul %328, %329, %cst_135 {dimension_numbers = #tpu.dot_dimension_numbers<[1], [0], [0], [1], [0, 0, 1, 1], [], []>} : vector<32x32xf32>, vector<32x8xf32>, vector<32x8xf32> -> vector<32x8xf32>
    %331 = vector.extract_strided_slice %309 {offsets = [0, 8], sizes = [32, 8], strides = [1, 1]} : vector<32x32xf32> to vector<32x8xf32>
    %332 = vector.extract_strided_slice %310 {offsets = [0, 8], sizes = [32, 8], strides = [1, 1]} : vector<32x32xf32> to vector<32x8xf32>
    "tpu.trace_start"() <{level = 10 : i32, message = "qd,kd->qk"}> : () -> ()
    %cst_136 = arith.constant dense<0.000000e+00> : vector<32x32xf32>
    %333 = tpu.matmul %331, %332, %cst_136 {dimension_numbers = #tpu.dot_dimension_numbers<[1], [1], [0], [0], [0, 0, 1, 0], [], []>} : vector<32x8xf32>, vector<32x8xf32>, vector<32x32xf32> -> vector<32x32xf32>
    "tpu.trace_stop"() : () -> ()
    %334 = arith.addf %333, %89 : vector<32x32xf32>
    %cst_137 = arith.constant dense<0xFF800000> : vector<32xf32>
    %335 = vector.multi_reduction <maximumf>, %334, %cst_137 [1] : vector<32x32xf32> to vector<32xf32>
    %336 = vector.shape_cast %335 : vector<32xf32> to vector<32x1xf32>
    %337 = vector.broadcast %336 : vector<32x1xf32> to vector<32x32xf32>
    %338 = arith.subf %334, %337 : vector<32x32xf32>
    %339 = math.exp %338 : vector<32x32xf32>
    %cst_138 = arith.constant dense<0.000000e+00> : vector<32xf32>
    %340 = vector.multi_reduction <add>, %339, %cst_138 [1] : vector<32x32xf32> to vector<32xf32>
    %341 = vector.shape_cast %340 : vector<32xf32> to vector<32x1xf32>
    %342 = tpu.reciprocal %341 {approx = true} : vector<32x1xf32> -> vector<32x1xf32>
    %343 = vector.broadcast %342 : vector<32x1xf32> to vector<32x32xf32>
    %344 = arith.mulf %339, %343 : vector<32x32xf32>
    %345 = vector.extract_strided_slice %107 {offsets = [0, 8], sizes = [32, 8], strides = [1, 1]} : vector<32x32xf32> to vector<32x8xf32>
    %cst_139 = arith.constant dense<0.000000e+00> : vector<32x8xf32>
    %346 = tpu.matmul %344, %345, %cst_139 {dimension_numbers = #tpu.dot_dimension_numbers<[1], [0], [0], [1], [0, 0, 1, 1], [], []>} : vector<32x32xf32>, vector<32x8xf32>, vector<32x8xf32> -> vector<32x8xf32>
    %347 = vector.extract_strided_slice %309 {offsets = [0, 16], sizes = [32, 8], strides = [1, 1]} : vector<32x32xf32> to vector<32x8xf32>
    %348 = vector.extract_strided_slice %310 {offsets = [0, 16], sizes = [32, 8], strides = [1, 1]} : vector<32x32xf32> to vector<32x8xf32>
    "tpu.trace_start"() <{level = 10 : i32, message = "qd,kd->qk"}> : () -> ()
    %cst_140 = arith.constant dense<0.000000e+00> : vector<32x32xf32>
    %349 = tpu.matmul %347, %348, %cst_140 {dimension_numbers = #tpu.dot_dimension_numbers<[1], [1], [0], [0], [0, 0, 1, 0], [], []>} : vector<32x8xf32>, vector<32x8xf32>, vector<32x32xf32> -> vector<32x32xf32>
    "tpu.trace_stop"() : () -> ()
    %350 = arith.addf %349, %89 : vector<32x32xf32>
    %cst_141 = arith.constant dense<0xFF800000> : vector<32xf32>
    %351 = vector.multi_reduction <maximumf>, %350, %cst_141 [1] : vector<32x32xf32> to vector<32xf32>
    %352 = vector.shape_cast %351 : vector<32xf32> to vector<32x1xf32>
    %353 = vector.broadcast %352 : vector<32x1xf32> to vector<32x32xf32>
    %354 = arith.subf %350, %353 : vector<32x32xf32>
    %355 = math.exp %354 : vector<32x32xf32>
    %cst_142 = arith.constant dense<0.000000e+00> : vector<32xf32>
    %356 = vector.multi_reduction <add>, %355, %cst_142 [1] : vector<32x32xf32> to vector<32xf32>
    %357 = vector.shape_cast %356 : vector<32xf32> to vector<32x1xf32>
    %358 = tpu.reciprocal %357 {approx = true} : vector<32x1xf32> -> vector<32x1xf32>
    %359 = vector.broadcast %358 : vector<32x1xf32> to vector<32x32xf32>
    %360 = arith.mulf %355, %359 : vector<32x32xf32>
    %361 = vector.extract_strided_slice %107 {offsets = [0, 16], sizes = [32, 8], strides = [1, 1]} : vector<32x32xf32> to vector<32x8xf32>
    %cst_143 = arith.constant dense<0.000000e+00> : vector<32x8xf32>
    %362 = tpu.matmul %360, %361, %cst_143 {dimension_numbers = #tpu.dot_dimension_numbers<[1], [0], [0], [1], [0, 0, 1, 1], [], []>} : vector<32x32xf32>, vector<32x8xf32>, vector<32x8xf32> -> vector<32x8xf32>
    %363 = vector.extract_strided_slice %309 {offsets = [0, 24], sizes = [32, 8], strides = [1, 1]} : vector<32x32xf32> to vector<32x8xf32>
    %364 = vector.extract_strided_slice %310 {offsets = [0, 24], sizes = [32, 8], strides = [1, 1]} : vector<32x32xf32> to vector<32x8xf32>
    "tpu.trace_start"() <{level = 10 : i32, message = "qd,kd->qk"}> : () -> ()
    %cst_144 = arith.constant dense<0.000000e+00> : vector<32x32xf32>
    %365 = tpu.matmul %363, %364, %cst_144 {dimension_numbers = #tpu.dot_dimension_numbers<[1], [1], [0], [0], [0, 0, 1, 0], [], []>} : vector<32x8xf32>, vector<32x8xf32>, vector<32x32xf32> -> vector<32x32xf32>
    "tpu.trace_stop"() : () -> ()
    %366 = arith.addf %365, %89 : vector<32x32xf32>
    %cst_145 = arith.constant dense<0xFF800000> : vector<32xf32>
    %367 = vector.multi_reduction <maximumf>, %366, %cst_145 [1] : vector<32x32xf32> to vector<32xf32>
    %368 = vector.shape_cast %367 : vector<32xf32> to vector<32x1xf32>
    %369 = vector.broadcast %368 : vector<32x1xf32> to vector<32x32xf32>
    %370 = arith.subf %366, %369 : vector<32x32xf32>
    %371 = math.exp %370 : vector<32x32xf32>
    %cst_146 = arith.constant dense<0.000000e+00> : vector<32xf32>
    %372 = vector.multi_reduction <add>, %371, %cst_146 [1] : vector<32x32xf32> to vector<32xf32>
    %373 = vector.shape_cast %372 : vector<32xf32> to vector<32x1xf32>
    %374 = tpu.reciprocal %373 {approx = true} : vector<32x1xf32> -> vector<32x1xf32>
    %375 = vector.broadcast %374 : vector<32x1xf32> to vector<32x32xf32>
    %376 = arith.mulf %371, %375 : vector<32x32xf32>
    %377 = vector.extract_strided_slice %107 {offsets = [0, 24], sizes = [32, 8], strides = [1, 1]} : vector<32x32xf32> to vector<32x8xf32>
    %cst_147 = arith.constant dense<0.000000e+00> : vector<32x8xf32>
    %378 = tpu.matmul %376, %377, %cst_147 {dimension_numbers = #tpu.dot_dimension_numbers<[1], [0], [0], [1], [0, 0, 1, 1], [], []>} : vector<32x32xf32>, vector<32x8xf32>, vector<32x8xf32> -> vector<32x8xf32>
    %379 = tpu.concatenate %330, %346, %362, %378 in 1 : vector<32x8xf32>, vector<32x8xf32>, vector<32x8xf32>, vector<32x8xf32> -> vector<32x32xf32>
    %380 = arith.truncf %379 : vector<32x32xf32> to vector<32x32xbf16>
    %cst_148 = arith.constant dense<0.000000e+00> : vector<32x32xf32>
    %381 = tpu.matmul %380, %312, %cst_148 {dimension_numbers = #tpu.dot_dimension_numbers<[1], [0], [0], [1], [0, 0, 1, 1], [], []>} : vector<32x32xbf16>, vector<32x32xbf16>, vector<32x32xf32> -> vector<32x32xf32>
    %382 = vector.broadcast %314 : vector<1x32xf32> to vector<32x32xf32>
    %383 = arith.addf %381, %382 : vector<32x32xf32>
    %cst_149 = arith.constant dense<0.000000e+00> : vector<32xf32>
    %384 = vector.multi_reduction <add>, %0, %cst_149 [1] : vector<32x32xf32> to vector<32xf32>
    %385 = vector.shape_cast %384 : vector<32xf32> to vector<32x1xf32>
    %cst_150 = arith.constant 3.200000e+01 : f32
    %386 = vector.broadcast %cst_150 : f32 to vector<32x1xf32>
    %387 = arith.divf %385, %386 : vector<32x1xf32>
    %388 = vector.broadcast %387 : vector<32x1xf32> to vector<32x32xf32>
    %389 = arith.subf %0, %388 : vector<32x32xf32>
    %390 = arith.mulf %389, %389 : vector<32x32xf32>
    %cst_151 = arith.constant dense<0.000000e+00> : vector<32xf32>
    %391 = vector.multi_reduction <add>, %390, %cst_151 [1] : vector<32x32xf32> to vector<32xf32>
    %392 = vector.shape_cast %391 : vector<32xf32> to vector<32x1xf32>
    %cst_152 = arith.constant 3.200000e+01 : f32
    %393 = vector.broadcast %cst_152 : f32 to vector<32x1xf32>
    %394 = arith.divf %392, %393 : vector<32x1xf32>
    %395 = vector.broadcast %387 : vector<32x1xf32> to vector<32x32xf32>
    %396 = arith.subf %0, %395 : vector<32x32xf32>
    %cst_153 = arith.constant 9.99999974E-6 : f32
    %397 = vector.broadcast %cst_153 : f32 to vector<32x1xf32>
    %398 = arith.addf %394, %397 : vector<32x1xf32>
    %399 = math.rsqrt %398 : vector<32x1xf32>
    %400 = vector.broadcast %399 : vector<32x1xf32> to vector<32x32xf32>
    %401 = arith.mulf %396, %400 : vector<32x32xf32>
    %c0_154 = arith.constant 0 : index
    %c0_155 = arith.constant 0 : index
    %c0_156 = arith.constant 0 : index
    %402 = vector.load %arg17[%c0_154, %c0_155, %c0_156] : memref<2x1x32xf32, #tpu.memory_space<vmem>>, vector<1x1x32xf32>
    %403 = vector.shape_cast %402 : vector<1x1x32xf32> to vector<1x32xf32>
    %404 = vector.broadcast %403 : vector<1x32xf32> to vector<32x32xf32>
    %405 = arith.mulf %401, %404 : vector<32x32xf32>
    %c0_157 = arith.constant 0 : index
    %c0_158 = arith.constant 0 : index
    %c0_159 = arith.constant 0 : index
    %406 = vector.load %arg18[%c0_157, %c0_158, %c0_159] : memref<2x1x32xf32, #tpu.memory_space<vmem>>, vector<1x1x32xf32>
    %407 = vector.shape_cast %406 : vector<1x1x32xf32> to vector<1x32xf32>
    %408 = vector.broadcast %407 : vector<1x32xf32> to vector<32x32xf32>
    %409 = arith.addf %405, %408 : vector<32x32xf32>
    %cst_160 = arith.constant dense<0.000000e+00> : vector<32xf32>
    %410 = vector.multi_reduction <add>, %383, %cst_160 [1] : vector<32x32xf32> to vector<32xf32>
    %411 = vector.shape_cast %410 : vector<32xf32> to vector<32x1xf32>
    %cst_161 = arith.constant 3.200000e+01 : f32
    %412 = vector.broadcast %cst_161 : f32 to vector<32x1xf32>
    %413 = arith.divf %411, %412 : vector<32x1xf32>
    %414 = vector.broadcast %413 : vector<32x1xf32> to vector<32x32xf32>
    %415 = arith.subf %383, %414 : vector<32x32xf32>
    %416 = arith.mulf %415, %415 : vector<32x32xf32>
    %cst_162 = arith.constant dense<0.000000e+00> : vector<32xf32>
    %417 = vector.multi_reduction <add>, %416, %cst_162 [1] : vector<32x32xf32> to vector<32xf32>
    %418 = vector.shape_cast %417 : vector<32xf32> to vector<32x1xf32>
    %cst_163 = arith.constant 3.200000e+01 : f32
    %419 = vector.broadcast %cst_163 : f32 to vector<32x1xf32>
    %420 = arith.divf %418, %419 : vector<32x1xf32>
    %421 = vector.broadcast %413 : vector<32x1xf32> to vector<32x32xf32>
    %422 = arith.subf %383, %421 : vector<32x32xf32>
    %cst_164 = arith.constant 9.99999974E-6 : f32
    %423 = vector.broadcast %cst_164 : f32 to vector<32x1xf32>
    %424 = arith.addf %420, %423 : vector<32x1xf32>
    %425 = math.rsqrt %424 : vector<32x1xf32>
    %426 = vector.broadcast %425 : vector<32x1xf32> to vector<32x32xf32>
    %427 = arith.mulf %422, %426 : vector<32x32xf32>
    %c1_165 = arith.constant 1 : index
    %c0_166 = arith.constant 0 : index
    %c0_167 = arith.constant 0 : index
    %428 = vector.load %arg17[%c1_165, %c0_166, %c0_167] : memref<2x1x32xf32, #tpu.memory_space<vmem>>, vector<1x1x32xf32>
    %429 = vector.shape_cast %428 : vector<1x1x32xf32> to vector<1x32xf32>
    %430 = vector.broadcast %429 : vector<1x32xf32> to vector<32x32xf32>
    %431 = arith.mulf %427, %430 : vector<32x32xf32>
    %c1_168 = arith.constant 1 : index
    %c0_169 = arith.constant 0 : index
    %c0_170 = arith.constant 0 : index
    %432 = vector.load %arg18[%c1_168, %c0_169, %c0_170] : memref<2x1x32xf32, #tpu.memory_space<vmem>>, vector<1x1x32xf32>
    %433 = vector.shape_cast %432 : vector<1x1x32xf32> to vector<1x32xf32>
    %434 = vector.broadcast %433 : vector<1x32xf32> to vector<32x32xf32>
    %435 = arith.addf %431, %434 : vector<32x32xf32>
    %436 = arith.addf %409, %435 : vector<32x32xf32>
    %437 = arith.mulf %436, %228 : vector<32x32xf32>
    %438 = tpu.concatenate %0, %437 in 1 : vector<32x32xf32>, vector<32x32xf32> -> vector<32x64xf32>
    %c0_171 = arith.constant 0 : index
    %c0_172 = arith.constant 0 : index
    %439 = vector.load %arg20[%c0_171, %c0_172] : memref<32x64xf32, #tpu.memory_space<vmem>>, vector<32x64xf32>
    tpu.vector_store %arg20[%c0_171, %c0_172], %438 {strides = array<i32>} : memref<32x64xf32, #tpu.memory_space<vmem>>, vector<32x64xf32>,
    return
  }
}

</mosaic_0001>

<llo_original>
// kernel: tpu_custom_call.1
$region0: #{tpu_custom_call.1}
  #allocation0 [shape = 'u32[]', space=smem, size = 0x4, offset = 0x4, fixed_abs, tag = 'smem constant byte address 0x4 - core index']
  #allocation1 [shape = 'u32[72,128]{1,0:T(1,128)}', space=vmem, size = 0x9000, scoped, tag = 'internal scratch']
  #allocation2 [shape = 'f32[1]{0:T(128)S(6)}', space=smem, size = 0x200, scoped, tag = 'scoped memory for tpu_custom_call.1']
  %s0 = inlined_call_operand.hbm [shape: f32[32,32], index: 0, kind: input, shape index: {}]
  %s1 = inlined_call_operand.hbm [shape: f32[16,32], index: 1, kind: input, shape index: {}]
  %s2 = inlined_call_operand.hbm [shape: f32[32,32], index: 2, kind: input, shape index: {}]
  %s3 = inlined_call_operand.hbm [shape: s32[1,16], index: 3, kind: input, shape index: {}]
  %s4 = inlined_call_operand.hbm [shape: s32[1,32], index: 4, kind: input, shape index: {}]
  %s5 = inlined_call_operand.hbm [shape: bf16[32,128], index: 5, kind: input, shape index: {}]
  %s6 = inlined_call_operand.hbm [shape: f32[1,128], index: 6, kind: input, shape index: {}]
  %s7 = inlined_call_operand.hbm [shape: bf16[32,96], index: 7, kind: input, shape index: {}]
  %s8 = inlined_call_operand.hbm [shape: f32[1,96], index: 8, kind: input, shape index: {}]
  %s9 = inlined_call_operand.hbm [shape: bf16[32,32], index: 9, kind: input, shape index: {}]
  %s10 = inlined_call_operand.vmem [shape: f32[1,32], index: 10, kind: input, shape index: {}]
  %s11 = inlined_call_operand.hbm [shape: bf16[32,64], index: 11, kind: input, shape index: {}]
  %s12 = inlined_call_operand.vmem [shape: f32[1,64], index: 12, kind: input, shape index: {}]
  %s13 = inlined_call_operand.hbm [shape: bf16[3,32,32], index: 13, kind: input, shape index: {}]
  %s14 = inlined_call_operand.vmem [shape: f32[3,1,32], index: 14, kind: input, shape index: {}]
  %s15 = inlined_call_operand.hbm [shape: bf16[3,32,32], index: 15, kind: input, shape index: {}]
  %s16 = inlined_call_operand.vmem [shape: f32[3,1,32], index: 16, kind: input, shape index: {}]
  %s17 = inlined_call_operand.vmem [shape: f32[2,1,32], index: 17, kind: input, shape index: {}]
  %s18 = inlined_call_operand.vmem [shape: f32[2,1,32], index: 18, kind: input, shape index: {}]
  %s19 = inlined_call_operand.<no memory space> [shape: f32[1], index: 19, kind: input, shape index: {}]
  %s20 = inlined_call_operand.hbm [shape: f32[32,64], index: 20, kind: output, shape index: {}]
  %s21 = sld [smem:[#allocation0]]
  $region142: #{tpu_custom_call.1} parent=0
    _
  %s23 = ssub.s32 1, %s21
  %s24 = scalar_select 0, %s23, %s21
  %25 = sst [smem:[#allocation2]] %s19
  $region1: #{tpu_custom_call.1} parent=0
    #allocation3 [shape = 'u8[16384]{0}', space=vmem, size = 0x4000, scoped, tag = 'input window, operand 0, single buffered']
    #allocation4 [shape = 's32[1]{0}', space=sflag, size = 0x4, scoped, tag = 'scoped memory for tpu_custom_call.1']
    #allocation5 [shape = 's32[1]{0}', space=sflag, size = 0x4, scoped, tag = 'scoped memory for tpu_custom_call.1']
    #allocation6 [shape = 'u8[8192]{0}', space=vmem, size = 0x2000, scoped, tag = 'input window, operand 1, single buffered']
    #allocation7 [shape = 's32[1]{0}', space=sflag, size = 0x4, scoped, tag = 'scoped memory for tpu_custom_call.1']
    #allocation8 [shape = 'u8[16384]{0}', space=vmem, size = 0x4000, scoped, tag = 'input window, operand 2, single buffered']
    #allocation9 [shape = 'u8[512]{0}', space=vmem, size = 0x400, scoped, tag = 'input window, operand 3, single buffered']
    #allocation10 [shape = 's32[1]{0}', space=sflag, size = 0x4, scoped, tag = 'scoped memory for tpu_custom_call.1']
    #allocation11 [shape = 'u8[512]{0}', space=vmem, size = 0x400, scoped, tag = 'input window, operand 4, single buffered']
    #allocation12 [shape = 'u8[8192]{0}', space=vmem, size = 0x2000, scoped, tag = 'input window, operand 5, single buffered']
    #allocation13 [shape = 's32[1]{0}', space=sflag, size = 0x4, scoped, tag = 'scoped memory for tpu_custom_call.1']
    #allocation14 [shape = 'u8[512]{0}', space=vmem, size = 0x400, scoped, tag = 'input window, operand 6, single buffered']
    #allocation15 [shape = 'u8[8192]{0}', space=vmem, size = 0x2000, scoped, tag = 'input window, operand 7, single buffered']
    #allocation16 [shape = 's32[1]{0}', space=sflag, size = 0x4, scoped, tag = 'scoped memory for tpu_custom_call.1']
    #allocation17 [shape = 'u8[512]{0}', space=vmem, size = 0x400, scoped, tag = 'input window, operand 8, single buffered']
    #allocation18 [shape = 'u8[8192]{0}', space=vmem, size = 0x2000, scoped, tag = 'input window, operand 9, single buffered']
    #allocation19 [shape = 's32[1]{0}', space=sflag, size = 0x4, scoped, tag = 'scoped memory for tpu_custom_call.1']
    #allocation20 [shape = 'u8[8192]{0}', space=vmem, size = 0x2000, scoped, tag = 'input window, operand 11, single buffered']
    #allocation21 [shape = 'u8[24576]{0}', space=vmem, size = 0x6000, scoped, tag = 'input window, operand 13, single buffered']
    #allocation22 [shape = 's32[1]{0}', space=sflag, size = 0x4, scoped, tag = 'scoped memory for tpu_custom_call.1']
    #allocation23 [shape = 'u8[24576]{0}', space=vmem, size = 0x6000, scoped, tag = 'input window, operand 15, single buffered']
    #allocation24 [shape = 'u8[16384]{0}', space=vmem, size = 0x4000, scoped, tag = 'output window, operand 0, single buffered']
    %26 = vsyncpa [#allocation4], 0
    %27 = vsyncpa [#allocation7], 0
    %28 = vsyncpa [#allocation10], 0
    %29 = vsyncpa [#allocation13], 0
    %30 = vsyncpa [#allocation16], 0
    %31 = vsyncpa [#allocation19], 0
    %32 = vsyncpa [#allocation22], 0
    %33 = vsyncpa [#allocation5], 0
    // Predicated region
    $region2: #{tpu_custom_call.1} parent=1 // pred_check
      _
    $region3: #{tpu_custom_call.1} parent=1 // pred_check_branch
      %35 = sbr.rel (0) target = $region5
    $region4: #{tpu_custom_call.1} parent=1 // pred_region
      %37 = vsyncadd [#allocation4], 0
      %s38 = sshll.u32 %s0, 4
      %s39 = int_to_ptr.hbm [resolvable:$true] %s38
      %s40 = sshll.u32 [#allocation3], 4
      %s41 = int_to_ptr.vmem [resolvable:$true] %s40
      %46 = dma.hbm_to_vmem [thread:$0]  %s39, 512, %s41, [#allocation4], 128, 128, 8
    $region5: #{tpu_custom_call.1} parent=1 // pred_fallthru
      _
    // Predicated region
    $region6: #{tpu_custom_call.1} parent=1 // pred_check
      _
    $region7: #{tpu_custom_call.1} parent=1 // pred_check_branch
      %48 = sbr.rel (0) target = $region9
    $region8: #{tpu_custom_call.1} parent=1 // pred_region
      %50 = vsyncadd [#allocation7], 0
      %s51 = sshll.u32 %s1, 4
      %s52 = int_to_ptr.hbm [resolvable:$true] %s51
      %s53 = sshll.u32 [#allocation6], 4
      %s54 = int_to_ptr.vmem [resolvable:$true] %s53
      %59 = dma.hbm_to_vmem [thread:$0]  %s52, 256, %s54, [#allocation7], 128, 128, 8
    $region9: #{tpu_custom_call.1} parent=1 // pred_fallthru
      _
    // Predicated region
    $region10: #{tpu_custom_call.1} parent=1 // pred_check
      _
    $region11: #{tpu_custom_call.1} parent=1 // pred_check_branch
      %61 = sbr.rel (0) target = $region13
    $region12: #{tpu_custom_call.1} parent=1 // pred_region
      %63 = vsyncadd [#allocation7], 0
      %s64 = sshll.u32 %s2, 4
      %s65 = int_to_ptr.hbm [resolvable:$true] %s64
      %s66 = sshll.u32 [#allocation8], 4
      %s67 = int_to_ptr.vmem [resolvable:$true] %s66
      %72 = dma.hbm_to_vmem [thread:$0]  %s65, 512, %s67, [#allocation7], 128, 128, 8
    $region13: #{tpu_custom_call.1} parent=1 // pred_fallthru
      _
    // Predicated region
    $region14: #{tpu_custom_call.1} parent=1 // pred_check
      _
    $region15: #{tpu_custom_call.1} parent=1 // pred_check_branch
      %74 = sbr.rel (0) target = $region17
    $region16: #{tpu_custom_call.1} parent=1 // pred_region
      %76 = vsyncadd [#allocation10], 0
      %s78 = sshll.u32 %s3, 4
      %s79 = int_to_ptr.hbm [resolvable:$true] %s78
      %s80 = sshll.u32 [#allocation9], 4
      %s81 = int_to_ptr.vmem [resolvable:$true] %s80
      %83 = dma.hbm_to_vmem [thread:$0]  %s79, 16, %s81, [#allocation10]
    $region17: #{tpu_custom_call.1} parent=1 // pred_fallthru
      _
    // Predicated region
    $region18: #{tpu_custom_call.1} parent=1 // pred_check
      _
    $region19: #{tpu_custom_call.1} parent=1 // pred_check_branch
      %85 = sbr.rel (0) target = $region21
    $region20: #{tpu_custom_call.1} parent=1 // pred_region
      %87 = vsyncadd [#allocation10], 0
      %s89 = sshll.u32 %s4, 4
      %s90 = int_to_ptr.hbm [resolvable:$true] %s89
      %s91 = sshll.u32 [#allocation11], 4
      %s92 = int_to_ptr.vmem [resolvable:$true] %s91
      %94 = dma.hbm_to_vmem [thread:$0]  %s90, 16, %s92, [#allocation10]
    $region21: #{tpu_custom_call.1} parent=1 // pred_fallthru
      _
    // Predicated region
    $region22: #{tpu_custom_call.1} parent=1 // pred_check
      _
    $region23: #{tpu_custom_call.1} parent=1 // pred_check_branch
      %96 = sbr.rel (0) target = $region25
    $region24: #{tpu_custom_call.1} parent=1 // pred_region
      %98 = vsyncadd [#allocation13], 0
      %s99 = sshll.u32 %s5, 4
      %s100 = int_to_ptr.hbm [resolvable:$true] %s99
      %s101 = sshll.u32 [#allocation12], 4
      %s102 = int_to_ptr.vmem [resolvable:$true] %s101
      %107 = dma.hbm_to_vmem [thread:$0]  %s100, 256, %s102, [#allocation13], 64, 64, 4
    $region25: #{tpu_custom_call.1} parent=1 // pred_fallthru
      _
    // Predicated region
    $region26: #{tpu_custom_call.1} parent=1 // pred_check
      _
    $region27: #{tpu_custom_call.1} parent=1 // pred_check_branch
      %109 = sbr.rel (0) target = $region29
    $region28: #{tpu_custom_call.1} parent=1 // pred_region
      %111 = vsyncadd [#allocation13], 0
      %s113 = sshll.u32 %s6, 4
      %s114 = int_to_ptr.hbm [resolvable:$true] %s113
      %s115 = sshll.u32 [#allocation14], 4
      %s116 = int_to_ptr.vmem [resolvable:$true] %s115
      %118 = dma.hbm_to_vmem [thread:$0]  %s114, 16, %s116, [#allocation13]
    $region29: #{tpu_custom_call.1} parent=1 // pred_fallthru
      _
    // Predicated region
    $region30: #{tpu_custom_call.1} parent=1 // pred_check
      _
    $region31: #{tpu_custom_call.1} parent=1 // pred_check_branch
      %120 = sbr.rel (0) target = $region33
    $region32: #{tpu_custom_call.1} parent=1 // pred_region
      %122 = vsyncadd [#allocation16], 0
      %s123 = sshll.u32 %s7, 4
      %s124 = int_to_ptr.hbm [resolvable:$true] %s123
      %s125 = sshll.u32 [#allocation15], 4
      %s126 = int_to_ptr.vmem [resolvable:$true] %s125
      %131 = dma.hbm_to_vmem [thread:$0]  %s124, 256, %s126, [#allocation16], 64, 64, 4
    $region33: #{tpu_custom_call.1} parent=1 // pred_fallthru
      _
    // Predicated region
    $region34: #{tpu_custom_call.1} parent=1 // pred_check
      _
    $region35: #{tpu_custom_call.1} parent=1 // pred_check_branch
      %133 = sbr.rel (0) target = $region37
    $region36: #{tpu_custom_call.1} parent=1 // pred_region
      %135 = vsyncadd [#allocation16], 0
      %s137 = sshll.u32 %s8, 4
      %s138 = int_to_ptr.hbm [resolvable:$true] %s137
      %s139 = sshll.u32 [#allocation17], 4
      %s140 = int_to_ptr.vmem [resolvable:$true] %s139
      %142 = dma.hbm_to_vmem [thread:$0]  %s138, 16, %s140, [#allocation16]
    $region37: #{tpu_custom_call.1} parent=1 // pred_fallthru
      _
    // Predicated region
    $region38: #{tpu_custom_call.1} parent=1 // pred_check
      _
    $region39: #{tpu_custom_call.1} parent=1 // pred_check_branch
      %144 = sbr.rel (0) target = $region41
    $region40: #{tpu_custom_call.1} parent=1 // pred_region
      %146 = vsyncadd [#allocation19], 0
      %s147 = sshll.u32 %s9, 4
      %s148 = int_to_ptr.hbm [resolvable:$true] %s147
      %s149 = sshll.u32 [#allocation18], 4
      %s150 = int_to_ptr.vmem [resolvable:$true] %s149
      %155 = dma.hbm_to_vmem [thread:$0]  %s148, 256, %s150, [#allocation19], 64, 64, 4
    $region41: #{tpu_custom_call.1} parent=1 // pred_fallthru
      _
    // Predicated region
    $region42: #{tpu_custom_call.1} parent=1 // pred_check
      _
    $region43: #{tpu_custom_call.1} parent=1 // pred_check_branch
      %157 = sbr.rel (0) target = $region45
    $region44: #{tpu_custom_call.1} parent=1 // pred_region
      _
    $region45: #{tpu_custom_call.1} parent=1 // pred_fallthru
      _
    // Predicated region
    $region46: #{tpu_custom_call.1} parent=1 // pred_check
      _
    $region47: #{tpu_custom_call.1} parent=1 // pred_check_branch
      %159 = sbr.rel (0) target = $region49
    $region48: #{tpu_custom_call.1} parent=1 // pred_region
      %161 = vsyncadd [#allocation19], 0
      %s162 = sshll.u32 %s11, 4
      %s163 = int_to_ptr.hbm [resolvable:$true] %s162
      %s164 = sshll.u32 [#allocation20], 4
      %s165 = int_to_ptr.vmem [resolvable:$true] %s164
      %170 = dma.hbm_to_vmem [thread:$0]  %s163, 256, %s165, [#allocation19], 64, 64, 4
    $region49: #{tpu_custom_call.1} parent=1 // pred_fallthru
      _
    // Predicated region
    $region50: #{tpu_custom_call.1} parent=1 // pred_check
      _
    $region51: #{tpu_custom_call.1} parent=1 // pred_check_branch
      %172 = sbr.rel (0) target = $region53
    $region52: #{tpu_custom_call.1} parent=1 // pred_region
      _
    $region53: #{tpu_custom_call.1} parent=1 // pred_fallthru
      _
    // Predicated region
    $region54: #{tpu_custom_call.1} parent=1 // pred_check
      _
    $region55: #{tpu_custom_call.1} parent=1 // pred_check_branch
      %174 = sbr.rel (0) target = $region57
    $region56: #{tpu_custom_call.1} parent=1 // pred_region
      %176 = vsyncadd [#allocation22], 0
      %s177 = sshll.u32 %s13, 4
      %s178 = int_to_ptr.hbm [resolvable:$true] %s177
      %s179 = sshll.u32 [#allocation21], 4
      %s180 = int_to_ptr.vmem [resolvable:$true] %s179
      %185 = dma.hbm_to_vmem [thread:$0]  %s178, 768, %s180, [#allocation22], 64, 64, 4
    $region57: #{tpu_custom_call.1} parent=1 // pred_fallthru
      _
    // Predicated region
    $region58: #{tpu_custom_call.1} parent=1 // pred_check
      _
    $region59: #{tpu_custom_call.1} parent=1 // pred_check_branch
      %187 = sbr.rel (0) target = $region61
    $region60: #{tpu_custom_call.1} parent=1 // pred_region
      _
    $region61: #{tpu_custom_call.1} parent=1 // pred_fallthru
      _
    // Predicated region
    $region62: #{tpu_custom_call.1} parent=1 // pred_check
      _
    $region63: #{tpu_custom_call.1} parent=1 // pred_check_branch
      %189 = sbr.rel (0) target = $region65
    $region64: #{tpu_custom_call.1} parent=1 // pred_region
      %191 = vsyncadd [#allocation22], 0
      %s192 = sshll.u32 %s15, 4
      %s193 = int_to_ptr.hbm [resolvable:$true] %s192
      %s194 = sshll.u32 [#allocation23], 4
      %s195 = int_to_ptr.vmem [resolvable:$true] %s194
      %200 = dma.hbm_to_vmem [thread:$0]  %s193, 768, %s195, [#allocation22], 64, 64, 4
    $region65: #{tpu_custom_call.1} parent=1 // pred_fallthru
      _
    // Predicated region
    $region66: #{tpu_custom_call.1} parent=1 // pred_check
      _
    $region67: #{tpu_custom_call.1} parent=1 // pred_check_branch
      %202 = sbr.rel (0) target = $region69
    $region68: #{tpu_custom_call.1} parent=1 // pred_region
      _
    $region69: #{tpu_custom_call.1} parent=1 // pred_fallthru
      _
    // Predicated region
    $region70: #{tpu_custom_call.1} parent=1 // pred_check
      _
    $region71: #{tpu_custom_call.1} parent=1 // pred_check_branch
      %204 = sbr.rel (0) target = $region73
    $region72: #{tpu_custom_call.1} parent=1 // pred_region
      _
    $region73: #{tpu_custom_call.1} parent=1 // pred_fallthru
      _
    // Predicated region
    $region74: #{tpu_custom_call.1} parent=1 // pred_check
      _
    $region75: #{tpu_custom_call.1} parent=1 // pred_check_branch
      %206 = sbr.rel (0) target = $region77
    $region76: #{tpu_custom_call.1} parent=1 // pred_region
      _
    $region77: #{tpu_custom_call.1} parent=1 // pred_fallthru
      _
    // Predicated region
    $region78: #{tpu_custom_call.1} parent=1 // pred_check
      _
    $region79: #{tpu_custom_call.1} parent=1 // pred_check_branch
      %208 = sbr.rel (0) target = $region81
    $region80: #{tpu_custom_call.1} parent=1 // pred_region
      _
    $region81: #{tpu_custom_call.1} parent=1 // pred_fallthru
      _
    // Predicated region
    $region82: #{tpu_custom_call.1} parent=1 // pred_check
      _
    $region83: #{tpu_custom_call.1} parent=1 // pred_check_branch
      %210 = sbr.rel (0) target = $region85
    $region84: #{tpu_custom_call.1} parent=1 // pred_region
      %212 = dma.done [#allocation4], 512
    $region85: #{tpu_custom_call.1} parent=1 // pred_fallthru
      _
    // Predicated region
    $region86: #{tpu_custom_call.1} parent=1 // pred_check
      _
    $region87: #{tpu_custom_call.1} parent=1 // pred_check_branch
      %214 = sbr.rel (0) target = $region89
    $region88: #{tpu_custom_call.1} parent=1 // pred_region
      %216 = dma.done [#allocation7], 256
    $region89: #{tpu_custom_call.1} parent=1 // pred_fallthru
      _
    // Predicated region
    $region90: #{tpu_custom_call.1} parent=1 // pred_check
      _
    $region91: #{tpu_custom_call.1} parent=1 // pred_check_branch
      %218 = sbr.rel (0) target = $region93
    $region92: #{tpu_custom_call.1} parent=1 // pred_region
      %220 = dma.done [#allocation7], 512
    $region93: #{tpu_custom_call.1} parent=1 // pred_fallthru
      _
    // Predicated region
    $region94: #{tpu_custom_call.1} parent=1 // pred_check
      _
    $region95: #{tpu_custom_call.1} parent=1 // pred_check_branch
      %222 = sbr.rel (0) target = $region97
    $region96: #{tpu_custom_call.1} parent=1 // pred_region
      %224 = dma.done [#allocation10], 16
    $region97: #{tpu_custom_call.1} parent=1 // pred_fallthru
      _
    // Predicated region
    $region98: #{tpu_custom_call.1} parent=1 // pred_check
      _
    $region99: #{tpu_custom_call.1} parent=1 // pred_check_branch
      %226 = sbr.rel (0) target = $region101
    $region100: #{tpu_custom_call.1} parent=1 // pred_region
      %228 = dma.done [#allocation10], 16
    $region101: #{tpu_custom_call.1} parent=1 // pred_fallthru
      _
    // Predicated region
    $region102: #{tpu_custom_call.1} parent=1 // pred_check
      _
    $region103: #{tpu_custom_call.1} parent=1 // pred_check_branch
      %230 = sbr.rel (0) target = $region105
    $region104: #{tpu_custom_call.1} parent=1 // pred_region
      %232 = dma.done [#allocation13], 256
    $region105: #{tpu_custom_call.1} parent=1 // pred_fallthru
      _
    // Predicated region
    $region106: #{tpu_custom_call.1} parent=1 // pred_check
      _
    $region107: #{tpu_custom_call.1} parent=1 // pred_check_branch
      %234 = sbr.rel (0) target = $region109
    $region108: #{tpu_custom_call.1} parent=1 // pred_region
      %236 = dma.done [#allocation13], 16
    $region109: #{tpu_custom_call.1} parent=1 // pred_fallthru
      _
    // Predicated region
    $region110: #{tpu_custom_call.1} parent=1 // pred_check
      _
    $region111: #{tpu_custom_call.1} parent=1 // pred_check_branch
      %238 = sbr.rel (0) target = $region113
    $region112: #{tpu_custom_call.1} parent=1 // pred_region
      %240 = dma.done [#allocation16], 256
    $region113: #{tpu_custom_call.1} parent=1 // pred_fallthru
      _
    // Predicated region
    $region114: #{tpu_custom_call.1} parent=1 // pred_check
      _
    $region115: #{tpu_custom_call.1} parent=1 // pred_check_branch
      %242 = sbr.rel (0) target = $region117
    $region116: #{tpu_custom_call.1} parent=1 // pred_region
      %244 = dma.done [#allocation16], 16
    $region117: #{tpu_custom_call.1} parent=1 // pred_fallthru
      _
    // Predicated region
    $region118: #{tpu_custom_call.1} parent=1 // pred_check
      _
    $region119: #{tpu_custom_call.1} parent=1 // pred_check_branch
      %246 = sbr.rel (0) target = $region121
    $region120: #{tpu_custom_call.1} parent=1 // pred_region
      %248 = dma.done [#allocation19], 256
    $region121: #{tpu_custom_call.1} parent=1 // pred_fallthru
      _
    // Predicated region
    $region122: #{tpu_custom_call.1} parent=1 // pred_check
      _
    $region123: #{tpu_custom_call.1} parent=1 // pred_check_branch
      %250 = sbr.rel (0) target = $region125
    $region124: #{tpu_custom_call.1} parent=1 // pred_region
      %252 = dma.done [#allocation19], 256
    $region125: #{tpu_custom_call.1} parent=1 // pred_fallthru
      _
    // Predicated region
    $region126: #{tpu_custom_call.1} parent=1 // pred_check
      _
    $region127: #{tpu_custom_call.1} parent=1 // pred_check_branch
      %254 = sbr.rel (0) target = $region129
    $region128: #{tpu_custom_call.1} parent=1 // pred_region
      %256 = dma.done [#allocation22], 768
    $region129: #{tpu_custom_call.1} parent=1 // pred_fallthru
      _
    // Predicated region
    $region130: #{tpu_custom_call.1} parent=1 // pred_check
      _
    $region131: #{tpu_custom_call.1} parent=1 // pred_check_branch
      %258 = sbr.rel (0) target = $region133
    $region132: #{tpu_custom_call.1} parent=1 // pred_region
      %260 = dma.done [#allocation22], 768
    $region133: #{tpu_custom_call.1} parent=1 // pred_fallthru
      _
    %v262 = vld [vmem:[#allocation3] sm:$0xff]
    %v263 = vld [vmem:[#allocation3 + $0x8] sm:$0xff]
    %v264 = vld [vmem:[#allocation3 + $0x10] sm:$0xff]
    %v265 = vld [vmem:[#allocation3 + $0x18] sm:$0xff]
    %v266 = vld [vmem:[#allocation6] sm:$0xff]
    %v267 = vld [vmem:[#allocation6 + $0x8] sm:$0xff]
    %v268 = vld [vmem:[#allocation8] sm:$0xff]
    %v269 = vld [vmem:[#allocation8 + $0x8] sm:$0xff]
    %v270 = vld [vmem:[#allocation8 + $0x10] sm:$0xff]
    %v271 = vld [vmem:[#allocation8 + $0x18] sm:$0xff]
    %s272 = sld [smem:[#allocation2]]
    %v273 = vld [vmem:[#allocation9] sm:$0x1]
    %v274 = vlaneseq
    %v275 = vshrl.u32 %v274, 7
    %v276 = vadd.s32 %v275, 8
    %v277 = vadd.s32 %v275, 16
    %v278 = vadd.s32 %v275, 24
    %vm279 = vcmp.lt.s32.totalorder %v275, 0
    %v280 = vsub.s32 0, %v275
    %v281 = vsel %vm279, %v280, %v275
    %v282 = vshrl.u32 %v281, 1
    %v283 = vand.u32 %v281, 1
    %v284 = vsub.s32 0, %v283
    %v285 = vsel %vm279, %v284, %v283
    %vm286 = vcmp.lt.s32.totalorder %v276, 0
    %v287 = vsub.s32 0, %v276
    %v288 = vsel %vm286, %v287, %v276
    %v289 = vshrl.u32 %v288, 1
    %v290 = vand.u32 %v288, 1
    %v291 = vsub.s32 0, %v290
    %v292 = vsel %vm286, %v291, %v290
    %vm293 = vcmp.lt.s32.totalorder %v277, 0
    %v294 = vsub.s32 0, %v277
    %v295 = vsel %vm293, %v294, %v277
    %v296 = vshrl.u32 %v295, 1
    %v297 = vand.u32 %v295, 1
    %v298 = vsub.s32 0, %v297
    %v299 = vsel %vm293, %v298, %v297
    %vm300 = vcmp.lt.s32.totalorder %v278, 0
    %v301 = vsub.s32 0, %v278
    %v302 = vsel %vm300, %v301, %v278
    %v303 = vshrl.u32 %v302, 1
    %v304 = vand.u32 %v302, 1
    %v305 = vsub.s32 0, %v304
    %v306 = vsel %vm300, %v305, %v304
    %vm307 = vcmp.ne.s32.totalorder %v285, 0
    %vm308 = vcmp.ne.s32.totalorder %v292, 0
    %vm309 = vcmp.ne.s32.totalorder %v299, 0
    %vm310 = vcmp.ne.s32.totalorder %v306, 0
    %vm311 = vcmp.lt.s32.totalorder %v285, 0
    %vm312 = vcmp.lt.s32.totalorder %v292, 0
    %vm313 = vcmp.lt.s32.totalorder %v299, 0
    %vm314 = vcmp.lt.s32.totalorder %v306, 0
    %vm315 = vmand %vm311, %vm307
    %vm316 = vmand %vm312, %vm308
    %vm317 = vmand %vm313, %vm309
    %vm318 = vmand %vm314, %vm310
    %v319 = vadd.s32 %v285, 2
    %v320 = vadd.s32 %v292, 2
    %v321 = vadd.s32 %v299, 2
    %v322 = vadd.s32 %v306, 2
    %v323 = vsel %vm315, %v319, %v285
    %v324 = vsel %vm316, %v320, %v292
    %v325 = vsel %vm317, %v321, %v299
    %v326 = vsel %vm318, %v322, %v306
    %v327 = vlaneseq
    %v328 = vand.u32 %v327, 127
    %vm329 = vcmp.lt.s32.totalorder %v328, 0
    %v330 = vsub.s32 0, %v328
    %v331 = vsel %vm329, %v330, %v328
    %v332 = vshrl.u32 %v331, 1
    %v333 = vand.u32 %v331, 1
    %v334 = vsub.s32 0, %v333
    %v335 = vsel %vm329, %v334, %v333
    %vm336 = vcmp.ne.s32.totalorder %v335, 0
    %vm337 = vcmp.lt.s32.totalorder %v335, 0
    %vm338 = vmand %vm337, %vm336
    %v339 = vadd.s32 %v335, 2
    %v340 = vsel %vm338, %v339, %v335
    %vm341 = vcmp.eq.s32.totalorder %v323, %v340
    %vm342 = vcmp.eq.s32.totalorder %v324, %v340
    %vm343 = vcmp.eq.s32.totalorder %v325, %v340
    %vm344 = vcmp.eq.s32.totalorder %v326, %v340
    %vm345 = vcmp.eq.s32.totalorder %v273, 0
    %v346 = vsel %vm345, 1, 0
    %v347 = vperm.slane %v346, 0
    %vm348 = vcmp.eq.s32.totalorder %v347, 1
    %vm349 = vmand %vm341, %vm348
    %vm350 = vmand %vm342, %vm348
    %vm351 = vmand %vm343, %vm348
    %vm352 = vmand %vm344, %vm348
    %v353 = vsel %vm349, 0.0, -1e+30
    %v354 = vsel %vm350, 0.0, -1e+30
    %v355 = vsel %vm351, 0.0, -1e+30
    %v356 = vsel %vm352, 0.0, -1e+30
    %v357 = vld [vmem:[#allocation11] sm:$0x1]
    %vm358 = vcmp.eq.s32.totalorder %v357, 0
    %v359 = vsel %vm358, 1, 0
    %v360 = vperm.slane %v359, 0
    %vm361 = vcmp.eq.s32.totalorder %v360, 1
    %vm362 = vmand %vm341, %vm361
    %vm363 = vmand %vm342, %vm361
    %vm364 = vmand %vm343, %vm361
    %vm365 = vmand %vm344, %vm361
    %v366 = vsel %vm362, 0.0, -1e+30
    %v367 = vsel %vm363, 0.0, -1e+30
    %v368 = vsel %vm364, 0.0, -1e+30
    %v369 = vsel %vm365, 0.0, -1e+30
    %v370 = vld [vmem:[#allocation12] sm:$0xf]
    %v371 = vld [vmem:[#allocation12 + $0x4] sm:$0xf]
    %v372 = vld [vmem:[#allocation12 + $0x8] sm:$0xf]
    %v373 = vld [vmem:[#allocation12 + $0xc] sm:$0xf]
    %v374 = vpack.c.bf16 %v267, %v266
    %v375 = vld [vmem:[#allocation14] sm:$0x1]
    %v377 = vperm.slane %v375, 0
    %v383 = vunpack.c.l.b16 %v370
    %v384 = vunpack.c.l.b16 %v371
    %v385 = vunpack.c.l.b16 %v372
    %v386 = vunpack.c.l.b16 %v373
    %v387 = vpack.c.b16 %v384, %v383
    %v388 = vpack.c.b16 %v386, %v385
    %vm391 = vcmask 261120
    %v393 = vsel %vm391, %v374, 0
    %395 = vmatpush.bf16.msra.mxu0 0
    %396 = vmatpush.bf16.msra.mxu0 0
    %397 = vmatpush.bf16.msra.mxu0 0
    %398 = vmatpush.bf16.msra.mxu0 0
    %399 = vmatpush.bf16.msra.mxu0 0
    %400 = vmatpush.bf16.msra.mxu0 0
    %401 = vmatpush.bf16.msra.mxu0 %v388
    %402 = vmatpush.bf16.msra.mxu0 %v387
    %403 = vmatmul.bf16.gmra.mxu0 %v393
    %v404 = vpop.f32.mrf.mxu0
    %v405 = vadd.f32 %v377, %v404
    %v406 = vpop.f32.mrf.mxu0
    %v407 = vadd.f32 %v377, %v406
    %408 = vdwg.mxu0
    %v409 = vld [vmem:[#allocation15] sm:$0xf]
    %v410 = vld [vmem:[#allocation15 + $0x4] sm:$0xf]
    %v411 = vld [vmem:[#allocation15 + $0x8] sm:$0xf]
    %v412 = vld [vmem:[#allocation15 + $0xc] sm:$0xf]
    %v413 = vpack.c.bf16 %v263, %v262
    %v414 = vpack.c.bf16 %v265, %v264
    %v415 = vld [vmem:[#allocation17] sm:$0x1]
    %v417 = vperm.slane %v415, 0
    %v423 = vunpack.c.l.b16 %v409
    %v424 = vunpack.c.l.b16 %v410
    %v425 = vunpack.c.l.b16 %v411
    %v426 = vunpack.c.l.b16 %v412
    %v427 = vpack.c.b16 %v424, %v423
    %v428 = vpack.c.b16 %v426, %v425
    %v432 = vsel %vm391, %v413, 0
    %v435 = vsel %vm391, %v414, 0
    %437 = vmatpush.bf16.msra.mxu0 0
    %438 = vmatpush.bf16.msra.mxu0 0
    %439 = vmatpush.bf16.msra.mxu0 0
    %440 = vmatpush.bf16.msra.mxu0 0
    %441 = vmatpush.bf16.msra.mxu0 0
    %442 = vmatpush.bf16.msra.mxu0 0
    %443 = vmatpush.bf16.msra.mxu0 %v428
    %444 = vmatpush.bf16.msra.mxu0 %v427
    %445 = vmatmul.bf16.gmra.mxu0 %v432
    %v446 = vpop.f32.mrf.mxu0
    %v447 = vadd.f32 %v417, %v446
    %v448 = vpop.f32.mrf.mxu0
    %v449 = vadd.f32 %v417, %v448
    %450 = vmatmul.bf16.gmra.mxu0 %v435
    %v451 = vpop.f32.mrf.mxu0
    %v452 = vadd.f32 %v417, %v451
    %v453 = vpop.f32.mrf.mxu0
    %v454 = vadd.f32 %v417, %v453
    %455 = vdwg.mxu0
    %v456 = vadd.f32 %v262, %v268
    %v457 = vadd.f32 %v263, %v269
    %v458 = vadd.f32 %v264, %v270
    %v459 = vadd.f32 %v265, %v271
    %v460 = vld [vmem:[#allocation18] sm:$0xf]
    %v461 = vld [vmem:[#allocation18 + $0x4] sm:$0xf]
    %v462 = vld [vmem:[#allocation18 + $0x8] sm:$0xf]
    %v463 = vld [vmem:[#allocation18 + $0xc] sm:$0xf]
    %v464 = vpack.c.bf16 %v457, %v456
    %v465 = vpack.c.bf16 %v459, %v458
    %v466 = vld [vmem:[%s10] sm:$0x1]
    %v468 = vperm.slane %v466, 0
    %v474 = vunpack.c.l.b16 %v460
    %v475 = vunpack.c.l.b16 %v461
    %v476 = vunpack.c.l.b16 %v462
    %v477 = vunpack.c.l.b16 %v463
    %v478 = vpack.c.b16 %v475, %v474
    %v479 = vpack.c.b16 %v477, %v476
    %v483 = vsel %vm391, %v464, 0
    %v486 = vsel %vm391, %v465, 0
    %488 = vmatpush.bf16.msra.mxu0 0
    %489 = vmatpush.bf16.msra.mxu0 0
    %490 = vmatpush.bf16.msra.mxu0 0
    %491 = vmatpush.bf16.msra.mxu0 0
    %492 = vmatpush.bf16.msra.mxu0 0
    %493 = vmatpush.bf16.msra.mxu0 0
    %494 = vmatpush.bf16.msra.mxu0 %v479
    %495 = vmatpush.bf16.msra.mxu0 %v478
    %496 = vmatmul.bf16.gmra.mxu0 %v483
    %v497 = vpop.f32.mrf.mxu0
    %v498 = vadd.f32 %v468, %v497
    %v499 = vpop.f32.mrf.mxu0
    %v500 = vadd.f32 %v468, %v499
    %501 = vmatmul.bf16.gmra.mxu0 %v486
    %v502 = vpop.f32.mrf.mxu0
    %v503 = vadd.f32 %v468, %v502
    %v504 = vpop.f32.mrf.mxu0
    %v505 = vadd.f32 %v468, %v504
    %506 = vdwg.mxu0
    %v507 = vld [vmem:[#allocation21] sm:$0xf]
    %v508 = vld [vmem:[#allocation21 + $0x4] sm:$0xf]
    %v509 = vld [vmem:[#allocation21 + $0x8] sm:$0xf]
    %v510 = vld [vmem:[#allocation21 + $0xc] sm:$0xf]
    %v511 = vld [vmem:[%s14] sm:$0x1]
    %vm512 = vcmask 64512
    %v514 = vsel %vm512, %v498, 0
    %v517 = vsel %vm512, %v500, 0
    %v520 = vsel %vm512, %v503, 0
    %v523 = vsel %vm512, %v505, 0
    %v526 = vsel %vm512, %v405, 0
    %v529 = vsel %vm512, %v407, 0
    %531 = vmatpush.xpose.msra.mxu0 0.0
    %532 = vmatpush.xpose.msra.mxu0 0.0
    %533 = vmatpush.xpose.msra.mxu0 0.0
    %534 = vmatpush.xpose.msra.mxu0 0.0
    %535 = vmatpush.xpose.msra.mxu0 0.0
    %536 = vmatpush.xpose.msra.mxu0 0.0
    %537 = vmatpush.xpose.msra.mxu0 0.0
    %538 = vmatpush.xpose.msra.mxu0 0.0
    %539 = vmatpush.xpose.msra.mxu0 0.0
    %540 = vmatpush.xpose.msra.mxu0 0.0
    %541 = vmatpush.xpose.msra.mxu0 0.0
    %542 = vmatpush.xpose.msra.mxu0 0.0
    %543 = vmatpush.xpose.msra.mxu0 0.0
    %544 = vmatpush.xpose.msra.mxu0 0.0
    %545 = vmatpush.xpose.msra.mxu0 %v529
    %546 = vmatpush.xpose.msra.mxu0 %v526
    %547 = vmatmul.f32.gmra.mxu0 %v514
    %v548 = vpop.f32.mrf.mxu0
    %v549 = vadd.f32 %v353, %v548
    %550 = vmatmul.f32.gmra.mxu0 %v517
    %v551 = vpop.f32.mrf.mxu0
    %v552 = vadd.f32 %v354, %v551
    %553 = vmatmul.f32.gmra.mxu0 %v520
    %v554 = vpop.f32.mrf.mxu0
    %v555 = vadd.f32 %v355, %v554
    %556 = vmatmul.f32.gmra.mxu0 %v523
    %v557 = vpop.f32.mrf.mxu0
    %v558 = vadd.f32 %v356, %v557
    %559 = vdwg.mxu0
    %vm560 = vcmask 130048
    %v561 = vsel %vm560, %v549, -inf
    %562 = vmax.xlane.f32.xlu0 %v561
    %v563 = vpop.xlane.xlu0 %562
    %v564 = vsel %vm560, %v552, -inf
    %565 = vmax.xlane.f32.xlu0 %v564
    %v566 = vpop.xlane.xlu0 %565
    %v567 = vsel %vm560, %v555, -inf
    %568 = vmax.xlane.f32.xlu0 %v567
    %v569 = vpop.xlane.xlu0 %568
    %v570 = vsel %vm560, %v558, -inf
    %571 = vmax.xlane.f32.xlu0 %v570
    %v572 = vpop.xlane.xlu0 %571
    %v573 = vsub.f32 %v549, %v563
    %v574 = vsub.f32 %v552, %v566
    %v575 = vsub.f32 %v555, %v569
    %v576 = vsub.f32 %v558, %v572
    %v577 = vmul.f32 %v573, 1.442695
    %v578 = vpow.pop %v577
    %v579 = vmul.f32 %v574, 1.442695
    %v580 = vpow.pop %v579
    %v581 = vmul.f32 %v575, 1.442695
    %v582 = vpow.pop %v581
    %v583 = vmul.f32 %v576, 1.442695
    %v584 = vpow.pop %v583
    %v585 = vsel %vm560, %v578, 0.0
    %586 = vadd.xlane.f32.xlu0 %v585
    %v587 = vpop.xlane.xlu0 %586
    %v588 = vsel %vm560, %v580, 0.0
    %589 = vadd.xlane.f32.xlu0 %v588
    %v590 = vpop.xlane.xlu0 %589
    %v591 = vsel %vm560, %v582, 0.0
    %592 = vadd.xlane.f32.xlu0 %v591
    %v593 = vpop.xlane.xlu0 %592
    %v594 = vsel %vm560, %v584, 0.0
    %595 = vadd.xlane.f32.xlu0 %v594
    %v596 = vpop.xlane.xlu0 %595
    %v597 = vrcp.pop %v587
    %v598 = vrcp.pop %v590
    %v599 = vrcp.pop %v593
    %v600 = vrcp.pop %v596
    %v601 = vmul.f32 %v578, %v597
    %v602 = vmul.f32 %v580, %v598
    %v603 = vmul.f32 %v582, %v599
    %v604 = vmul.f32 %v584, %v600
    %605 = vrot.lane.b32.xlu0 %v405, 96
    %v606 = vpop.permute.xlu0 %605
    %607 = vrot.lane.b32.xlu0 %v407, 96
    %v608 = vpop.permute.xlu0 %607
    %v612 = vsel %vm560, %v601, 0
    %v615 = vsel %vm560, %v602, 0
    %v618 = vsel %vm560, %v603, 0
    %v621 = vsel %vm560, %v604, 0
    %623 = vmatpush.msra.mxu0 0.0
    %624 = vmatpush.msra.mxu0 0.0
    %625 = vmatpush.msra.mxu0 0.0
    %626 = vmatpush.msra.mxu0 0.0
    %627 = vmatpush.msra.mxu0 0.0
    %628 = vmatpush.msra.mxu0 0.0
    %629 = vmatpush.msra.mxu0 0.0
    %630 = vmatpush.msra.mxu0 0.0
    %631 = vmatpush.msra.mxu0 0.0
    %632 = vmatpush.msra.mxu0 0.0
    %633 = vmatpush.msra.mxu0 0.0
    %634 = vmatpush.msra.mxu0 0.0
    %635 = vmatpush.msra.mxu0 0.0
    %636 = vmatpush.msra.mxu0 0.0
    %637 = vmatpush.msra.mxu0 %v608
    %638 = vmatpush.msra.mxu0 %v606
    %639 = vmatmul.f32.gmra.mxu0 %v612
    %v640 = vpop.f32.mrf.mxu0
    %v641 = vadd.f32 0.0, %v640
    %642 = vmatmul.f32.gmra.mxu0 %v615
    %v643 = vpop.f32.mrf.mxu0
    %v644 = vadd.f32 0.0, %v643
    %645 = vmatmul.f32.gmra.mxu0 %v618
    %v646 = vpop.f32.mrf.mxu0
    %v647 = vadd.f32 0.0, %v646
    %648 = vmatmul.f32.gmra.mxu0 %v621
    %v649 = vpop.f32.mrf.mxu0
    %v650 = vadd.f32 0.0, %v649
    %651 = vdwg.mxu0
    %652 = vrot.lane.b32.xlu0 %v498, 120
    %v653 = vpop.permute.xlu0 %652
    %654 = vrot.lane.b32.xlu0 %v500, 120
    %v655 = vpop.permute.xlu0 %654
    %656 = vrot.lane.b32.xlu0 %v503, 120
    %v657 = vpop.permute.xlu0 %656
    %658 = vrot.lane.b32.xlu0 %v505, 120
    %v659 = vpop.permute.xlu0 %658
    %660 = vrot.lane.b32.xlu0 %v405, 120
    %v661 = vpop.permute.xlu0 %660
    %662 = vrot.lane.b32.xlu0 %v407, 120
    %v663 = vpop.permute.xlu0 %662
    %v664 = vsel %vm512, %v653, 0
    %v666 = vsel %vm512, %v655, 0
    %v668 = vsel %vm512, %v657, 0
    %v670 = vsel %vm512, %v659, 0
    %v672 = vsel %vm512, %v661, 0
    %v674 = vsel %vm512, %v663, 0
    %676 = vmatpush.xpose.msra.mxu0 0.0
    %677 = vmatpush.xpose.msra.mxu0 0.0
    %678 = vmatpush.xpose.msra.mxu0 0.0
    %679 = vmatpush.xpose.msra.mxu0 0.0
    %680 = vmatpush.xpose.msra.mxu0 0.0
    %681 = vmatpush.xpose.msra.mxu0 0.0
    %682 = vmatpush.xpose.msra.mxu0 0.0
    %683 = vmatpush.xpose.msra.mxu0 0.0
    %684 = vmatpush.xpose.msra.mxu0 0.0
    %685 = vmatpush.xpose.msra.mxu0 0.0
    %686 = vmatpush.xpose.msra.mxu0 0.0
    %687 = vmatpush.xpose.msra.mxu0 0.0
    %688 = vmatpush.xpose.msra.mxu0 0.0
    %689 = vmatpush.xpose.msra.mxu0 0.0
    %690 = vmatpush.xpose.msra.mxu0 %v674
    %691 = vmatpush.xpose.msra.mxu0 %v672
    %692 = vmatmul.f32.gmra.mxu0 %v664
    %v693 = vpop.f32.mrf.mxu0
    %v694 = vadd.f32 %v353, %v693
    %695 = vmatmul.f32.gmra.mxu0 %v666
    %v696 = vpop.f32.mrf.mxu0
    %v697 = vadd.f32 %v354, %v696
    %698 = vmatmul.f32.gmra.mxu0 %v668
    %v699 = vpop.f32.mrf.mxu0
    %v700 = vadd.f32 %v355, %v699
    %701 = vmatmul.f32.gmra.mxu0 %v670
    %v702 = vpop.f32.mrf.mxu0
    %v703 = vadd.f32 %v356, %v702
    %704 = vdwg.mxu0
    %v705 = vsel %vm560, %v694, -inf
    %706 = vmax.xlane.f32.xlu0 %v705
    %v707 = vpop.xlane.xlu0 %706
    %v708 = vsel %vm560, %v697, -inf
    %709 = vmax.xlane.f32.xlu0 %v708
    %v710 = vpop.xlane.xlu0 %709
    %v711 = vsel %vm560, %v700, -inf
    %712 = vmax.xlane.f32.xlu0 %v711
    %v713 = vpop.xlane.xlu0 %712
    %v714 = vsel %vm560, %v703, -inf
    %715 = vmax.xlane.f32.xlu0 %v714
    %v716 = vpop.xlane.xlu0 %715
    %v717 = vsub.f32 %v694, %v707
    %v718 = vsub.f32 %v697, %v710
    %v719 = vsub.f32 %v700, %v713
    %v720 = vsub.f32 %v703, %v716
    %v721 = vmul.f32 %v717, 1.442695
    %v722 = vpow.pop %v721
    %v723 = vmul.f32 %v718, 1.442695
    %v724 = vpow.pop %v723
    %v725 = vmul.f32 %v719, 1.442695
    %v726 = vpow.pop %v725
    %v727 = vmul.f32 %v720, 1.442695
    %v728 = vpow.pop %v727
    %v729 = vsel %vm560, %v722, 0.0
    %730 = vadd.xlane.f32.xlu0 %v729
    %v731 = vpop.xlane.xlu0 %730
    %v732 = vsel %vm560, %v724, 0.0
    %733 = vadd.xlane.f32.xlu0 %v732
    %v734 = vpop.xlane.xlu0 %733
    %v735 = vsel %vm560, %v726, 0.0
    %736 = vadd.xlane.f32.xlu0 %v735
    %v737 = vpop.xlane.xlu0 %736
    %v738 = vsel %vm560, %v728, 0.0
    %739 = vadd.xlane.f32.xlu0 %v738
    %v740 = vpop.xlane.xlu0 %739
    %v741 = vrcp.pop %v731
    %v742 = vrcp.pop %v734
    %v743 = vrcp.pop %v737
    %v744 = vrcp.pop %v740
    %v745 = vmul.f32 %v722, %v741
    %v746 = vmul.f32 %v724, %v742
    %v747 = vmul.f32 %v726, %v743
    %v748 = vmul.f32 %v728, %v744
    %749 = vrot.lane.b32.xlu0 %v405, 88
    %v750 = vpop.permute.xlu0 %749
    %751 = vrot.lane.b32.xlu0 %v407, 88
    %v752 = vpop.permute.xlu0 %751
    %v756 = vsel %vm560, %v745, 0
    %v759 = vsel %vm560, %v746, 0
    %v762 = vsel %vm560, %v747, 0
    %v765 = vsel %vm560, %v748, 0
    %767 = vmatpush.msra.mxu0 0.0
    %768 = vmatpush.msra.mxu0 0.0
    %769 = vmatpush.msra.mxu0 0.0
    %770 = vmatpush.msra.mxu0 0.0
    %771 = vmatpush.msra.mxu0 0.0
    %772 = vmatpush.msra.mxu0 0.0
    %773 = vmatpush.msra.mxu0 0.0
    %774 = vmatpush.msra.mxu0 0.0
    %775 = vmatpush.msra.mxu0 0.0
    %776 = vmatpush.msra.mxu0 0.0
    %777 = vmatpush.msra.mxu0 0.0
    %778 = vmatpush.msra.mxu0 0.0
    %779 = vmatpush.msra.mxu0 0.0
    %780 = vmatpush.msra.mxu0 0.0
    %781 = vmatpush.msra.mxu0 %v752
    %782 = vmatpush.msra.mxu0 %v750
    %783 = vmatmul.f32.gmra.mxu0 %v756
    %v784 = vpop.f32.mrf.mxu0
    %v785 = vadd.f32 0.0, %v784
    %786 = vmatmul.f32.gmra.mxu0 %v759
    %v787 = vpop.f32.mrf.mxu0
    %v788 = vadd.f32 0.0, %v787
    %789 = vmatmul.f32.gmra.mxu0 %v762
    %v790 = vpop.f32.mrf.mxu0
    %v791 = vadd.f32 0.0, %v790
    %792 = vmatmul.f32.gmra.mxu0 %v765
    %v793 = vpop.f32.mrf.mxu0
    %v794 = vadd.f32 0.0, %v793
    %795 = vdwg.mxu0
    %796 = vrot.lane.b32.xlu0 %v498, 112
    %v797 = vpop.permute.xlu0 %796
    %798 = vrot.lane.b32.xlu0 %v500, 112
    %v799 = vpop.permute.xlu0 %798
    %800 = vrot.lane.b32.xlu0 %v503, 112
    %v801 = vpop.permute.xlu0 %800
    %802 = vrot.lane.b32.xlu0 %v505, 112
    %v803 = vpop.permute.xlu0 %802
    %804 = vrot.lane.b32.xlu0 %v405, 112
    %v805 = vpop.permute.xlu0 %804
    %806 = vrot.lane.b32.xlu0 %v407, 112
    %v807 = vpop.permute.xlu0 %806
    %v808 = vsel %vm512, %v797, 0
    %v810 = vsel %vm512, %v799, 0
    %v812 = vsel %vm512, %v801, 0
    %v814 = vsel %vm512, %v803, 0
    %v816 = vsel %vm512, %v805, 0
    %v818 = vsel %vm512, %v807, 0
    %820 = vmatpush.xpose.msra.mxu0 0.0
    %821 = vmatpush.xpose.msra.mxu0 0.0
    %822 = vmatpush.xpose.msra.mxu0 0.0
    %823 = vmatpush.xpose.msra.mxu0 0.0
    %824 = vmatpush.xpose.msra.mxu0 0.0
    %825 = vmatpush.xpose.msra.mxu0 0.0
    %826 = vmatpush.xpose.msra.mxu0 0.0
    %827 = vmatpush.xpose.msra.mxu0 0.0
    %828 = vmatpush.xpose.msra.mxu0 0.0
    %829 = vmatpush.xpose.msra.mxu0 0.0
    %830 = vmatpush.xpose.msra.mxu0 0.0
    %831 = vmatpush.xpose.msra.mxu0 0.0
    %832 = vmatpush.xpose.msra.mxu0 0.0
    %833 = vmatpush.xpose.msra.mxu0 0.0
    %834 = vmatpush.xpose.msra.mxu0 %v818
    %835 = vmatpush.xpose.msra.mxu0 %v816
    %836 = vmatmul.f32.gmra.mxu0 %v808
    %v837 = vpop.f32.mrf.mxu0
    %v838 = vadd.f32 %v353, %v837
    %839 = vmatmul.f32.gmra.mxu0 %v810
    %v840 = vpop.f32.mrf.mxu0
    %v841 = vadd.f32 %v354, %v840
    %842 = vmatmul.f32.gmra.mxu0 %v812
    %v843 = vpop.f32.mrf.mxu0
    %v844 = vadd.f32 %v355, %v843
    %845 = vmatmul.f32.gmra.mxu0 %v814
    %v846 = vpop.f32.mrf.mxu0
    %v847 = vadd.f32 %v356, %v846
    %848 = vdwg.mxu0
    %v849 = vsel %vm560, %v838, -inf
    %850 = vmax.xlane.f32.xlu0 %v849
    %v851 = vpop.xlane.xlu0 %850
    %v852 = vsel %vm560, %v841, -inf
    %853 = vmax.xlane.f32.xlu0 %v852
    %v854 = vpop.xlane.xlu0 %853
    %v855 = vsel %vm560, %v844, -inf
    %856 = vmax.xlane.f32.xlu0 %v855
    %v857 = vpop.xlane.xlu0 %856
    %v858 = vsel %vm560, %v847, -inf
    %859 = vmax.xlane.f32.xlu0 %v858
    %v860 = vpop.xlane.xlu0 %859
    %v861 = vsub.f32 %v838, %v851
    %v862 = vsub.f32 %v841, %v854
    %v863 = vsub.f32 %v844, %v857
    %v864 = vsub.f32 %v847, %v860
    %v865 = vmul.f32 %v861, 1.442695
    %v866 = vpow.pop %v865
    %v867 = vmul.f32 %v862, 1.442695
    %v868 = vpow.pop %v867
    %v869 = vmul.f32 %v863, 1.442695
    %v870 = vpow.pop %v869
    %v871 = vmul.f32 %v864, 1.442695
    %v872 = vpow.pop %v871
    %v873 = vsel %vm560, %v866, 0.0
    %874 = vadd.xlane.f32.xlu0 %v873
    %v875 = vpop.xlane.xlu0 %874
    %v876 = vsel %vm560, %v868, 0.0
    %877 = vadd.xlane.f32.xlu0 %v876
    %v878 = vpop.xlane.xlu0 %877
    %v879 = vsel %vm560, %v870, 0.0
    %880 = vadd.xlane.f32.xlu0 %v879
    %v881 = vpop.xlane.xlu0 %880
    %v882 = vsel %vm560, %v872, 0.0
    %883 = vadd.xlane.f32.xlu0 %v882
    %v884 = vpop.xlane.xlu0 %883
    %v885 = vrcp.pop %v875
    %v886 = vrcp.pop %v878
    %v887 = vrcp.pop %v881
    %v888 = vrcp.pop %v884
    %v889 = vmul.f32 %v866, %v885
    %v890 = vmul.f32 %v868, %v886
    %v891 = vmul.f32 %v870, %v887
    %v892 = vmul.f32 %v872, %v888
    %893 = vrot.lane.b32.xlu0 %v405, 80
    %v894 = vpop.permute.xlu0 %893
    %895 = vrot.lane.b32.xlu0 %v407, 80
    %v896 = vpop.permute.xlu0 %895
    %v900 = vsel %vm560, %v889, 0
    %v903 = vsel %vm560, %v890, 0
    %v906 = vsel %vm560, %v891, 0
    %v909 = vsel %vm560, %v892, 0
    %911 = vmatpush.msra.mxu0 0.0
    %912 = vmatpush.msra.mxu0 0.0
    %913 = vmatpush.msra.mxu0 0.0
    %914 = vmatpush.msra.mxu0 0.0
    %915 = vmatpush.msra.mxu0 0.0
    %916 = vmatpush.msra.mxu0 0.0
    %917 = vmatpush.msra.mxu0 0.0
    %918 = vmatpush.msra.mxu0 0.0
    %919 = vmatpush.msra.mxu0 0.0
    %920 = vmatpush.msra.mxu0 0.0
    %921 = vmatpush.msra.mxu0 0.0
    %922 = vmatpush.msra.mxu0 0.0
    %923 = vmatpush.msra.mxu0 0.0
    %924 = vmatpush.msra.mxu0 0.0
    %925 = vmatpush.msra.mxu0 %v896
    %926 = vmatpush.msra.mxu0 %v894
    %927 = vmatmul.f32.gmra.mxu0 %v900
    %v928 = vpop.f32.mrf.mxu0
    %v929 = vadd.f32 0.0, %v928
    %930 = vmatmul.f32.gmra.mxu0 %v903
    %v931 = vpop.f32.mrf.mxu0
    %v932 = vadd.f32 0.0, %v931
    %933 = vmatmul.f32.gmra.mxu0 %v906
    %v934 = vpop.f32.mrf.mxu0
    %v935 = vadd.f32 0.0, %v934
    %936 = vmatmul.f32.gmra.mxu0 %v909
    %v937 = vpop.f32.mrf.mxu0
    %v938 = vadd.f32 0.0, %v937
    %939 = vdwg.mxu0
    %940 = vrot.lane.b32.xlu0 %v498, 104
    %v941 = vpop.permute.xlu0 %940
    %942 = vrot.lane.b32.xlu0 %v500, 104
    %v943 = vpop.permute.xlu0 %942
    %944 = vrot.lane.b32.xlu0 %v503, 104
    %v945 = vpop.permute.xlu0 %944
    %946 = vrot.lane.b32.xlu0 %v505, 104
    %v947 = vpop.permute.xlu0 %946
    %948 = vrot.lane.b32.xlu0 %v405, 104
    %v949 = vpop.permute.xlu0 %948
    %950 = vrot.lane.b32.xlu0 %v407, 104
    %v951 = vpop.permute.xlu0 %950
    %v952 = vsel %vm512, %v941, 0
    %v954 = vsel %vm512, %v943, 0
    %v956 = vsel %vm512, %v945, 0
    %v958 = vsel %vm512, %v947, 0
    %v960 = vsel %vm512, %v949, 0
    %v962 = vsel %vm512, %v951, 0
    %964 = vmatpush.xpose.msra.mxu0 0.0
    %965 = vmatpush.xpose.msra.mxu0 0.0
    %966 = vmatpush.xpose.msra.mxu0 0.0
    %967 = vmatpush.xpose.msra.mxu0 0.0
    %968 = vmatpush.xpose.msra.mxu0 0.0
    %969 = vmatpush.xpose.msra.mxu0 0.0
    %970 = vmatpush.xpose.msra.mxu0 0.0
    %971 = vmatpush.xpose.msra.mxu0 0.0
    %972 = vmatpush.xpose.msra.mxu0 0.0
    %973 = vmatpush.xpose.msra.mxu0 0.0
    %974 = vmatpush.xpose.msra.mxu0 0.0
    %975 = vmatpush.xpose.msra.mxu0 0.0
    %976 = vmatpush.xpose.msra.mxu0 0.0
    %977 = vmatpush.xpose.msra.mxu0 0.0
    %978 = vmatpush.xpose.msra.mxu0 %v962
    %979 = vmatpush.xpose.msra.mxu0 %v960
    %980 = vmatmul.f32.gmra.mxu0 %v952
    %v981 = vpop.f32.mrf.mxu0
    %v982 = vadd.f32 %v353, %v981
    %983 = vmatmul.f32.gmra.mxu0 %v954
    %v984 = vpop.f32.mrf.mxu0
    %v985 = vadd.f32 %v354, %v984
    %986 = vmatmul.f32.gmra.mxu0 %v956
    %v987 = vpop.f32.mrf.mxu0
    %v988 = vadd.f32 %v355, %v987
    %989 = vmatmul.f32.gmra.mxu0 %v958
    %v990 = vpop.f32.mrf.mxu0
    %v991 = vadd.f32 %v356, %v990
    %992 = vdwg.mxu0
    %v993 = vsel %vm560, %v982, -inf
    %994 = vmax.xlane.f32.xlu0 %v993
    %v995 = vpop.xlane.xlu0 %994
    %v996 = vsel %vm560, %v985, -inf
    %997 = vmax.xlane.f32.xlu0 %v996
    %v998 = vpop.xlane.xlu0 %997
    %v999 = vsel %vm560, %v988, -inf
    %1000 = vmax.xlane.f32.xlu0 %v999
    %v1001 = vpop.xlane.xlu0 %1000
    %v1002 = vsel %vm560, %v991, -inf
    %1003 = vmax.xlane.f32.xlu0 %v1002
    %v1004 = vpop.xlane.xlu0 %1003
    %v1005 = vsub.f32 %v982, %v995
    %v1006 = vsub.f32 %v985, %v998
    %v1007 = vsub.f32 %v988, %v1001
    %v1008 = vsub.f32 %v991, %v1004
    %v1009 = vmul.f32 %v1005, 1.442695
    %v1010 = vpow.pop %v1009
    %v1011 = vmul.f32 %v1006, 1.442695
    %v1012 = vpow.pop %v1011
    %v1013 = vmul.f32 %v1007, 1.442695
    %v1014 = vpow.pop %v1013
    %v1015 = vmul.f32 %v1008, 1.442695
    %v1016 = vpow.pop %v1015
    %v1017 = vsel %vm560, %v1010, 0.0
    %1018 = vadd.xlane.f32.xlu0 %v1017
    %v1019 = vpop.xlane.xlu0 %1018
    %v1020 = vsel %vm560, %v1012, 0.0
    %1021 = vadd.xlane.f32.xlu0 %v1020
    %v1022 = vpop.xlane.xlu0 %1021
    %v1023 = vsel %vm560, %v1014, 0.0
    %1024 = vadd.xlane.f32.xlu0 %v1023
    %v1025 = vpop.xlane.xlu0 %1024
    %v1026 = vsel %vm560, %v1016, 0.0
    %1027 = vadd.xlane.f32.xlu0 %v1026
    %v1028 = vpop.xlane.xlu0 %1027
    %v1029 = vrcp.pop %v1019
    %v1030 = vrcp.pop %v1022
    %v1031 = vrcp.pop %v1025
    %v1032 = vrcp.pop %v1028
    %v1033 = vmul.f32 %v1010, %v1029
    %v1034 = vmul.f32 %v1012, %v1030
    %v1035 = vmul.f32 %v1014, %v1031
    %v1036 = vmul.f32 %v1016, %v1032
    %1037 = vrot.lane.b32.xlu0 %v405, 72
    %v1038 = vpop.permute.xlu0 %1037
    %1039 = vrot.lane.b32.xlu0 %v407, 72
    %v1040 = vpop.permute.xlu0 %1039
    %v1044 = vsel %vm560, %v1033, 0
    %v1047 = vsel %vm560, %v1034, 0
    %v1050 = vsel %vm560, %v1035, 0
    %v1053 = vsel %vm560, %v1036, 0
    %1055 = vmatpush.msra.mxu0 0.0
    %1056 = vmatpush.msra.mxu0 0.0
    %1057 = vmatpush.msra.mxu0 0.0
    %1058 = vmatpush.msra.mxu0 0.0
    %1059 = vmatpush.msra.mxu0 0.0
    %1060 = vmatpush.msra.mxu0 0.0
    %1061 = vmatpush.msra.mxu0 0.0
    %1062 = vmatpush.msra.mxu0 0.0
    %1063 = vmatpush.msra.mxu0 0.0
    %1064 = vmatpush.msra.mxu0 0.0
    %1065 = vmatpush.msra.mxu0 0.0
    %1066 = vmatpush.msra.mxu0 0.0
    %1067 = vmatpush.msra.mxu0 0.0
    %1068 = vmatpush.msra.mxu0 0.0
    %1069 = vmatpush.msra.mxu0 %v1040
    %1070 = vmatpush.msra.mxu0 %v1038
    %1071 = vmatmul.f32.gmra.mxu0 %v1044
    %v1072 = vpop.f32.mrf.mxu0
    %v1073 = vadd.f32 0.0, %v1072
    %1074 = vmatmul.f32.gmra.mxu0 %v1047
    %v1075 = vpop.f32.mrf.mxu0
    %v1076 = vadd.f32 0.0, %v1075
    %1077 = vmatmul.f32.gmra.mxu0 %v1050
    %v1078 = vpop.f32.mrf.mxu0
    %v1079 = vadd.f32 0.0, %v1078
    %1080 = vmatmul.f32.gmra.mxu0 %v1053
    %v1081 = vpop.f32.mrf.mxu0
    %v1082 = vadd.f32 0.0, %v1081
    %1083 = vdwg.mxu0
    %1088 = vrot.lane.b32.xlu0 %v785, 8
    %v1089 = vpop.permute.xlu0 %1088
    %1090 = vrot.lane.b32.xlu0 %v788, 8
    %v1091 = vpop.permute.xlu0 %1090
    %1092 = vrot.lane.b32.xlu0 %v791, 8
    %v1093 = vpop.permute.xlu0 %1092
    %1094 = vrot.lane.b32.xlu0 %v794, 8
    %v1095 = vpop.permute.xlu0 %1094
    %1104 = vrot.lane.b32.xlu0 %v929, 16
    %v1105 = vpop.permute.xlu0 %1104
    %1106 = vrot.lane.b32.xlu0 %v932, 16
    %v1107 = vpop.permute.xlu0 %1106
    %1108 = vrot.lane.b32.xlu0 %v935, 16
    %v1109 = vpop.permute.xlu0 %1108
    %1110 = vrot.lane.b32.xlu0 %v938, 16
    %v1111 = vpop.permute.xlu0 %1110
    %1120 = vrot.lane.b32.xlu0 %v1073, 24
    %v1121 = vpop.permute.xlu0 %1120
    %1122 = vrot.lane.b32.xlu0 %v1076, 24
    %v1123 = vpop.permute.xlu0 %1122
    %1124 = vrot.lane.b32.xlu0 %v1079, 24
    %v1125 = vpop.permute.xlu0 %1124
    %1126 = vrot.lane.b32.xlu0 %v1082, 24
    %v1127 = vpop.permute.xlu0 %1126
    %v1132 = vsel %vm512, %v641, %v1089
    %v1133 = vsel %vm512, %v644, %v1091
    %v1134 = vsel %vm512, %v647, %v1093
    %v1135 = vsel %vm512, %v650, %v1095
    %v1136 = vsel %vm560, %v1132, %v1105
    %v1137 = vsel %vm560, %v1133, %v1107
    %v1138 = vsel %vm560, %v1134, %v1109
    %v1139 = vsel %vm560, %v1135, %v1111
    %vm1140 = vcmask 195584
    %v1141 = vsel %vm1140, %v1136, %v1121
    %v1142 = vsel %vm1140, %v1137, %v1123
    %v1143 = vsel %vm1140, %v1138, %v1125
    %v1144 = vsel %vm1140, %v1139, %v1127
    %v1145 = vpack.c.bf16 %v1142, %v1141
    %v1146 = vpack.c.bf16 %v1144, %v1143
    %v1148 = vperm.slane %v511, 0
    %v1154 = vunpack.c.l.b16 %v507
    %v1155 = vunpack.c.l.b16 %v508
    %v1156 = vunpack.c.l.b16 %v509
    %v1157 = vunpack.c.l.b16 %v510
    %v1158 = vpack.c.b16 %v1155, %v1154
    %v1159 = vpack.c.b16 %v1157, %v1156
    %v1163 = vsel %vm391, %v1145, 0
    %v1166 = vsel %vm391, %v1146, 0
    %1168 = vmatpush.bf16.msra.mxu0 0
    %1169 = vmatpush.bf16.msra.mxu0 0
    %1170 = vmatpush.bf16.msra.mxu0 0
    %1171 = vmatpush.bf16.msra.mxu0 0
    %1172 = vmatpush.bf16.msra.mxu0 0
    %1173 = vmatpush.bf16.msra.mxu0 0
    %1174 = vmatpush.bf16.msra.mxu0 %v1159
    %1175 = vmatpush.bf16.msra.mxu0 %v1158
    %1176 = vmatmul.bf16.gmra.mxu0 %v1163
    %v1177 = vpop.f32.mrf.mxu0
    %v1178 = vadd.f32 %v1148, %v1177
    %v1179 = vpop.f32.mrf.mxu0
    %v1180 = vadd.f32 %v1148, %v1179
    %1181 = vmatmul.bf16.gmra.mxu0 %v1166
    %v1182 = vpop.f32.mrf.mxu0
    %v1183 = vadd.f32 %v1148, %v1182
    %v1184 = vpop.f32.mrf.mxu0
    %v1185 = vadd.f32 %v1148, %v1184
    %1186 = vdwg.mxu0
    %v1187 = vld [vmem:[#allocation23] sm:$0xf]
    %v1188 = vld [vmem:[#allocation23 + $0x4] sm:$0xf]
    %v1189 = vld [vmem:[#allocation23 + $0x8] sm:$0xf]
    %v1190 = vld [vmem:[#allocation23 + $0xc] sm:$0xf]
    %v1191 = vpack.c.bf16 %v1180, %v1178
    %v1192 = vpack.c.bf16 %v1185, %v1183
    %v1193 = vld [vmem:[%s16] sm:$0x1]
    %v1195 = vperm.slane %v1193, 0
    %v1201 = vunpack.c.l.b16 %v1187
    %v1202 = vunpack.c.l.b16 %v1188
    %v1203 = vunpack.c.l.b16 %v1189
    %v1204 = vunpack.c.l.b16 %v1190
    %v1205 = vpack.c.b16 %v1202, %v1201
    %v1206 = vpack.c.b16 %v1204, %v1203
    %v1210 = vsel %vm391, %v1191, 0
    %v1213 = vsel %vm391, %v1192, 0
    %1215 = vmatpush.bf16.msra.mxu0 0
    %1216 = vmatpush.bf16.msra.mxu0 0
    %1217 = vmatpush.bf16.msra.mxu0 0
    %1218 = vmatpush.bf16.msra.mxu0 0
    %1219 = vmatpush.bf16.msra.mxu0 0
    %1220 = vmatpush.bf16.msra.mxu0 0
    %1221 = vmatpush.bf16.msra.mxu0 %v1206
    %1222 = vmatpush.bf16.msra.mxu0 %v1205
    %1223 = vmatmul.bf16.gmra.mxu0 %v1210
    %v1224 = vpop.f32.mrf.mxu0
    %v1225 = vadd.f32 %v1195, %v1224
    %v1226 = vpop.f32.mrf.mxu0
    %v1227 = vadd.f32 %v1195, %v1226
    %1228 = vmatmul.bf16.gmra.mxu0 %v1213
    %v1229 = vpop.f32.mrf.mxu0
    %v1230 = vadd.f32 %v1195, %v1229
    %v1231 = vpop.f32.mrf.mxu0
    %v1232 = vadd.f32 %v1195, %v1231
    %1233 = vdwg.mxu0
    %v1234 = vmax.f32 %v1225, 0.0
    %v1235 = vmax.f32 %v1227, 0.0
    %v1236 = vmax.f32 %v1230, 0.0
    %v1237 = vmax.f32 %v1232, 0.0
    %s1238 = scalar_lea.vmem [#allocation23], 16
    %v1239 = vld [vmem:[%s1238] sm:$0xf]
    %v1240 = vld [vmem:[%s1238 + $0x4] sm:$0xf]
    %v1241 = vld [vmem:[%s1238 + $0x8] sm:$0xf]
    %v1242 = vld [vmem:[%s1238 + $0xc] sm:$0xf]
    %v1243 = vpack.c.bf16 %v1235, %v1234
    %v1244 = vpack.c.bf16 %v1237, %v1236
    %s1245 = scalar_lea.vmem %s16, 1
    %v1246 = vld [vmem:[%s1245] sm:$0x1]
    %v1248 = vperm.slane %v1246, 0
    %v1254 = vunpack.c.l.b16 %v1239
    %v1255 = vunpack.c.l.b16 %v1240
    %v1256 = vunpack.c.l.b16 %v1241
    %v1257 = vunpack.c.l.b16 %v1242
    %v1258 = vpack.c.b16 %v1255, %v1254
    %v1259 = vpack.c.b16 %v1257, %v1256
    %v1263 = vsel %vm391, %v1243, 0
    %v1266 = vsel %vm391, %v1244, 0
    %1268 = vmatpush.bf16.msra.mxu0 0
    %1269 = vmatpush.bf16.msra.mxu0 0
    %1270 = vmatpush.bf16.msra.mxu0 0
    %1271 = vmatpush.bf16.msra.mxu0 0
    %1272 = vmatpush.bf16.msra.mxu0 0
    %1273 = vmatpush.bf16.msra.mxu0 0
    %1274 = vmatpush.bf16.msra.mxu0 %v1259
    %1275 = vmatpush.bf16.msra.mxu0 %v1258
    %1276 = vmatmul.bf16.gmra.mxu0 %v1263
    %v1277 = vpop.f32.mrf.mxu0
    %v1278 = vadd.f32 %v1248, %v1277
    %v1279 = vpop.f32.mrf.mxu0
    %v1280 = vadd.f32 %v1248, %v1279
    %1281 = vmatmul.bf16.gmra.mxu0 %v1266
    %v1282 = vpop.f32.mrf.mxu0
    %v1283 = vadd.f32 %v1248, %v1282
    %v1284 = vpop.f32.mrf.mxu0
    %v1285 = vadd.f32 %v1248, %v1284
    %1286 = vdwg.mxu0
    %v1287 = vmax.f32 %v447, 0.0
    %v1288 = vmax.f32 %v449, 0.0
    %v1289 = vmax.f32 %v452, 0.0
    %v1290 = vmax.f32 %v454, 0.0
    %s1291 = scalar_lea.vmem [#allocation23], 32
    %v1292 = vld [vmem:[%s1291] sm:$0xf]
    %v1293 = vld [vmem:[%s1291 + $0x4] sm:$0xf]
    %v1294 = vld [vmem:[%s1291 + $0x8] sm:$0xf]
    %v1295 = vld [vmem:[%s1291 + $0xc] sm:$0xf]
    %v1296 = vpack.c.bf16 %v1288, %v1287
    %v1297 = vpack.c.bf16 %v1290, %v1289
    %s1298 = scalar_lea.vmem %s16, 2
    %v1299 = vld [vmem:[%s1298] sm:$0x1]
    %v1301 = vperm.slane %v1299, 0
    %1305 = vrot.lane.b32.xlu0 %v1296, 64
    %v1306 = vpop.permute.xlu0 %1305
    %1307 = vrot.lane.b32.xlu0 %v1297, 64
    %v1308 = vpop.permute.xlu0 %1307
    %v1313 = vunpack.c.l.b16 %v1292
    %v1314 = vunpack.c.l.b16 %v1293
    %v1315 = vunpack.c.l.b16 %v1294
    %v1316 = vunpack.c.l.b16 %v1295
    %v1317 = vpack.c.b16 %v1314, %v1313
    %v1318 = vpack.c.b16 %v1316, %v1315
    %v1322 = vsel %vm391, %v1306, 0
    %v1325 = vsel %vm391, %v1308, 0
    %1327 = vmatpush.bf16.msra.mxu0 0
    %1328 = vmatpush.bf16.msra.mxu0 0
    %1329 = vmatpush.bf16.msra.mxu0 0
    %1330 = vmatpush.bf16.msra.mxu0 0
    %1331 = vmatpush.bf16.msra.mxu0 0
    %1332 = vmatpush.bf16.msra.mxu0 0
    %1333 = vmatpush.bf16.msra.mxu0 %v1318
    %1334 = vmatpush.bf16.msra.mxu0 %v1317
    %1335 = vmatmul.bf16.gmra.mxu0 %v1322
    %v1336 = vpop.f32.mrf.mxu0
    %v1337 = vadd.f32 %v1301, %v1336
    %v1338 = vpop.f32.mrf.mxu0
    %v1339 = vadd.f32 %v1301, %v1338
    %1340 = vmatmul.bf16.gmra.mxu0 %v1325
    %v1341 = vpop.f32.mrf.mxu0
    %v1342 = vadd.f32 %v1301, %v1341
    %v1343 = vpop.f32.mrf.mxu0
    %v1344 = vadd.f32 %v1301, %v1343
    %1345 = vdwg.mxu0
    %v1346 = vsub.f32 %v1337, %v1278
    %v1347 = vsub.f32 %v1339, %v1280
    %v1348 = vsub.f32 %v1342, %v1283
    %v1349 = vsub.f32 %v1344, %v1285
    %v1350 = vand.u32 2147483647, %v1346
    %v1351 = vand.u32 2147483647, %v1347
    %v1352 = vand.u32 2147483647, %v1348
    %v1353 = vand.u32 2147483647, %v1349
    %v1354 = vsel %vm391, %v1350, 0.0
    %1355 = vadd.xlane.f32.xlu0 %v1354
    %v1356 = vpop.xlane.xlu0 %1355
    %v1357 = vsel %vm391, %v1351, 0.0
    %1358 = vadd.xlane.f32.xlu0 %v1357
    %v1359 = vpop.xlane.xlu0 %1358
    %v1360 = vsel %vm391, %v1352, 0.0
    %1361 = vadd.xlane.f32.xlu0 %v1360
    %v1362 = vpop.xlane.xlu0 %1361
    %v1363 = vsel %vm391, %v1353, 0.0
    %1364 = vadd.xlane.f32.xlu0 %v1363
    %v1365 = vpop.xlane.xlu0 %1364
    %v1366 = vmax.f32 %v1356, 1e-12
    %v1367 = vmax.f32 %v1359, 1e-12
    %v1368 = vmax.f32 %v1362, 1e-12
    %v1369 = vmax.f32 %v1365, 1e-12
    %s1370 = ssub.f32 0.0, %s272
    %v1371 = vrcp.pop %v1366
    %v1372 = vmul.f32 %v1366, %v1371
    %v1373 = vsub.f32 1.0, %v1372
    %v1374 = vmul.f32 %v1371, %v1373
    %v1375 = vadd.f32 %v1371, %v1374
    %vm1376 = vweird.f32 %v1366
    %vm1377 = vweird.f32 %v1371
    %vm1378 = vmor %vm1376, %vm1377
    %v1379 = vsel %vm1378, %v1371, %v1375
    %v1380 = vand.u32 2147483647, %v1366
    %vm1381 = vcmp.eq.f32.partialorder %v1380, 8.507059e+37
    %v1382 = vand.u32 %v1366, 2147483648
    %v1383 = vor.u32 1.1754944e-38, %v1382
    %v1384 = vsel %vm1381, %v1383, %v1379
    %v1385 = vmul.f32 %v1346, %v1384
    %v1386 = vrcp.pop %v1367
    %v1387 = vmul.f32 %v1367, %v1386
    %v1388 = vsub.f32 1.0, %v1387
    %v1389 = vmul.f32 %v1386, %v1388
    %v1390 = vadd.f32 %v1386, %v1389
    %vm1391 = vweird.f32 %v1367
    %vm1392 = vweird.f32 %v1386
    %vm1393 = vmor %vm1391, %vm1392
    %v1394 = vsel %vm1393, %v1386, %v1390
    %v1395 = vand.u32 2147483647, %v1367
    %vm1396 = vcmp.eq.f32.partialorder %v1395, 8.507059e+37
    %v1397 = vand.u32 %v1367, 2147483648
    %v1398 = vor.u32 1.1754944e-38, %v1397
    %v1399 = vsel %vm1396, %v1398, %v1394
    %v1400 = vmul.f32 %v1347, %v1399
    %v1401 = vrcp.pop %v1368
    %v1402 = vmul.f32 %v1368, %v1401
    %v1403 = vsub.f32 1.0, %v1402
    %v1404 = vmul.f32 %v1401, %v1403
    %v1405 = vadd.f32 %v1401, %v1404
    %vm1406 = vweird.f32 %v1368
    %vm1407 = vweird.f32 %v1401
    %vm1408 = vmor %vm1406, %vm1407
    %v1409 = vsel %vm1408, %v1401, %v1405
    %v1410 = vand.u32 2147483647, %v1368
    %vm1411 = vcmp.eq.f32.partialorder %v1410, 8.507059e+37
    %v1412 = vand.u32 %v1368, 2147483648
    %v1413 = vor.u32 1.1754944e-38, %v1412
    %v1414 = vsel %vm1411, %v1413, %v1409
    %v1415 = vmul.f32 %v1348, %v1414
    %v1416 = vrcp.pop %v1369
    %v1417 = vmul.f32 %v1369, %v1416
    %v1418 = vsub.f32 1.0, %v1417
    %v1419 = vmul.f32 %v1416, %v1418
    %v1420 = vadd.f32 %v1416, %v1419
    %vm1421 = vweird.f32 %v1369
    %vm1422 = vweird.f32 %v1416
    %vm1423 = vmor %vm1421, %vm1422
    %v1424 = vsel %vm1423, %v1416, %v1420
    %v1425 = vand.u32 2147483647, %v1369
    %vm1426 = vcmp.eq.f32.partialorder %v1425, 8.507059e+37
    %v1427 = vand.u32 %v1369, 2147483648
    %v1428 = vor.u32 1.1754944e-38, %v1427
    %v1429 = vsel %vm1426, %v1428, %v1424
    %v1430 = vmul.f32 %v1349, %v1429
    %v1431 = vstv %s1370
    %v1432 = vmul.f32 %v1431, %v1385
    %v1433 = vmul.f32 %v1431, %v1400
    %v1434 = vmul.f32 %v1431, %v1415
    %v1435 = vmul.f32 %v1431, %v1430
    %v1436 = vmul.f32 %v1432, 1.442695
    %v1437 = vpow.pop %v1436
    %v1438 = vmul.f32 %v1433, 1.442695
    %v1439 = vpow.pop %v1438
    %v1440 = vmul.f32 %v1434, 1.442695
    %v1441 = vpow.pop %v1440
    %v1442 = vmul.f32 %v1435, 1.442695
    %v1443 = vpow.pop %v1442
    %s1444 = scalar_lea.vmem [#allocation21], 16
    %v1445 = vld [vmem:[%s1444] sm:$0xf]
    %v1446 = vld [vmem:[%s1444 + $0x4] sm:$0xf]
    %v1447 = vld [vmem:[%s1444 + $0x8] sm:$0xf]
    %v1448 = vld [vmem:[%s1444 + $0xc] sm:$0xf]
    %s1449 = scalar_lea.vmem %s14, 1
    %v1450 = vld [vmem:[%s1449] sm:$0x1]
    %1451 = vrot.lane.b32.xlu0 %v405, 64
    %v1452 = vpop.permute.xlu0 %1451
    %1453 = vrot.lane.b32.xlu0 %v407, 64
    %v1454 = vpop.permute.xlu0 %1453
    %v1456 = vsel %vm512, %v447, 0
    %v1459 = vsel %vm512, %v449, 0
    %v1462 = vsel %vm512, %v452, 0
    %v1465 = vsel %vm512, %v454, 0
    %v1467 = vsel %vm512, %v1452, 0
    %v1469 = vsel %vm512, %v1454, 0
    %1471 = vmatpush.xpose.msra.mxu0 0.0
    %1472 = vmatpush.xpose.msra.mxu0 0.0
    %1473 = vmatpush.xpose.msra.mxu0 0.0
    %1474 = vmatpush.xpose.msra.mxu0 0.0
    %1475 = vmatpush.xpose.msra.mxu0 0.0
    %1476 = vmatpush.xpose.msra.mxu0 0.0
    %1477 = vmatpush.xpose.msra.mxu0 0.0
    %1478 = vmatpush.xpose.msra.mxu0 0.0
    %1479 = vmatpush.xpose.msra.mxu0 0.0
    %1480 = vmatpush.xpose.msra.mxu0 0.0
    %1481 = vmatpush.xpose.msra.mxu0 0.0
    %1482 = vmatpush.xpose.msra.mxu0 0.0
    %1483 = vmatpush.xpose.msra.mxu0 0.0
    %1484 = vmatpush.xpose.msra.mxu0 0.0
    %1485 = vmatpush.xpose.msra.mxu0 %v1469
    %1486 = vmatpush.xpose.msra.mxu0 %v1467
    %1487 = vmatmul.f32.gmra.mxu0 %v1456
    %v1488 = vpop.f32.mrf.mxu0
    %v1489 = vadd.f32 %v353, %v1488
    %1490 = vmatmul.f32.gmra.mxu0 %v1459
    %v1491 = vpop.f32.mrf.mxu0
    %v1492 = vadd.f32 %v354, %v1491
    %1493 = vmatmul.f32.gmra.mxu0 %v1462
    %v1494 = vpop.f32.mrf.mxu0
    %v1495 = vadd.f32 %v355, %v1494
    %1496 = vmatmul.f32.gmra.mxu0 %v1465
    %v1497 = vpop.f32.mrf.mxu0
    %v1498 = vadd.f32 %v356, %v1497
    %1499 = vdwg.mxu0
    %v1500 = vsel %vm560, %v1489, -inf
    %1501 = vmax.xlane.f32.xlu0 %v1500
    %v1502 = vpop.xlane.xlu0 %1501
    %v1503 = vsel %vm560, %v1492, -inf
    %1504 = vmax.xlane.f32.xlu0 %v1503
    %v1505 = vpop.xlane.xlu0 %1504
    %v1506 = vsel %vm560, %v1495, -inf
    %1507 = vmax.xlane.f32.xlu0 %v1506
    %v1508 = vpop.xlane.xlu0 %1507
    %v1509 = vsel %vm560, %v1498, -inf
    %1510 = vmax.xlane.f32.xlu0 %v1509
    %v1511 = vpop.xlane.xlu0 %1510
    %v1512 = vsub.f32 %v1489, %v1502
    %v1513 = vsub.f32 %v1492, %v1505
    %v1514 = vsub.f32 %v1495, %v1508
    %v1515 = vsub.f32 %v1498, %v1511
    %v1516 = vmul.f32 %v1512, 1.442695
    %v1517 = vpow.pop %v1516
    %v1518 = vmul.f32 %v1513, 1.442695
    %v1519 = vpow.pop %v1518
    %v1520 = vmul.f32 %v1514, 1.442695
    %v1521 = vpow.pop %v1520
    %v1522 = vmul.f32 %v1515, 1.442695
    %v1523 = vpow.pop %v1522
    %v1524 = vsel %vm560, %v1517, 0.0
    %1525 = vadd.xlane.f32.xlu0 %v1524
    %v1526 = vpop.xlane.xlu0 %1525
    %v1527 = vsel %vm560, %v1519, 0.0
    %1528 = vadd.xlane.f32.xlu0 %v1527
    %v1529 = vpop.xlane.xlu0 %1528
    %v1530 = vsel %vm560, %v1521, 0.0
    %1531 = vadd.xlane.f32.xlu0 %v1530
    %v1532 = vpop.xlane.xlu0 %1531
    %v1533 = vsel %vm560, %v1523, 0.0
    %1534 = vadd.xlane.f32.xlu0 %v1533
    %v1535 = vpop.xlane.xlu0 %1534
    %v1536 = vrcp.pop %v1526
    %v1537 = vrcp.pop %v1529
    %v1538 = vrcp.pop %v1532
    %v1539 = vrcp.pop %v1535
    %v1540 = vmul.f32 %v1517, %v1536
    %v1541 = vmul.f32 %v1519, %v1537
    %v1542 = vmul.f32 %v1521, %v1538
    %v1543 = vmul.f32 %v1523, %v1539
    %1544 = vrot.lane.b32.xlu0 %v405, 32
    %v1545 = vpop.permute.xlu0 %1544
    %1546 = vrot.lane.b32.xlu0 %v407, 32
    %v1547 = vpop.permute.xlu0 %1546
    %v1551 = vsel %vm560, %v1540, 0
    %v1554 = vsel %vm560, %v1541, 0
    %v1557 = vsel %vm560, %v1542, 0
    %v1560 = vsel %vm560, %v1543, 0
    %1562 = vmatpush.msra.mxu0 0.0
    %1563 = vmatpush.msra.mxu0 0.0
    %1564 = vmatpush.msra.mxu0 0.0
    %1565 = vmatpush.msra.mxu0 0.0
    %1566 = vmatpush.msra.mxu0 0.0
    %1567 = vmatpush.msra.mxu0 0.0
    %1568 = vmatpush.msra.mxu0 0.0
    %1569 = vmatpush.msra.mxu0 0.0
    %1570 = vmatpush.msra.mxu0 0.0
    %1571 = vmatpush.msra.mxu0 0.0
    %1572 = vmatpush.msra.mxu0 0.0
    %1573 = vmatpush.msra.mxu0 0.0
    %1574 = vmatpush.msra.mxu0 0.0
    %1575 = vmatpush.msra.mxu0 0.0
    %1576 = vmatpush.msra.mxu0 %v1547
    %1577 = vmatpush.msra.mxu0 %v1545
    %1578 = vmatmul.f32.gmra.mxu0 %v1551
    %v1579 = vpop.f32.mrf.mxu0
    %v1580 = vadd.f32 0.0, %v1579
    %1581 = vmatmul.f32.gmra.mxu0 %v1554
    %v1582 = vpop.f32.mrf.mxu0
    %v1583 = vadd.f32 0.0, %v1582
    %1584 = vmatmul.f32.gmra.mxu0 %v1557
    %v1585 = vpop.f32.mrf.mxu0
    %v1586 = vadd.f32 0.0, %v1585
    %1587 = vmatmul.f32.gmra.mxu0 %v1560
    %v1588 = vpop.f32.mrf.mxu0
    %v1589 = vadd.f32 0.0, %v1588
    %1590 = vdwg.mxu0
    %1591 = vrot.lane.b32.xlu0 %v447, 120
    %v1592 = vpop.permute.xlu0 %1591
    %1593 = vrot.lane.b32.xlu0 %v449, 120
    %v1594 = vpop.permute.xlu0 %1593
    %1595 = vrot.lane.b32.xlu0 %v452, 120
    %v1596 = vpop.permute.xlu0 %1595
    %1597 = vrot.lane.b32.xlu0 %v454, 120
    %v1598 = vpop.permute.xlu0 %1597
    %1599 = vrot.lane.b32.xlu0 %v405, 56
    %v1600 = vpop.permute.xlu0 %1599
    %1601 = vrot.lane.b32.xlu0 %v407, 56
    %v1602 = vpop.permute.xlu0 %1601
    %v1603 = vsel %vm512, %v1592, 0
    %v1605 = vsel %vm512, %v1594, 0
    %v1607 = vsel %vm512, %v1596, 0
    %v1609 = vsel %vm512, %v1598, 0
    %v1611 = vsel %vm512, %v1600, 0
    %v1613 = vsel %vm512, %v1602, 0
    %1615 = vmatpush.xpose.msra.mxu0 0.0
    %1616 = vmatpush.xpose.msra.mxu0 0.0
    %1617 = vmatpush.xpose.msra.mxu0 0.0
    %1618 = vmatpush.xpose.msra.mxu0 0.0
    %1619 = vmatpush.xpose.msra.mxu0 0.0
    %1620 = vmatpush.xpose.msra.mxu0 0.0
    %1621 = vmatpush.xpose.msra.mxu0 0.0
    %1622 = vmatpush.xpose.msra.mxu0 0.0
    %1623 = vmatpush.xpose.msra.mxu0 0.0
    %1624 = vmatpush.xpose.msra.mxu0 0.0
    %1625 = vmatpush.xpose.msra.mxu0 0.0
    %1626 = vmatpush.xpose.msra.mxu0 0.0
    %1627 = vmatpush.xpose.msra.mxu0 0.0
    %1628 = vmatpush.xpose.msra.mxu0 0.0
    %1629 = vmatpush.xpose.msra.mxu0 %v1613
    %1630 = vmatpush.xpose.msra.mxu0 %v1611
    %1631 = vmatmul.f32.gmra.mxu0 %v1603
    %v1632 = vpop.f32.mrf.mxu0
    %v1633 = vadd.f32 %v353, %v1632
    %1634 = vmatmul.f32.gmra.mxu0 %v1605
    %v1635 = vpop.f32.mrf.mxu0
    %v1636 = vadd.f32 %v354, %v1635
    %1637 = vmatmul.f32.gmra.mxu0 %v1607
    %v1638 = vpop.f32.mrf.mxu0
    %v1639 = vadd.f32 %v355, %v1638
    %1640 = vmatmul.f32.gmra.mxu0 %v1609
    %v1641 = vpop.f32.mrf.mxu0
    %v1642 = vadd.f32 %v356, %v1641
    %1643 = vdwg.mxu0
    %v1644 = vsel %vm560, %v1633, -inf
    %1645 = vmax.xlane.f32.xlu0 %v1644
    %v1646 = vpop.xlane.xlu0 %1645
    %v1647 = vsel %vm560, %v1636, -inf
    %1648 = vmax.xlane.f32.xlu0 %v1647
    %v1649 = vpop.xlane.xlu0 %1648
    %v1650 = vsel %vm560, %v1639, -inf
    %1651 = vmax.xlane.f32.xlu0 %v1650
    %v1652 = vpop.xlane.xlu0 %1651
    %v1653 = vsel %vm560, %v1642, -inf
    %1654 = vmax.xlane.f32.xlu0 %v1653
    %v1655 = vpop.xlane.xlu0 %1654
    %v1656 = vsub.f32 %v1633, %v1646
    %v1657 = vsub.f32 %v1636, %v1649
    %v1658 = vsub.f32 %v1639, %v1652
    %v1659 = vsub.f32 %v1642, %v1655
    %v1660 = vmul.f32 %v1656, 1.442695
    %v1661 = vpow.pop %v1660
    %v1662 = vmul.f32 %v1657, 1.442695
    %v1663 = vpow.pop %v1662
    %v1664 = vmul.f32 %v1658, 1.442695
    %v1665 = vpow.pop %v1664
    %v1666 = vmul.f32 %v1659, 1.442695
    %v1667 = vpow.pop %v1666
    %v1668 = vsel %vm560, %v1661, 0.0
    %1669 = vadd.xlane.f32.xlu0 %v1668
    %v1670 = vpop.xlane.xlu0 %1669
    %v1671 = vsel %vm560, %v1663, 0.0
    %1672 = vadd.xlane.f32.xlu0 %v1671
    %v1673 = vpop.xlane.xlu0 %1672
    %v1674 = vsel %vm560, %v1665, 0.0
    %1675 = vadd.xlane.f32.xlu0 %v1674
    %v1676 = vpop.xlane.xlu0 %1675
    %v1677 = vsel %vm560, %v1667, 0.0
    %1678 = vadd.xlane.f32.xlu0 %v1677
    %v1679 = vpop.xlane.xlu0 %1678
    %v1680 = vrcp.pop %v1670
    %v1681 = vrcp.pop %v1673
    %v1682 = vrcp.pop %v1676
    %v1683 = vrcp.pop %v1679
    %v1684 = vmul.f32 %v1661, %v1680
    %v1685 = vmul.f32 %v1663, %v1681
    %v1686 = vmul.f32 %v1665, %v1682
    %v1687 = vmul.f32 %v1667, %v1683
    %1688 = vrot.lane.b32.xlu0 %v405, 24
    %v1689 = vpop.permute.xlu0 %1688
    %1690 = vrot.lane.b32.xlu0 %v407, 24
    %v1691 = vpop.permute.xlu0 %1690
    %v1695 = vsel %vm560, %v1684, 0
    %v1698 = vsel %vm560, %v1685, 0
    %v1701 = vsel %vm560, %v1686, 0
    %v1704 = vsel %vm560, %v1687, 0
    %1706 = vmatpush.msra.mxu0 0.0
    %1707 = vmatpush.msra.mxu0 0.0
    %1708 = vmatpush.msra.mxu0 0.0
    %1709 = vmatpush.msra.mxu0 0.0
    %1710 = vmatpush.msra.mxu0 0.0
    %1711 = vmatpush.msra.mxu0 0.0
    %1712 = vmatpush.msra.mxu0 0.0
    %1713 = vmatpush.msra.mxu0 0.0
    %1714 = vmatpush.msra.mxu0 0.0
    %1715 = vmatpush.msra.mxu0 0.0
    %1716 = vmatpush.msra.mxu0 0.0
    %1717 = vmatpush.msra.mxu0 0.0
    %1718 = vmatpush.msra.mxu0 0.0
    %1719 = vmatpush.msra.mxu0 0.0
    %1720 = vmatpush.msra.mxu0 %v1691
    %1721 = vmatpush.msra.mxu0 %v1689
    %1722 = vmatmul.f32.gmra.mxu0 %v1695
    %v1723 = vpop.f32.mrf.mxu0
    %v1724 = vadd.f32 0.0, %v1723
    %1725 = vmatmul.f32.gmra.mxu0 %v1698
    %v1726 = vpop.f32.mrf.mxu0
    %v1727 = vadd.f32 0.0, %v1726
    %1728 = vmatmul.f32.gmra.mxu0 %v1701
    %v1729 = vpop.f32.mrf.mxu0
    %v1730 = vadd.f32 0.0, %v1729
    %1731 = vmatmul.f32.gmra.mxu0 %v1704
    %v1732 = vpop.f32.mrf.mxu0
    %v1733 = vadd.f32 0.0, %v1732
    %1734 = vdwg.mxu0
    %1735 = vrot.lane.b32.xlu0 %v447, 112
    %v1736 = vpop.permute.xlu0 %1735
    %1737 = vrot.lane.b32.xlu0 %v449, 112
    %v1738 = vpop.permute.xlu0 %1737
    %1739 = vrot.lane.b32.xlu0 %v452, 112
    %v1740 = vpop.permute.xlu0 %1739
    %1741 = vrot.lane.b32.xlu0 %v454, 112
    %v1742 = vpop.permute.xlu0 %1741
    %1743 = vrot.lane.b32.xlu0 %v405, 48
    %v1744 = vpop.permute.xlu0 %1743
    %1745 = vrot.lane.b32.xlu0 %v407, 48
    %v1746 = vpop.permute.xlu0 %1745
    %v1747 = vsel %vm512, %v1736, 0
    %v1749 = vsel %vm512, %v1738, 0
    %v1751 = vsel %vm512, %v1740, 0
    %v1753 = vsel %vm512, %v1742, 0
    %v1755 = vsel %vm512, %v1744, 0
    %v1757 = vsel %vm512, %v1746, 0
    %1759 = vmatpush.xpose.msra.mxu0 0.0
    %1760 = vmatpush.xpose.msra.mxu0 0.0
    %1761 = vmatpush.xpose.msra.mxu0 0.0
    %1762 = vmatpush.xpose.msra.mxu0 0.0
    %1763 = vmatpush.xpose.msra.mxu0 0.0
    %1764 = vmatpush.xpose.msra.mxu0 0.0
    %1765 = vmatpush.xpose.msra.mxu0 0.0
    %1766 = vmatpush.xpose.msra.mxu0 0.0
    %1767 = vmatpush.xpose.msra.mxu0 0.0
    %1768 = vmatpush.xpose.msra.mxu0 0.0
    %1769 = vmatpush.xpose.msra.mxu0 0.0
    %1770 = vmatpush.xpose.msra.mxu0 0.0
    %1771 = vmatpush.xpose.msra.mxu0 0.0
    %1772 = vmatpush.xpose.msra.mxu0 0.0
    %1773 = vmatpush.xpose.msra.mxu0 %v1757
    %1774 = vmatpush.xpose.msra.mxu0 %v1755
    %1775 = vmatmul.f32.gmra.mxu0 %v1747
    %v1776 = vpop.f32.mrf.mxu0
    %v1777 = vadd.f32 %v353, %v1776
    %1778 = vmatmul.f32.gmra.mxu0 %v1749
    %v1779 = vpop.f32.mrf.mxu0
    %v1780 = vadd.f32 %v354, %v1779
    %1781 = vmatmul.f32.gmra.mxu0 %v1751
    %v1782 = vpop.f32.mrf.mxu0
    %v1783 = vadd.f32 %v355, %v1782
    %1784 = vmatmul.f32.gmra.mxu0 %v1753
    %v1785 = vpop.f32.mrf.mxu0
    %v1786 = vadd.f32 %v356, %v1785
    %1787 = vdwg.mxu0
    %v1788 = vsel %vm560, %v1777, -inf
    %1789 = vmax.xlane.f32.xlu0 %v1788
    %v1790 = vpop.xlane.xlu0 %1789
    %v1791 = vsel %vm560, %v1780, -inf
    %1792 = vmax.xlane.f32.xlu0 %v1791
    %v1793 = vpop.xlane.xlu0 %1792
    %v1794 = vsel %vm560, %v1783, -inf
    %1795 = vmax.xlane.f32.xlu0 %v1794
    %v1796 = vpop.xlane.xlu0 %1795
    %v1797 = vsel %vm560, %v1786, -inf
    %1798 = vmax.xlane.f32.xlu0 %v1797
    %v1799 = vpop.xlane.xlu0 %1798
    %v1800 = vsub.f32 %v1777, %v1790
    %v1801 = vsub.f32 %v1780, %v1793
    %v1802 = vsub.f32 %v1783, %v1796
    %v1803 = vsub.f32 %v1786, %v1799
    %v1804 = vmul.f32 %v1800, 1.442695
    %v1805 = vpow.pop %v1804
    %v1806 = vmul.f32 %v1801, 1.442695
    %v1807 = vpow.pop %v1806
    %v1808 = vmul.f32 %v1802, 1.442695
    %v1809 = vpow.pop %v1808
    %v1810 = vmul.f32 %v1803, 1.442695
    %v1811 = vpow.pop %v1810
    %v1812 = vsel %vm560, %v1805, 0.0
    %1813 = vadd.xlane.f32.xlu0 %v1812
    %v1814 = vpop.xlane.xlu0 %1813
    %v1815 = vsel %vm560, %v1807, 0.0
    %1816 = vadd.xlane.f32.xlu0 %v1815
    %v1817 = vpop.xlane.xlu0 %1816
    %v1818 = vsel %vm560, %v1809, 0.0
    %1819 = vadd.xlane.f32.xlu0 %v1818
    %v1820 = vpop.xlane.xlu0 %1819
    %v1821 = vsel %vm560, %v1811, 0.0
    %1822 = vadd.xlane.f32.xlu0 %v1821
    %v1823 = vpop.xlane.xlu0 %1822
    %v1824 = vrcp.pop %v1814
    %v1825 = vrcp.pop %v1817
    %v1826 = vrcp.pop %v1820
    %v1827 = vrcp.pop %v1823
    %v1828 = vmul.f32 %v1805, %v1824
    %v1829 = vmul.f32 %v1807, %v1825
    %v1830 = vmul.f32 %v1809, %v1826
    %v1831 = vmul.f32 %v1811, %v1827
    %1832 = vrot.lane.b32.xlu0 %v405, 16
    %v1833 = vpop.permute.xlu0 %1832
    %1834 = vrot.lane.b32.xlu0 %v407, 16
    %v1835 = vpop.permute.xlu0 %1834
    %v1839 = vsel %vm560, %v1828, 0
    %v1842 = vsel %vm560, %v1829, 0
    %v1845 = vsel %vm560, %v1830, 0
    %v1848 = vsel %vm560, %v1831, 0
    %1850 = vmatpush.msra.mxu0 0.0
    %1851 = vmatpush.msra.mxu0 0.0
    %1852 = vmatpush.msra.mxu0 0.0
    %1853 = vmatpush.msra.mxu0 0.0
    %1854 = vmatpush.msra.mxu0 0.0
    %1855 = vmatpush.msra.mxu0 0.0
    %1856 = vmatpush.msra.mxu0 0.0
    %1857 = vmatpush.msra.mxu0 0.0
    %1858 = vmatpush.msra.mxu0 0.0
    %1859 = vmatpush.msra.mxu0 0.0
    %1860 = vmatpush.msra.mxu0 0.0
    %1861 = vmatpush.msra.mxu0 0.0
    %1862 = vmatpush.msra.mxu0 0.0
    %1863 = vmatpush.msra.mxu0 0.0
    %1864 = vmatpush.msra.mxu0 %v1835
    %1865 = vmatpush.msra.mxu0 %v1833
    %1866 = vmatmul.f32.gmra.mxu0 %v1839
    %v1867 = vpop.f32.mrf.mxu0
    %v1868 = vadd.f32 0.0, %v1867
    %1869 = vmatmul.f32.gmra.mxu0 %v1842
    %v1870 = vpop.f32.mrf.mxu0
    %v1871 = vadd.f32 0.0, %v1870
    %1872 = vmatmul.f32.gmra.mxu0 %v1845
    %v1873 = vpop.f32.mrf.mxu0
    %v1874 = vadd.f32 0.0, %v1873
    %1875 = vmatmul.f32.gmra.mxu0 %v1848
    %v1876 = vpop.f32.mrf.mxu0
    %v1877 = vadd.f32 0.0, %v1876
    %1878 = vdwg.mxu0
    %1879 = vrot.lane.b32.xlu0 %v447, 104
    %v1880 = vpop.permute.xlu0 %1879
    %1881 = vrot.lane.b32.xlu0 %v449, 104
    %v1882 = vpop.permute.xlu0 %1881
    %1883 = vrot.lane.b32.xlu0 %v452, 104
    %v1884 = vpop.permute.xlu0 %1883
    %1885 = vrot.lane.b32.xlu0 %v454, 104
    %v1886 = vpop.permute.xlu0 %1885
    %1887 = vrot.lane.b32.xlu0 %v405, 40
    %v1888 = vpop.permute.xlu0 %1887
    %1889 = vrot.lane.b32.xlu0 %v407, 40
    %v1890 = vpop.permute.xlu0 %1889
    %v1891 = vsel %vm512, %v1880, 0
    %v1893 = vsel %vm512, %v1882, 0
    %v1895 = vsel %vm512, %v1884, 0
    %v1897 = vsel %vm512, %v1886, 0
    %v1899 = vsel %vm512, %v1888, 0
    %v1901 = vsel %vm512, %v1890, 0
    %1903 = vmatpush.xpose.msra.mxu0 0.0
    %1904 = vmatpush.xpose.msra.mxu0 0.0
    %1905 = vmatpush.xpose.msra.mxu0 0.0
    %1906 = vmatpush.xpose.msra.mxu0 0.0
    %1907 = vmatpush.xpose.msra.mxu0 0.0
    %1908 = vmatpush.xpose.msra.mxu0 0.0
    %1909 = vmatpush.xpose.msra.mxu0 0.0
    %1910 = vmatpush.xpose.msra.mxu0 0.0
    %1911 = vmatpush.xpose.msra.mxu0 0.0
    %1912 = vmatpush.xpose.msra.mxu0 0.0
    %1913 = vmatpush.xpose.msra.mxu0 0.0
    %1914 = vmatpush.xpose.msra.mxu0 0.0
    %1915 = vmatpush.xpose.msra.mxu0 0.0
    %1916 = vmatpush.xpose.msra.mxu0 0.0
    %1917 = vmatpush.xpose.msra.mxu0 %v1901
    %1918 = vmatpush.xpose.msra.mxu0 %v1899
    %1919 = vmatmul.f32.gmra.mxu0 %v1891
    %v1920 = vpop.f32.mrf.mxu0
    %v1921 = vadd.f32 %v353, %v1920
    %1922 = vmatmul.f32.gmra.mxu0 %v1893
    %v1923 = vpop.f32.mrf.mxu0
    %v1924 = vadd.f32 %v354, %v1923
    %1925 = vmatmul.f32.gmra.mxu0 %v1895
    %v1926 = vpop.f32.mrf.mxu0
    %v1927 = vadd.f32 %v355, %v1926
    %1928 = vmatmul.f32.gmra.mxu0 %v1897
    %v1929 = vpop.f32.mrf.mxu0
    %v1930 = vadd.f32 %v356, %v1929
    %1931 = vdwg.mxu0
    %v1932 = vsel %vm560, %v1921, -inf
    %1933 = vmax.xlane.f32.xlu0 %v1932
    %v1934 = vpop.xlane.xlu0 %1933
    %v1935 = vsel %vm560, %v1924, -inf
    %1936 = vmax.xlane.f32.xlu0 %v1935
    %v1937 = vpop.xlane.xlu0 %1936
    %v1938 = vsel %vm560, %v1927, -inf
    %1939 = vmax.xlane.f32.xlu0 %v1938
    %v1940 = vpop.xlane.xlu0 %1939
    %v1941 = vsel %vm560, %v1930, -inf
    %1942 = vmax.xlane.f32.xlu0 %v1941
    %v1943 = vpop.xlane.xlu0 %1942
    %v1944 = vsub.f32 %v1921, %v1934
    %v1945 = vsub.f32 %v1924, %v1937
    %v1946 = vsub.f32 %v1927, %v1940
    %v1947 = vsub.f32 %v1930, %v1943
    %v1948 = vmul.f32 %v1944, 1.442695
    %v1949 = vpow.pop %v1948
    %v1950 = vmul.f32 %v1945, 1.442695
    %v1951 = vpow.pop %v1950
    %v1952 = vmul.f32 %v1946, 1.442695
    %v1953 = vpow.pop %v1952
    %v1954 = vmul.f32 %v1947, 1.442695
    %v1955 = vpow.pop %v1954
    %v1956 = vsel %vm560, %v1949, 0.0
    %1957 = vadd.xlane.f32.xlu0 %v1956
    %v1958 = vpop.xlane.xlu0 %1957
    %v1959 = vsel %vm560, %v1951, 0.0
    %1960 = vadd.xlane.f32.xlu0 %v1959
    %v1961 = vpop.xlane.xlu0 %1960
    %v1962 = vsel %vm560, %v1953, 0.0
    %1963 = vadd.xlane.f32.xlu0 %v1962
    %v1964 = vpop.xlane.xlu0 %1963
    %v1965 = vsel %vm560, %v1955, 0.0
    %1966 = vadd.xlane.f32.xlu0 %v1965
    %v1967 = vpop.xlane.xlu0 %1966
    %v1968 = vrcp.pop %v1958
    %v1969 = vrcp.pop %v1961
    %v1970 = vrcp.pop %v1964
    %v1971 = vrcp.pop %v1967
    %v1972 = vmul.f32 %v1949, %v1968
    %v1973 = vmul.f32 %v1951, %v1969
    %v1974 = vmul.f32 %v1953, %v1970
    %v1975 = vmul.f32 %v1955, %v1971
    %1976 = vrot.lane.b32.xlu0 %v405, 8
    %v1977 = vpop.permute.xlu0 %1976
    %1978 = vrot.lane.b32.xlu0 %v407, 8
    %v1979 = vpop.permute.xlu0 %1978
    %v1983 = vsel %vm560, %v1972, 0
    %v1986 = vsel %vm560, %v1973, 0
    %v1989 = vsel %vm560, %v1974, 0
    %v1992 = vsel %vm560, %v1975, 0
    %1994 = vmatpush.msra.mxu0 0.0
    %1995 = vmatpush.msra.mxu0 0.0
    %1996 = vmatpush.msra.mxu0 0.0
    %1997 = vmatpush.msra.mxu0 0.0
    %1998 = vmatpush.msra.mxu0 0.0
    %1999 = vmatpush.msra.mxu0 0.0
    %2000 = vmatpush.msra.mxu0 0.0
    %2001 = vmatpush.msra.mxu0 0.0
    %2002 = vmatpush.msra.mxu0 0.0
    %2003 = vmatpush.msra.mxu0 0.0
    %2004 = vmatpush.msra.mxu0 0.0
    %2005 = vmatpush.msra.mxu0 0.0
    %2006 = vmatpush.msra.mxu0 0.0
    %2007 = vmatpush.msra.mxu0 0.0
    %2008 = vmatpush.msra.mxu0 %v1979
    %2009 = vmatpush.msra.mxu0 %v1977
    %2010 = vmatmul.f32.gmra.mxu0 %v1983
    %v2011 = vpop.f32.mrf.mxu0
    %v2012 = vadd.f32 0.0, %v2011
    %2013 = vmatmul.f32.gmra.mxu0 %v1986
    %v2014 = vpop.f32.mrf.mxu0
    %v2015 = vadd.f32 0.0, %v2014
    %2016 = vmatmul.f32.gmra.mxu0 %v1989
    %v2017 = vpop.f32.mrf.mxu0
    %v2018 = vadd.f32 0.0, %v2017
    %2019 = vmatmul.f32.gmra.mxu0 %v1992
    %v2020 = vpop.f32.mrf.mxu0
    %v2021 = vadd.f32 0.0, %v2020
    %2022 = vdwg.mxu0
    %2027 = vrot.lane.b32.xlu0 %v1724, 8
    %v2028 = vpop.permute.xlu0 %2027
    %2029 = vrot.lane.b32.xlu0 %v1727, 8
    %v2030 = vpop.permute.xlu0 %2029
    %2031 = vrot.lane.b32.xlu0 %v1730, 8
    %v2032 = vpop.permute.xlu0 %2031
    %2033 = vrot.lane.b32.xlu0 %v1733, 8
    %v2034 = vpop.permute.xlu0 %2033
    %2043 = vrot.lane.b32.xlu0 %v1868, 16
    %v2044 = vpop.permute.xlu0 %2043
    %2045 = vrot.lane.b32.xlu0 %v1871, 16
    %v2046 = vpop.permute.xlu0 %2045
    %2047 = vrot.lane.b32.xlu0 %v1874, 16
    %v2048 = vpop.permute.xlu0 %2047
    %2049 = vrot.lane.b32.xlu0 %v1877, 16
    %v2050 = vpop.permute.xlu0 %2049
    %2059 = vrot.lane.b32.xlu0 %v2012, 24
    %v2060 = vpop.permute.xlu0 %2059
    %2061 = vrot.lane.b32.xlu0 %v2015, 24
    %v2062 = vpop.permute.xlu0 %2061
    %2063 = vrot.lane.b32.xlu0 %v2018, 24
    %v2064 = vpop.permute.xlu0 %2063
    %2065 = vrot.lane.b32.xlu0 %v2021, 24
    %v2066 = vpop.permute.xlu0 %2065
    %v2071 = vsel %vm512, %v1580, %v2028
    %v2072 = vsel %vm512, %v1583, %v2030
    %v2073 = vsel %vm512, %v1586, %v2032
    %v2074 = vsel %vm512, %v1589, %v2034
    %v2075 = vsel %vm560, %v2071, %v2044
    %v2076 = vsel %vm560, %v2072, %v2046
    %v2077 = vsel %vm560, %v2073, %v2048
    %v2078 = vsel %vm560, %v2074, %v2050
    %v2079 = vsel %vm1140, %v2075, %v2060
    %v2080 = vsel %vm1140, %v2076, %v2062
    %v2081 = vsel %vm1140, %v2077, %v2064
    %v2082 = vsel %vm1140, %v2078, %v2066
    %v2083 = vpack.c.bf16 %v2080, %v2079
    %v2084 = vpack.c.bf16 %v2082, %v2081
    %v2086 = vperm.slane %v1450, 0
    %v2092 = vunpack.c.l.b16 %v1445
    %v2093 = vunpack.c.l.b16 %v1446
    %v2094 = vunpack.c.l.b16 %v1447
    %v2095 = vunpack.c.l.b16 %v1448
    %v2096 = vpack.c.b16 %v2093, %v2092
    %v2097 = vpack.c.b16 %v2095, %v2094
    %v2101 = vsel %vm391, %v2083, 0
    %v2104 = vsel %vm391, %v2084, 0
    %2106 = vmatpush.bf16.msra.mxu0 0
    %2107 = vmatpush.bf16.msra.mxu0 0
    %2108 = vmatpush.bf16.msra.mxu0 0
    %2109 = vmatpush.bf16.msra.mxu0 0
    %2110 = vmatpush.bf16.msra.mxu0 0
    %2111 = vmatpush.bf16.msra.mxu0 0
    %2112 = vmatpush.bf16.msra.mxu0 %v2097
    %2113 = vmatpush.bf16.msra.mxu0 %v2096
    %2114 = vmatmul.bf16.gmra.mxu0 %v2101
    %v2115 = vpop.f32.mrf.mxu0
    %v2116 = vadd.f32 %v2086, %v2115
    %v2117 = vpop.f32.mrf.mxu0
    %v2118 = vadd.f32 %v2086, %v2117
    %2119 = vmatmul.bf16.gmra.mxu0 %v2104
    %v2120 = vpop.f32.mrf.mxu0
    %v2121 = vadd.f32 %v2086, %v2120
    %v2122 = vpop.f32.mrf.mxu0
    %v2123 = vadd.f32 %v2086, %v2122
    %2124 = vdwg.mxu0
    %v2125 = vadd.f32 %v262, %v2116
    %v2126 = vadd.f32 %v263, %v2118
    %v2127 = vadd.f32 %v264, %v2121
    %v2128 = vadd.f32 %v265, %v2123
    %v2129 = vld [vmem:[#allocation20] sm:$0xf]
    %v2130 = vld [vmem:[#allocation20 + $0x4] sm:$0xf]
    %v2131 = vld [vmem:[#allocation20 + $0x8] sm:$0xf]
    %v2132 = vld [vmem:[#allocation20 + $0xc] sm:$0xf]
    %v2133 = vpack.c.bf16 %v2126, %v2125
    %v2134 = vpack.c.bf16 %v2128, %v2127
    %v2135 = vld [vmem:[%s12] sm:$0x1]
    %v2137 = vperm.slane %v2135, 0
    %v2143 = vunpack.c.l.b16 %v2129
    %v2144 = vunpack.c.l.b16 %v2130
    %v2145 = vunpack.c.l.b16 %v2131
    %v2146 = vunpack.c.l.b16 %v2132
    %v2147 = vpack.c.b16 %v2144, %v2143
    %v2148 = vpack.c.b16 %v2146, %v2145
    %v2152 = vsel %vm391, %v2133, 0
    %v2155 = vsel %vm391, %v2134, 0
    %2157 = vmatpush.bf16.msra.mxu0 0
    %2158 = vmatpush.bf16.msra.mxu0 0
    %2159 = vmatpush.bf16.msra.mxu0 0
    %2160 = vmatpush.bf16.msra.mxu0 0
    %2161 = vmatpush.bf16.msra.mxu0 0
    %2162 = vmatpush.bf16.msra.mxu0 0
    %2163 = vmatpush.bf16.msra.mxu0 %v2148
    %2164 = vmatpush.bf16.msra.mxu0 %v2147
    %2165 = vmatmul.bf16.gmra.mxu0 %v2152
    %v2166 = vpop.f32.mrf.mxu0
    %v2167 = vadd.f32 %v2137, %v2166
    %v2168 = vpop.f32.mrf.mxu0
    %v2169 = vadd.f32 %v2137, %v2168
    %2170 = vmatmul.bf16.gmra.mxu0 %v2155
    %v2171 = vpop.f32.mrf.mxu0
    %v2172 = vadd.f32 %v2137, %v2171
    %v2173 = vpop.f32.mrf.mxu0
    %v2174 = vadd.f32 %v2137, %v2173
    %2175 = vdwg.mxu0
    %s2176 = scalar_lea.vmem [#allocation21], 32
    %v2177 = vld [vmem:[%s2176] sm:$0xf]
    %v2178 = vld [vmem:[%s2176 + $0x4] sm:$0xf]
    %v2179 = vld [vmem:[%s2176 + $0x8] sm:$0xf]
    %v2180 = vld [vmem:[%s2176 + $0xc] sm:$0xf]
    %s2181 = scalar_lea.vmem %s14, 2
    %v2182 = vld [vmem:[%s2181] sm:$0x1]
    %2187 = vrot.lane.b32.xlu0 %v2167, 96
    %v2188 = vpop.permute.xlu0 %2187
    %2189 = vrot.lane.b32.xlu0 %v2169, 96
    %v2190 = vpop.permute.xlu0 %2189
    %2191 = vrot.lane.b32.xlu0 %v2172, 96
    %v2192 = vpop.permute.xlu0 %2191
    %2193 = vrot.lane.b32.xlu0 %v2174, 96
    %v2194 = vpop.permute.xlu0 %2193
    %v2195 = vsel %vm512, %v2167, 0
    %v2197 = vsel %vm512, %v2169, 0
    %v2199 = vsel %vm512, %v2172, 0
    %v2201 = vsel %vm512, %v2174, 0
    %v2203 = vsel %vm512, %v2188, 0
    %v2205 = vsel %vm512, %v2190, 0
    %v2207 = vsel %vm512, %v2192, 0
    %v2209 = vsel %vm512, %v2194, 0
    %2211 = vmatpush.xpose.msra.mxu0 0.0
    %2212 = vmatpush.xpose.msra.mxu0 0.0
    %2213 = vmatpush.xpose.msra.mxu0 0.0
    %2214 = vmatpush.xpose.msra.mxu0 0.0
    %2215 = vmatpush.xpose.msra.mxu0 0.0
    %2216 = vmatpush.xpose.msra.mxu0 0.0
    %2217 = vmatpush.xpose.msra.mxu0 0.0
    %2218 = vmatpush.xpose.msra.mxu0 0.0
    %2219 = vmatpush.xpose.msra.mxu0 0.0
    %2220 = vmatpush.xpose.msra.mxu0 0.0
    %2221 = vmatpush.xpose.msra.mxu0 0.0
    %2222 = vmatpush.xpose.msra.mxu0 0.0
    %2223 = vmatpush.xpose.msra.mxu0 %v2209
    %2224 = vmatpush.xpose.msra.mxu0 %v2207
    %2225 = vmatpush.xpose.msra.mxu0 %v2205
    %2226 = vmatpush.xpose.msra.mxu0 %v2203
    %2227 = vmatmul.f32.gmra.mxu0 %v2195
    %v2228 = vpop.f32.mrf.mxu0
    %v2229 = vadd.f32 %v366, %v2228
    %2230 = vmatmul.f32.gmra.mxu0 %v2197
    %v2231 = vpop.f32.mrf.mxu0
    %v2232 = vadd.f32 %v367, %v2231
    %2233 = vmatmul.f32.gmra.mxu0 %v2199
    %v2234 = vpop.f32.mrf.mxu0
    %v2235 = vadd.f32 %v368, %v2234
    %2236 = vmatmul.f32.gmra.mxu0 %v2201
    %v2237 = vpop.f32.mrf.mxu0
    %v2238 = vadd.f32 %v369, %v2237
    %2239 = vdwg.mxu0
    %v2240 = vsel %vm391, %v2229, -inf
    %2241 = vmax.xlane.f32.xlu0 %v2240
    %v2242 = vpop.xlane.xlu0 %2241
    %v2243 = vsel %vm391, %v2232, -inf
    %2244 = vmax.xlane.f32.xlu0 %v2243
    %v2245 = vpop.xlane.xlu0 %2244
    %v2246 = vsel %vm391, %v2235, -inf
    %2247 = vmax.xlane.f32.xlu0 %v2246
    %v2248 = vpop.xlane.xlu0 %2247
    %v2249 = vsel %vm391, %v2238, -inf
    %2250 = vmax.xlane.f32.xlu0 %v2249
    %v2251 = vpop.xlane.xlu0 %2250
    %v2252 = vsub.f32 %v2229, %v2242
    %v2253 = vsub.f32 %v2232, %v2245
    %v2254 = vsub.f32 %v2235, %v2248
    %v2255 = vsub.f32 %v2238, %v2251
    %v2256 = vmul.f32 %v2252, 1.442695
    %v2257 = vpow.pop %v2256
    %v2258 = vmul.f32 %v2253, 1.442695
    %v2259 = vpow.pop %v2258
    %v2260 = vmul.f32 %v2254, 1.442695
    %v2261 = vpow.pop %v2260
    %v2262 = vmul.f32 %v2255, 1.442695
    %v2263 = vpow.pop %v2262
    %v2264 = vsel %vm391, %v2257, 0.0
    %2265 = vadd.xlane.f32.xlu0 %v2264
    %v2266 = vpop.xlane.xlu0 %2265
    %v2267 = vsel %vm391, %v2259, 0.0
    %2268 = vadd.xlane.f32.xlu0 %v2267
    %v2269 = vpop.xlane.xlu0 %2268
    %v2270 = vsel %vm391, %v2261, 0.0
    %2271 = vadd.xlane.f32.xlu0 %v2270
    %v2272 = vpop.xlane.xlu0 %2271
    %v2273 = vsel %vm391, %v2263, 0.0
    %2274 = vadd.xlane.f32.xlu0 %v2273
    %v2275 = vpop.xlane.xlu0 %2274
    %v2276 = vrcp.pop %v2266
    %v2277 = vrcp.pop %v2269
    %v2278 = vrcp.pop %v2272
    %v2279 = vrcp.pop %v2275
    %v2280 = vmul.f32 %v2257, %v2276
    %v2281 = vmul.f32 %v2259, %v2277
    %v2282 = vmul.f32 %v2261, %v2278
    %v2283 = vmul.f32 %v2263, %v2279
    %2284 = vrot.lane.b32.xlu0 %v447, 96
    %v2285 = vpop.permute.xlu0 %2284
    %2286 = vrot.lane.b32.xlu0 %v449, 96
    %v2287 = vpop.permute.xlu0 %2286
    %2288 = vrot.lane.b32.xlu0 %v452, 96
    %v2289 = vpop.permute.xlu0 %2288
    %2290 = vrot.lane.b32.xlu0 %v454, 96
    %v2291 = vpop.permute.xlu0 %2290
    %v2297 = vsel %vm391, %v2280, 0
    %v2300 = vsel %vm391, %v2281, 0
    %v2303 = vsel %vm391, %v2282, 0
    %v2306 = vsel %vm391, %v2283, 0
    %2308 = vmatpush.msra.mxu0 0.0
    %2309 = vmatpush.msra.mxu0 0.0
    %2310 = vmatpush.msra.mxu0 0.0
    %2311 = vmatpush.msra.mxu0 0.0
    %2312 = vmatpush.msra.mxu0 0.0
    %2313 = vmatpush.msra.mxu0 0.0
    %2314 = vmatpush.msra.mxu0 0.0
    %2315 = vmatpush.msra.mxu0 0.0
    %2316 = vmatpush.msra.mxu0 0.0
    %2317 = vmatpush.msra.mxu0 0.0
    %2318 = vmatpush.msra.mxu0 0.0
    %2319 = vmatpush.msra.mxu0 0.0
    %2320 = vmatpush.msra.mxu0 %v2291
    %2321 = vmatpush.msra.mxu0 %v2289
    %2322 = vmatpush.msra.mxu0 %v2287
    %2323 = vmatpush.msra.mxu0 %v2285
    %2324 = vmatmul.f32.gmra.mxu0 %v2297
    %v2325 = vpop.f32.mrf.mxu0
    %v2326 = vadd.f32 0.0, %v2325
    %2327 = vmatmul.f32.gmra.mxu0 %v2300
    %v2328 = vpop.f32.mrf.mxu0
    %v2329 = vadd.f32 0.0, %v2328
    %2330 = vmatmul.f32.gmra.mxu0 %v2303
    %v2331 = vpop.f32.mrf.mxu0
    %v2332 = vadd.f32 0.0, %v2331
    %2333 = vmatmul.f32.gmra.mxu0 %v2306
    %v2334 = vpop.f32.mrf.mxu0
    %v2335 = vadd.f32 0.0, %v2334
    %2336 = vdwg.mxu0
    %2337 = vrot.lane.b32.xlu0 %v2167, 120
    %v2338 = vpop.permute.xlu0 %2337
    %2339 = vrot.lane.b32.xlu0 %v2169, 120
    %v2340 = vpop.permute.xlu0 %2339
    %2341 = vrot.lane.b32.xlu0 %v2172, 120
    %v2342 = vpop.permute.xlu0 %2341
    %2343 = vrot.lane.b32.xlu0 %v2174, 120
    %v2344 = vpop.permute.xlu0 %2343
    %2345 = vrot.lane.b32.xlu0 %v2167, 88
    %v2346 = vpop.permute.xlu0 %2345
    %2347 = vrot.lane.b32.xlu0 %v2169, 88
    %v2348 = vpop.permute.xlu0 %2347
    %2349 = vrot.lane.b32.xlu0 %v2172, 88
    %v2350 = vpop.permute.xlu0 %2349
    %2351 = vrot.lane.b32.xlu0 %v2174, 88
    %v2352 = vpop.permute.xlu0 %2351
    %v2353 = vsel %vm512, %v2338, 0
    %v2355 = vsel %vm512, %v2340, 0
    %v2357 = vsel %vm512, %v2342, 0
    %v2359 = vsel %vm512, %v2344, 0
    %v2361 = vsel %vm512, %v2346, 0
    %v2363 = vsel %vm512, %v2348, 0
    %v2365 = vsel %vm512, %v2350, 0
    %v2367 = vsel %vm512, %v2352, 0
    %2369 = vmatpush.xpose.msra.mxu0 0.0
    %2370 = vmatpush.xpose.msra.mxu0 0.0
    %2371 = vmatpush.xpose.msra.mxu0 0.0
    %2372 = vmatpush.xpose.msra.mxu0 0.0
    %2373 = vmatpush.xpose.msra.mxu0 0.0
    %2374 = vmatpush.xpose.msra.mxu0 0.0
    %2375 = vmatpush.xpose.msra.mxu0 0.0
    %2376 = vmatpush.xpose.msra.mxu0 0.0
    %2377 = vmatpush.xpose.msra.mxu0 0.0
    %2378 = vmatpush.xpose.msra.mxu0 0.0
    %2379 = vmatpush.xpose.msra.mxu0 0.0
    %2380 = vmatpush.xpose.msra.mxu0 0.0
    %2381 = vmatpush.xpose.msra.mxu0 %v2367
    %2382 = vmatpush.xpose.msra.mxu0 %v2365
    %2383 = vmatpush.xpose.msra.mxu0 %v2363
    %2384 = vmatpush.xpose.msra.mxu0 %v2361
    %2385 = vmatmul.f32.gmra.mxu0 %v2353
    %v2386 = vpop.f32.mrf.mxu0
    %v2387 = vadd.f32 %v366, %v2386
    %2388 = vmatmul.f32.gmra.mxu0 %v2355
    %v2389 = vpop.f32.mrf.mxu0
    %v2390 = vadd.f32 %v367, %v2389
    %2391 = vmatmul.f32.gmra.mxu0 %v2357
    %v2392 = vpop.f32.mrf.mxu0
    %v2393 = vadd.f32 %v368, %v2392
    %2394 = vmatmul.f32.gmra.mxu0 %v2359
    %v2395 = vpop.f32.mrf.mxu0
    %v2396 = vadd.f32 %v369, %v2395
    %2397 = vdwg.mxu0
    %v2398 = vsel %vm391, %v2387, -inf
    %2399 = vmax.xlane.f32.xlu0 %v2398
    %v2400 = vpop.xlane.xlu0 %2399
    %v2401 = vsel %vm391, %v2390, -inf
    %2402 = vmax.xlane.f32.xlu0 %v2401
    %v2403 = vpop.xlane.xlu0 %2402
    %v2404 = vsel %vm391, %v2393, -inf
    %2405 = vmax.xlane.f32.xlu0 %v2404
    %v2406 = vpop.xlane.xlu0 %2405
    %v2407 = vsel %vm391, %v2396, -inf
    %2408 = vmax.xlane.f32.xlu0 %v2407
    %v2409 = vpop.xlane.xlu0 %2408
    %v2410 = vsub.f32 %v2387, %v2400
    %v2411 = vsub.f32 %v2390, %v2403
    %v2412 = vsub.f32 %v2393, %v2406
    %v2413 = vsub.f32 %v2396, %v2409
    %v2414 = vmul.f32 %v2410, 1.442695
    %v2415 = vpow.pop %v2414
    %v2416 = vmul.f32 %v2411, 1.442695
    %v2417 = vpow.pop %v2416
    %v2418 = vmul.f32 %v2412, 1.442695
    %v2419 = vpow.pop %v2418
    %v2420 = vmul.f32 %v2413, 1.442695
    %v2421 = vpow.pop %v2420
    %v2422 = vsel %vm391, %v2415, 0.0
    %2423 = vadd.xlane.f32.xlu0 %v2422
    %v2424 = vpop.xlane.xlu0 %2423
    %v2425 = vsel %vm391, %v2417, 0.0
    %2426 = vadd.xlane.f32.xlu0 %v2425
    %v2427 = vpop.xlane.xlu0 %2426
    %v2428 = vsel %vm391, %v2419, 0.0
    %2429 = vadd.xlane.f32.xlu0 %v2428
    %v2430 = vpop.xlane.xlu0 %2429
    %v2431 = vsel %vm391, %v2421, 0.0
    %2432 = vadd.xlane.f32.xlu0 %v2431
    %v2433 = vpop.xlane.xlu0 %2432
    %v2434 = vrcp.pop %v2424
    %v2435 = vrcp.pop %v2427
    %v2436 = vrcp.pop %v2430
    %v2437 = vrcp.pop %v2433
    %v2438 = vmul.f32 %v2415, %v2434
    %v2439 = vmul.f32 %v2417, %v2435
    %v2440 = vmul.f32 %v2419, %v2436
    %v2441 = vmul.f32 %v2421, %v2437
    %2442 = vrot.lane.b32.xlu0 %v447, 88
    %v2443 = vpop.permute.xlu0 %2442
    %2444 = vrot.lane.b32.xlu0 %v449, 88
    %v2445 = vpop.permute.xlu0 %2444
    %2446 = vrot.lane.b32.xlu0 %v452, 88
    %v2447 = vpop.permute.xlu0 %2446
    %2448 = vrot.lane.b32.xlu0 %v454, 88
    %v2449 = vpop.permute.xlu0 %2448
    %v2455 = vsel %vm391, %v2438, 0
    %v2458 = vsel %vm391, %v2439, 0
    %v2461 = vsel %vm391, %v2440, 0
    %v2464 = vsel %vm391, %v2441, 0
    %2466 = vmatpush.msra.mxu0 0.0
    %2467 = vmatpush.msra.mxu0 0.0
    %2468 = vmatpush.msra.mxu0 0.0
    %2469 = vmatpush.msra.mxu0 0.0
    %2470 = vmatpush.msra.mxu0 0.0
    %2471 = vmatpush.msra.mxu0 0.0
    %2472 = vmatpush.msra.mxu0 0.0
    %2473 = vmatpush.msra.mxu0 0.0
    %2474 = vmatpush.msra.mxu0 0.0
    %2475 = vmatpush.msra.mxu0 0.0
    %2476 = vmatpush.msra.mxu0 0.0
    %2477 = vmatpush.msra.mxu0 0.0
    %2478 = vmatpush.msra.mxu0 %v2449
    %2479 = vmatpush.msra.mxu0 %v2447
    %2480 = vmatpush.msra.mxu0 %v2445
    %2481 = vmatpush.msra.mxu0 %v2443
    %2482 = vmatmul.f32.gmra.mxu0 %v2455
    %v2483 = vpop.f32.mrf.mxu0
    %v2484 = vadd.f32 0.0, %v2483
    %2485 = vmatmul.f32.gmra.mxu0 %v2458
    %v2486 = vpop.f32.mrf.mxu0
    %v2487 = vadd.f32 0.0, %v2486
    %2488 = vmatmul.f32.gmra.mxu0 %v2461
    %v2489 = vpop.f32.mrf.mxu0
    %v2490 = vadd.f32 0.0, %v2489
    %2491 = vmatmul.f32.gmra.mxu0 %v2464
    %v2492 = vpop.f32.mrf.mxu0
    %v2493 = vadd.f32 0.0, %v2492
    %2494 = vdwg.mxu0
    %2495 = vrot.lane.b32.xlu0 %v2167, 112
    %v2496 = vpop.permute.xlu0 %2495
    %2497 = vrot.lane.b32.xlu0 %v2169, 112
    %v2498 = vpop.permute.xlu0 %2497
    %2499 = vrot.lane.b32.xlu0 %v2172, 112
    %v2500 = vpop.permute.xlu0 %2499
    %2501 = vrot.lane.b32.xlu0 %v2174, 112
    %v2502 = vpop.permute.xlu0 %2501
    %2503 = vrot.lane.b32.xlu0 %v2167, 80
    %v2504 = vpop.permute.xlu0 %2503
    %2505 = vrot.lane.b32.xlu0 %v2169, 80
    %v2506 = vpop.permute.xlu0 %2505
    %2507 = vrot.lane.b32.xlu0 %v2172, 80
    %v2508 = vpop.permute.xlu0 %2507
    %2509 = vrot.lane.b32.xlu0 %v2174, 80
    %v2510 = vpop.permute.xlu0 %2509
    %v2511 = vsel %vm512, %v2496, 0
    %v2513 = vsel %vm512, %v2498, 0
    %v2515 = vsel %vm512, %v2500, 0
    %v2517 = vsel %vm512, %v2502, 0
    %v2519 = vsel %vm512, %v2504, 0
    %v2521 = vsel %vm512, %v2506, 0
    %v2523 = vsel %vm512, %v2508, 0
    %v2525 = vsel %vm512, %v2510, 0
    %2527 = vmatpush.xpose.msra.mxu0 0.0
    %2528 = vmatpush.xpose.msra.mxu0 0.0
    %2529 = vmatpush.xpose.msra.mxu0 0.0
    %2530 = vmatpush.xpose.msra.mxu0 0.0
    %2531 = vmatpush.xpose.msra.mxu0 0.0
    %2532 = vmatpush.xpose.msra.mxu0 0.0
    %2533 = vmatpush.xpose.msra.mxu0 0.0
    %2534 = vmatpush.xpose.msra.mxu0 0.0
    %2535 = vmatpush.xpose.msra.mxu0 0.0
    %2536 = vmatpush.xpose.msra.mxu0 0.0
    %2537 = vmatpush.xpose.msra.mxu0 0.0
    %2538 = vmatpush.xpose.msra.mxu0 0.0
    %2539 = vmatpush.xpose.msra.mxu0 %v2525
    %2540 = vmatpush.xpose.msra.mxu0 %v2523
    %2541 = vmatpush.xpose.msra.mxu0 %v2521
    %2542 = vmatpush.xpose.msra.mxu0 %v2519
    %2543 = vmatmul.f32.gmra.mxu0 %v2511
    %v2544 = vpop.f32.mrf.mxu0
    %v2545 = vadd.f32 %v366, %v2544
    %2546 = vmatmul.f32.gmra.mxu0 %v2513
    %v2547 = vpop.f32.mrf.mxu0
    %v2548 = vadd.f32 %v367, %v2547
    %2549 = vmatmul.f32.gmra.mxu0 %v2515
    %v2550 = vpop.f32.mrf.mxu0
    %v2551 = vadd.f32 %v368, %v2550
    %2552 = vmatmul.f32.gmra.mxu0 %v2517
    %v2553 = vpop.f32.mrf.mxu0
    %v2554 = vadd.f32 %v369, %v2553
    %2555 = vdwg.mxu0
    %v2556 = vsel %vm391, %v2545, -inf
    %2557 = vmax.xlane.f32.xlu0 %v2556
    %v2558 = vpop.xlane.xlu0 %2557
    %v2559 = vsel %vm391, %v2548, -inf
    %2560 = vmax.xlane.f32.xlu0 %v2559
    %v2561 = vpop.xlane.xlu0 %2560
    %v2562 = vsel %vm391, %v2551, -inf
    %2563 = vmax.xlane.f32.xlu0 %v2562
    %v2564 = vpop.xlane.xlu0 %2563
    %v2565 = vsel %vm391, %v2554, -inf
    %2566 = vmax.xlane.f32.xlu0 %v2565
    %v2567 = vpop.xlane.xlu0 %2566
    %v2568 = vsub.f32 %v2545, %v2558
    %v2569 = vsub.f32 %v2548, %v2561
    %v2570 = vsub.f32 %v2551, %v2564
    %v2571 = vsub.f32 %v2554, %v2567
    %v2572 = vmul.f32 %v2568, 1.442695
    %v2573 = vpow.pop %v2572
    %v2574 = vmul.f32 %v2569, 1.442695
    %v2575 = vpow.pop %v2574
    %v2576 = vmul.f32 %v2570, 1.442695
    %v2577 = vpow.pop %v2576
    %v2578 = vmul.f32 %v2571, 1.442695
    %v2579 = vpow.pop %v2578
    %v2580 = vsel %vm391, %v2573, 0.0
    %2581 = vadd.xlane.f32.xlu0 %v2580
    %v2582 = vpop.xlane.xlu0 %2581
    %v2583 = vsel %vm391, %v2575, 0.0
    %2584 = vadd.xlane.f32.xlu0 %v2583
    %v2585 = vpop.xlane.xlu0 %2584
    %v2586 = vsel %vm391, %v2577, 0.0
    %2587 = vadd.xlane.f32.xlu0 %v2586
    %v2588 = vpop.xlane.xlu0 %2587
    %v2589 = vsel %vm391, %v2579, 0.0
    %2590 = vadd.xlane.f32.xlu0 %v2589
    %v2591 = vpop.xlane.xlu0 %2590
    %v2592 = vrcp.pop %v2582
    %v2593 = vrcp.pop %v2585
    %v2594 = vrcp.pop %v2588
    %v2595 = vrcp.pop %v2591
    %v2596 = vmul.f32 %v2573, %v2592
    %v2597 = vmul.f32 %v2575, %v2593
    %v2598 = vmul.f32 %v2577, %v2594
    %v2599 = vmul.f32 %v2579, %v2595
    %2600 = vrot.lane.b32.xlu0 %v447, 80
    %v2601 = vpop.permute.xlu0 %2600
    %2602 = vrot.lane.b32.xlu0 %v449, 80
    %v2603 = vpop.permute.xlu0 %2602
    %2604 = vrot.lane.b32.xlu0 %v452, 80
    %v2605 = vpop.permute.xlu0 %2604
    %2606 = vrot.lane.b32.xlu0 %v454, 80
    %v2607 = vpop.permute.xlu0 %2606
    %v2613 = vsel %vm391, %v2596, 0
    %v2616 = vsel %vm391, %v2597, 0
    %v2619 = vsel %vm391, %v2598, 0
    %v2622 = vsel %vm391, %v2599, 0
    %2624 = vmatpush.msra.mxu0 0.0
    %2625 = vmatpush.msra.mxu0 0.0
    %2626 = vmatpush.msra.mxu0 0.0
    %2627 = vmatpush.msra.mxu0 0.0
    %2628 = vmatpush.msra.mxu0 0.0
    %2629 = vmatpush.msra.mxu0 0.0
    %2630 = vmatpush.msra.mxu0 0.0
    %2631 = vmatpush.msra.mxu0 0.0
    %2632 = vmatpush.msra.mxu0 0.0
    %2633 = vmatpush.msra.mxu0 0.0
    %2634 = vmatpush.msra.mxu0 0.0
    %2635 = vmatpush.msra.mxu0 0.0
    %2636 = vmatpush.msra.mxu0 %v2607
    %2637 = vmatpush.msra.mxu0 %v2605
    %2638 = vmatpush.msra.mxu0 %v2603
    %2639 = vmatpush.msra.mxu0 %v2601
    %2640 = vmatmul.f32.gmra.mxu0 %v2613
    %v2641 = vpop.f32.mrf.mxu0
    %v2642 = vadd.f32 0.0, %v2641
    %2643 = vmatmul.f32.gmra.mxu0 %v2616
    %v2644 = vpop.f32.mrf.mxu0
    %v2645 = vadd.f32 0.0, %v2644
    %2646 = vmatmul.f32.gmra.mxu0 %v2619
    %v2647 = vpop.f32.mrf.mxu0
    %v2648 = vadd.f32 0.0, %v2647
    %2649 = vmatmul.f32.gmra.mxu0 %v2622
    %v2650 = vpop.f32.mrf.mxu0
    %v2651 = vadd.f32 0.0, %v2650
    %2652 = vdwg.mxu0
    %2653 = vrot.lane.b32.xlu0 %v2167, 104
    %v2654 = vpop.permute.xlu0 %2653
    %2655 = vrot.lane.b32.xlu0 %v2169, 104
    %v2656 = vpop.permute.xlu0 %2655
    %2657 = vrot.lane.b32.xlu0 %v2172, 104
    %v2658 = vpop.permute.xlu0 %2657
    %2659 = vrot.lane.b32.xlu0 %v2174, 104
    %v2660 = vpop.permute.xlu0 %2659
    %2661 = vrot.lane.b32.xlu0 %v2167, 72
    %v2662 = vpop.permute.xlu0 %2661
    %2663 = vrot.lane.b32.xlu0 %v2169, 72
    %v2664 = vpop.permute.xlu0 %2663
    %2665 = vrot.lane.b32.xlu0 %v2172, 72
    %v2666 = vpop.permute.xlu0 %2665
    %2667 = vrot.lane.b32.xlu0 %v2174, 72
    %v2668 = vpop.permute.xlu0 %2667
    %v2669 = vsel %vm512, %v2654, 0
    %v2671 = vsel %vm512, %v2656, 0
    %v2673 = vsel %vm512, %v2658, 0
    %v2675 = vsel %vm512, %v2660, 0
    %v2677 = vsel %vm512, %v2662, 0
    %v2679 = vsel %vm512, %v2664, 0
    %v2681 = vsel %vm512, %v2666, 0
    %v2683 = vsel %vm512, %v2668, 0
    %2685 = vmatpush.xpose.msra.mxu0 0.0
    %2686 = vmatpush.xpose.msra.mxu0 0.0
    %2687 = vmatpush.xpose.msra.mxu0 0.0
    %2688 = vmatpush.xpose.msra.mxu0 0.0
    %2689 = vmatpush.xpose.msra.mxu0 0.0
    %2690 = vmatpush.xpose.msra.mxu0 0.0
    %2691 = vmatpush.xpose.msra.mxu0 0.0
    %2692 = vmatpush.xpose.msra.mxu0 0.0
    %2693 = vmatpush.xpose.msra.mxu0 0.0
    %2694 = vmatpush.xpose.msra.mxu0 0.0
    %2695 = vmatpush.xpose.msra.mxu0 0.0
    %2696 = vmatpush.xpose.msra.mxu0 0.0
    %2697 = vmatpush.xpose.msra.mxu0 %v2683
    %2698 = vmatpush.xpose.msra.mxu0 %v2681
    %2699 = vmatpush.xpose.msra.mxu0 %v2679
    %2700 = vmatpush.xpose.msra.mxu0 %v2677
    %2701 = vmatmul.f32.gmra.mxu0 %v2669
    %v2702 = vpop.f32.mrf.mxu0
    %v2703 = vadd.f32 %v366, %v2702
    %2704 = vmatmul.f32.gmra.mxu0 %v2671
    %v2705 = vpop.f32.mrf.mxu0
    %v2706 = vadd.f32 %v367, %v2705
    %2707 = vmatmul.f32.gmra.mxu0 %v2673
    %v2708 = vpop.f32.mrf.mxu0
    %v2709 = vadd.f32 %v368, %v2708
    %2710 = vmatmul.f32.gmra.mxu0 %v2675
    %v2711 = vpop.f32.mrf.mxu0
    %v2712 = vadd.f32 %v369, %v2711
    %2713 = vdwg.mxu0
    %v2714 = vsel %vm391, %v2703, -inf
    %2715 = vmax.xlane.f32.xlu0 %v2714
    %v2716 = vpop.xlane.xlu0 %2715
    %v2717 = vsel %vm391, %v2706, -inf
    %2718 = vmax.xlane.f32.xlu0 %v2717
    %v2719 = vpop.xlane.xlu0 %2718
    %v2720 = vsel %vm391, %v2709, -inf
    %2721 = vmax.xlane.f32.xlu0 %v2720
    %v2722 = vpop.xlane.xlu0 %2721
    %v2723 = vsel %vm391, %v2712, -inf
    %2724 = vmax.xlane.f32.xlu0 %v2723
    %v2725 = vpop.xlane.xlu0 %2724
    %v2726 = vsub.f32 %v2703, %v2716
    %v2727 = vsub.f32 %v2706, %v2719
    %v2728 = vsub.f32 %v2709, %v2722
    %v2729 = vsub.f32 %v2712, %v2725
    %v2730 = vmul.f32 %v2726, 1.442695
    %v2731 = vpow.pop %v2730
    %v2732 = vmul.f32 %v2727, 1.442695
    %v2733 = vpow.pop %v2732
    %v2734 = vmul.f32 %v2728, 1.442695
    %v2735 = vpow.pop %v2734
    %v2736 = vmul.f32 %v2729, 1.442695
    %v2737 = vpow.pop %v2736
    %v2738 = vsel %vm391, %v2731, 0.0
    %2739 = vadd.xlane.f32.xlu0 %v2738
    %v2740 = vpop.xlane.xlu0 %2739
    %v2741 = vsel %vm391, %v2733, 0.0
    %2742 = vadd.xlane.f32.xlu0 %v2741
    %v2743 = vpop.xlane.xlu0 %2742
    %v2744 = vsel %vm391, %v2735, 0.0
    %2745 = vadd.xlane.f32.xlu0 %v2744
    %v2746 = vpop.xlane.xlu0 %2745
    %v2747 = vsel %vm391, %v2737, 0.0
    %2748 = vadd.xlane.f32.xlu0 %v2747
    %v2749 = vpop.xlane.xlu0 %2748
    %v2750 = vrcp.pop %v2740
    %v2751 = vrcp.pop %v2743
    %v2752 = vrcp.pop %v2746
    %v2753 = vrcp.pop %v2749
    %v2754 = vmul.f32 %v2731, %v2750
    %v2755 = vmul.f32 %v2733, %v2751
    %v2756 = vmul.f32 %v2735, %v2752
    %v2757 = vmul.f32 %v2737, %v2753
    %2758 = vrot.lane.b32.xlu0 %v447, 72
    %v2759 = vpop.permute.xlu0 %2758
    %2760 = vrot.lane.b32.xlu0 %v449, 72
    %v2761 = vpop.permute.xlu0 %2760
    %2762 = vrot.lane.b32.xlu0 %v452, 72
    %v2763 = vpop.permute.xlu0 %2762
    %2764 = vrot.lane.b32.xlu0 %v454, 72
    %v2765 = vpop.permute.xlu0 %2764
    %v2771 = vsel %vm391, %v2754, 0
    %v2774 = vsel %vm391, %v2755, 0
    %v2777 = vsel %vm391, %v2756, 0
    %v2780 = vsel %vm391, %v2757, 0
    %2782 = vmatpush.msra.mxu0 0.0
    %2783 = vmatpush.msra.mxu0 0.0
    %2784 = vmatpush.msra.mxu0 0.0
    %2785 = vmatpush.msra.mxu0 0.0
    %2786 = vmatpush.msra.mxu0 0.0
    %2787 = vmatpush.msra.mxu0 0.0
    %2788 = vmatpush.msra.mxu0 0.0
    %2789 = vmatpush.msra.mxu0 0.0
    %2790 = vmatpush.msra.mxu0 0.0
    %2791 = vmatpush.msra.mxu0 0.0
    %2792 = vmatpush.msra.mxu0 0.0
    %2793 = vmatpush.msra.mxu0 0.0
    %2794 = vmatpush.msra.mxu0 %v2765
    %2795 = vmatpush.msra.mxu0 %v2763
    %2796 = vmatpush.msra.mxu0 %v2761
    %2797 = vmatpush.msra.mxu0 %v2759
    %2798 = vmatmul.f32.gmra.mxu0 %v2771
    %v2799 = vpop.f32.mrf.mxu0
    %v2800 = vadd.f32 0.0, %v2799
    %2801 = vmatmul.f32.gmra.mxu0 %v2774
    %v2802 = vpop.f32.mrf.mxu0
    %v2803 = vadd.f32 0.0, %v2802
    %2804 = vmatmul.f32.gmra.mxu0 %v2777
    %v2805 = vpop.f32.mrf.mxu0
    %v2806 = vadd.f32 0.0, %v2805
    %2807 = vmatmul.f32.gmra.mxu0 %v2780
    %v2808 = vpop.f32.mrf.mxu0
    %v2809 = vadd.f32 0.0, %v2808
    %2810 = vdwg.mxu0
    %2815 = vrot.lane.b32.xlu0 %v2484, 8
    %v2816 = vpop.permute.xlu0 %2815
    %2817 = vrot.lane.b32.xlu0 %v2487, 8
    %v2818 = vpop.permute.xlu0 %2817
    %2819 = vrot.lane.b32.xlu0 %v2490, 8
    %v2820 = vpop.permute.xlu0 %2819
    %2821 = vrot.lane.b32.xlu0 %v2493, 8
    %v2822 = vpop.permute.xlu0 %2821
    %2831 = vrot.lane.b32.xlu0 %v2642, 16
    %v2832 = vpop.permute.xlu0 %2831
    %2833 = vrot.lane.b32.xlu0 %v2645, 16
    %v2834 = vpop.permute.xlu0 %2833
    %2835 = vrot.lane.b32.xlu0 %v2648, 16
    %v2836 = vpop.permute.xlu0 %2835
    %2837 = vrot.lane.b32.xlu0 %v2651, 16
    %v2838 = vpop.permute.xlu0 %2837
    %2847 = vrot.lane.b32.xlu0 %v2800, 24
    %v2848 = vpop.permute.xlu0 %2847
    %2849 = vrot.lane.b32.xlu0 %v2803, 24
    %v2850 = vpop.permute.xlu0 %2849
    %2851 = vrot.lane.b32.xlu0 %v2806, 24
    %v2852 = vpop.permute.xlu0 %2851
    %2853 = vrot.lane.b32.xlu0 %v2809, 24
    %v2854 = vpop.permute.xlu0 %2853
    %v2859 = vsel %vm512, %v2326, %v2816
    %v2860 = vsel %vm512, %v2329, %v2818
    %v2861 = vsel %vm512, %v2332, %v2820
    %v2862 = vsel %vm512, %v2335, %v2822
    %v2863 = vsel %vm560, %v2859, %v2832
    %v2864 = vsel %vm560, %v2860, %v2834
    %v2865 = vsel %vm560, %v2861, %v2836
    %v2866 = vsel %vm560, %v2862, %v2838
    %v2867 = vsel %vm1140, %v2863, %v2848
    %v2868 = vsel %vm1140, %v2864, %v2850
    %v2869 = vsel %vm1140, %v2865, %v2852
    %v2870 = vsel %vm1140, %v2866, %v2854
    %v2871 = vpack.c.bf16 %v2868, %v2867
    %v2872 = vpack.c.bf16 %v2870, %v2869
    %v2874 = vperm.slane %v2182, 0
    %v2880 = vunpack.c.l.b16 %v2177
    %v2881 = vunpack.c.l.b16 %v2178
    %v2882 = vunpack.c.l.b16 %v2179
    %v2883 = vunpack.c.l.b16 %v2180
    %v2884 = vpack.c.b16 %v2881, %v2880
    %v2885 = vpack.c.b16 %v2883, %v2882
    %v2889 = vsel %vm391, %v2871, 0
    %v2892 = vsel %vm391, %v2872, 0
    %2894 = vmatpush.bf16.msra.mxu0 0
    %2895 = vmatpush.bf16.msra.mxu0 0
    %2896 = vmatpush.bf16.msra.mxu0 0
    %2897 = vmatpush.bf16.msra.mxu0 0
    %2898 = vmatpush.bf16.msra.mxu0 0
    %2899 = vmatpush.bf16.msra.mxu0 0
    %2900 = vmatpush.bf16.msra.mxu0 %v2885
    %2901 = vmatpush.bf16.msra.mxu0 %v2884
    %2902 = vmatmul.bf16.gmra.mxu0 %v2889
    %v2903 = vpop.f32.mrf.mxu0
    %v2904 = vadd.f32 %v2874, %v2903
    %v2905 = vpop.f32.mrf.mxu0
    %v2906 = vadd.f32 %v2874, %v2905
    %2907 = vmatmul.bf16.gmra.mxu0 %v2892
    %v2908 = vpop.f32.mrf.mxu0
    %v2909 = vadd.f32 %v2874, %v2908
    %v2910 = vpop.f32.mrf.mxu0
    %v2911 = vadd.f32 %v2874, %v2910
    %2912 = vdwg.mxu0
    %v2913 = vsel %vm391, %v262, 0.0
    %2914 = vadd.xlane.f32.xlu0 %v2913
    %v2915 = vpop.xlane.xlu0 %2914
    %v2916 = vsel %vm391, %v263, 0.0
    %2917 = vadd.xlane.f32.xlu0 %v2916
    %v2918 = vpop.xlane.xlu0 %2917
    %v2919 = vsel %vm391, %v264, 0.0
    %2920 = vadd.xlane.f32.xlu0 %v2919
    %v2921 = vpop.xlane.xlu0 %2920
    %v2922 = vsel %vm391, %v265, 0.0
    %2923 = vadd.xlane.f32.xlu0 %v2922
    %v2924 = vpop.xlane.xlu0 %2923
    %v2925 = vrcp.pop 32.0
    %v2926 = vmul.f32 32.0, %v2925
    %v2927 = vsub.f32 1.0, %v2926
    %v2928 = vmul.f32 %v2925, %v2927
    %v2929 = vadd.f32 %v2925, %v2928
    %vm2930 = vweird.f32 %v2925
    %v2931 = vsel %vm2930, %v2925, %v2929
    %v2932 = vmul.f32 %v2915, %v2931
    %v2933 = vmul.f32 %v2918, %v2931
    %v2934 = vmul.f32 %v2921, %v2931
    %v2935 = vmul.f32 %v2924, %v2931
    %v2936 = vsub.f32 %v262, %v2932
    %v2937 = vsub.f32 %v263, %v2933
    %v2938 = vsub.f32 %v264, %v2934
    %v2939 = vsub.f32 %v265, %v2935
    %v2940 = vmul.f32 %v2936, %v2936
    %v2941 = vmul.f32 %v2937, %v2937
    %v2942 = vmul.f32 %v2938, %v2938
    %v2943 = vmul.f32 %v2939, %v2939
    %v2944 = vsel %vm391, %v2940, 0.0
    %2945 = vadd.xlane.f32.xlu0 %v2944
    %v2946 = vpop.xlane.xlu0 %2945
    %v2947 = vsel %vm391, %v2941, 0.0
    %2948 = vadd.xlane.f32.xlu0 %v2947
    %v2949 = vpop.xlane.xlu0 %2948
    %v2950 = vsel %vm391, %v2942, 0.0
    %2951 = vadd.xlane.f32.xlu0 %v2950
    %v2952 = vpop.xlane.xlu0 %2951
    %v2953 = vsel %vm391, %v2943, 0.0
    %2954 = vadd.xlane.f32.xlu0 %v2953
    %v2955 = vpop.xlane.xlu0 %2954
    %v2956 = vmul.f32 %v2946, %v2931
    %v2957 = vmul.f32 %v2949, %v2931
    %v2958 = vmul.f32 %v2952, %v2931
    %v2959 = vmul.f32 %v2955, %v2931
    %v2960 = vadd.f32 %v2956, 1e-05
    %v2961 = vadd.f32 %v2957, 1e-05
    %v2962 = vadd.f32 %v2958, 1e-05
    %v2963 = vadd.f32 %v2959, 1e-05
    %v2964 = vrsqrt.pop %v2960
    %v2965 = vmul.f32 %v2964, %v2960
    %v2966 = vmul.f32 %v2965, %v2964
    %v2967 = vmul.f32 0.5, %v2966
    %v2968 = vsub.f32 1.5, %v2967
    %v2969 = vmul.f32 %v2964, %v2968
    %vm2970 = vweird.f32 %v2960
    %vm2971 = vweird.f32 %v2964
    %vm2972 = vmor %vm2970, %vm2971
    %v2973 = vsel %vm2972, %v2964, %v2969
    %v2974 = vrsqrt.pop %v2961
    %v2975 = vmul.f32 %v2974, %v2961
    %v2976 = vmul.f32 %v2975, %v2974
    %v2977 = vmul.f32 0.5, %v2976
    %v2978 = vsub.f32 1.5, %v2977
    %v2979 = vmul.f32 %v2974, %v2978
    %vm2980 = vweird.f32 %v2961
    %vm2981 = vweird.f32 %v2974
    %vm2982 = vmor %vm2980, %vm2981
    %v2983 = vsel %vm2982, %v2974, %v2979
    %v2984 = vrsqrt.pop %v2962
    %v2985 = vmul.f32 %v2984, %v2962
    %v2986 = vmul.f32 %v2985, %v2984
    %v2987 = vmul.f32 0.5, %v2986
    %v2988 = vsub.f32 1.5, %v2987
    %v2989 = vmul.f32 %v2984, %v2988
    %vm2990 = vweird.f32 %v2962
    %vm2991 = vweird.f32 %v2984
    %vm2992 = vmor %vm2990, %vm2991
    %v2993 = vsel %vm2992, %v2984, %v2989
    %v2994 = vrsqrt.pop %v2963
    %v2995 = vmul.f32 %v2994, %v2963
    %v2996 = vmul.f32 %v2995, %v2994
    %v2997 = vmul.f32 0.5, %v2996
    %v2998 = vsub.f32 1.5, %v2997
    %v2999 = vmul.f32 %v2994, %v2998
    %vm3000 = vweird.f32 %v2963
    %vm3001 = vweird.f32 %v2994
    %vm3002 = vmor %vm3000, %vm3001
    %v3003 = vsel %vm3002, %v2994, %v2999
    %v3004 = vmul.f32 %v2936, %v2973
    %v3005 = vmul.f32 %v2937, %v2983
    %v3006 = vmul.f32 %v2938, %v2993
    %v3007 = vmul.f32 %v2939, %v3003
    %v3008 = vld [vmem:[%s17] sm:$0x1]
    %v3010 = vperm.slane %v3008, 0
    %v3012 = vmul.f32 %v3004, %v3010
    %v3013 = vmul.f32 %v3005, %v3010
    %v3014 = vmul.f32 %v3006, %v3010
    %v3015 = vmul.f32 %v3007, %v3010
    %v3016 = vld [vmem:[%s18] sm:$0x1]
    %v3018 = vperm.slane %v3016, 0
    %v3020 = vadd.f32 %v3012, %v3018
    %v3021 = vadd.f32 %v3013, %v3018
    %v3022 = vadd.f32 %v3014, %v3018
    %v3023 = vadd.f32 %v3015, %v3018
    %v3024 = vsel %vm391, %v2904, 0.0
    %3025 = vadd.xlane.f32.xlu0 %v3024
    %v3026 = vpop.xlane.xlu0 %3025
    %v3027 = vsel %vm391, %v2906, 0.0
    %3028 = vadd.xlane.f32.xlu0 %v3027
    %v3029 = vpop.xlane.xlu0 %3028
    %v3030 = vsel %vm391, %v2909, 0.0
    %3031 = vadd.xlane.f32.xlu0 %v3030
    %v3032 = vpop.xlane.xlu0 %3031
    %v3033 = vsel %vm391, %v2911, 0.0
    %3034 = vadd.xlane.f32.xlu0 %v3033
    %v3035 = vpop.xlane.xlu0 %3034
    %v3036 = vmul.f32 %v3026, %v2931
    %v3037 = vmul.f32 %v3029, %v2931
    %v3038 = vmul.f32 %v3032, %v2931
    %v3039 = vmul.f32 %v3035, %v2931
    %v3040 = vsub.f32 %v2904, %v3036
    %v3041 = vsub.f32 %v2906, %v3037
    %v3042 = vsub.f32 %v2909, %v3038
    %v3043 = vsub.f32 %v2911, %v3039
    %v3044 = vmul.f32 %v3040, %v3040
    %v3045 = vmul.f32 %v3041, %v3041
    %v3046 = vmul.f32 %v3042, %v3042
    %v3047 = vmul.f32 %v3043, %v3043
    %v3048 = vsel %vm391, %v3044, 0.0
    %3049 = vadd.xlane.f32.xlu0 %v3048
    %v3050 = vpop.xlane.xlu0 %3049
    %v3051 = vsel %vm391, %v3045, 0.0
    %3052 = vadd.xlane.f32.xlu0 %v3051
    %v3053 = vpop.xlane.xlu0 %3052
    %v3054 = vsel %vm391, %v3046, 0.0
    %3055 = vadd.xlane.f32.xlu0 %v3054
    %v3056 = vpop.xlane.xlu0 %3055
    %v3057 = vsel %vm391, %v3047, 0.0
    %3058 = vadd.xlane.f32.xlu0 %v3057
    %v3059 = vpop.xlane.xlu0 %3058
    %v3060 = vmul.f32 %v3050, %v2931
    %v3061 = vmul.f32 %v3053, %v2931
    %v3062 = vmul.f32 %v3056, %v2931
    %v3063 = vmul.f32 %v3059, %v2931
    %v3064 = vadd.f32 %v3060, 1e-05
    %v3065 = vadd.f32 %v3061, 1e-05
    %v3066 = vadd.f32 %v3062, 1e-05
    %v3067 = vadd.f32 %v3063, 1e-05
    %v3068 = vrsqrt.pop %v3064
    %v3069 = vmul.f32 %v3068, %v3064
    %v3070 = vmul.f32 %v3069, %v3068
    %v3071 = vmul.f32 0.5, %v3070
    %v3072 = vsub.f32 1.5, %v3071
    %v3073 = vmul.f32 %v3068, %v3072
    %vm3074 = vweird.f32 %v3064
    %vm3075 = vweird.f32 %v3068
    %vm3076 = vmor %vm3074, %vm3075
    %v3077 = vsel %vm3076, %v3068, %v3073
    %v3078 = vrsqrt.pop %v3065
    %v3079 = vmul.f32 %v3078, %v3065
    %v3080 = vmul.f32 %v3079, %v3078
    %v3081 = vmul.f32 0.5, %v3080
    %v3082 = vsub.f32 1.5, %v3081
    %v3083 = vmul.f32 %v3078, %v3082
    %vm3084 = vweird.f32 %v3065
    %vm3085 = vweird.f32 %v3078
    %vm3086 = vmor %vm3084, %vm3085
    %v3087 = vsel %vm3086, %v3078, %v3083
    %v3088 = vrsqrt.pop %v3066
    %v3089 = vmul.f32 %v3088, %v3066
    %v3090 = vmul.f32 %v3089, %v3088
    %v3091 = vmul.f32 0.5, %v3090
    %v3092 = vsub.f32 1.5, %v3091
    %v3093 = vmul.f32 %v3088, %v3092
    %vm3094 = vweird.f32 %v3066
    %vm3095 = vweird.f32 %v3088
    %vm3096 = vmor %vm3094, %vm3095
    %v3097 = vsel %vm3096, %v3088, %v3093
    %v3098 = vrsqrt.pop %v3067
    %v3099 = vmul.f32 %v3098, %v3067
    %v3100 = vmul.f32 %v3099, %v3098
    %v3101 = vmul.f32 0.5, %v3100
    %v3102 = vsub.f32 1.5, %v3101
    %v3103 = vmul.f32 %v3098, %v3102
    %vm3104 = vweird.f32 %v3067
    %vm3105 = vweird.f32 %v3098
    %vm3106 = vmor %vm3104, %vm3105
    %v3107 = vsel %vm3106, %v3098, %v3103
    %v3108 = vmul.f32 %v3040, %v3077
    %v3109 = vmul.f32 %v3041, %v3087
    %v3110 = vmul.f32 %v3042, %v3097
    %v3111 = vmul.f32 %v3043, %v3107
    %s3112 = scalar_lea.vmem %s17, 1
    %v3113 = vld [vmem:[%s3112] sm:$0x1]
    %v3115 = vperm.slane %v3113, 0
    %v3117 = vmul.f32 %v3108, %v3115
    %v3118 = vmul.f32 %v3109, %v3115
    %v3119 = vmul.f32 %v3110, %v3115
    %v3120 = vmul.f32 %v3111, %v3115
    %s3121 = scalar_lea.vmem %s18, 1
    %v3122 = vld [vmem:[%s3121] sm:$0x1]
    %v3124 = vperm.slane %v3122, 0
    %v3126 = vadd.f32 %v3117, %v3124
    %v3127 = vadd.f32 %v3118, %v3124
    %v3128 = vadd.f32 %v3119, %v3124
    %v3129 = vadd.f32 %v3120, %v3124
    %v3130 = vadd.f32 %v3020, %v3126
    %v3131 = vadd.f32 %v3021, %v3127
    %v3132 = vadd.f32 %v3022, %v3128
    %v3133 = vadd.f32 %v3023, %v3129
    %v3134 = vmul.f32 %v3130, %v1437
    %v3135 = vmul.f32 %v3131, %v1439
    %v3136 = vmul.f32 %v3132, %v1441
    %v3137 = vmul.f32 %v3133, %v1443
    %3142 = vrot.lane.b32.xlu0 %v3134, 32
    %v3143 = vpop.permute.xlu0 %3142
    %3144 = vrot.lane.b32.xlu0 %v3135, 32
    %v3145 = vpop.permute.xlu0 %3144
    %3146 = vrot.lane.b32.xlu0 %v3136, 32
    %v3147 = vpop.permute.xlu0 %3146
    %3148 = vrot.lane.b32.xlu0 %v3137, 32
    %v3149 = vpop.permute.xlu0 %3148
    %v3154 = vsel %vm391, %v262, %v3143
    %v3155 = vsel %vm391, %v263, %v3145
    %v3156 = vsel %vm391, %v264, %v3147
    %v3157 = vsel %vm391, %v265, %v3149
    %vm3158 = vcmask 523264
    %3159 = vst.msk [vmem:[#allocation24] sm:$0xff] %vm3158, %v3154
    %3160 = vst.msk [vmem:[#allocation24 + $0x8] sm:$0xff] %vm3158, %v3155
    %3161 = vst.msk [vmem:[#allocation24 + $0x10] sm:$0xff] %vm3158, %v3156
    %3162 = vst.msk [vmem:[#allocation24 + $0x18] sm:$0xff] %vm3158, %v3157
    // Predicated region
    $region134: #{tpu_custom_call.1} parent=1 // pred_check
      _
    $region135: #{tpu_custom_call.1} parent=1 // pred_check_branch
      %3164 = sbr.rel (0) target = $region137
    $region136: #{tpu_custom_call.1} parent=1 // pred_region
      %3166 = vsyncadd [#allocation5], 0
      %s3167 = sshll.u32 [#allocation24], 4
      %s3168 = int_to_ptr.vmem [resolvable:$true] %s3167
      %s3169 = sshll.u32 %s20, 4
      %s3170 = int_to_ptr.hbm [resolvable:$true] %s3169
      %3175 = dma.vmem_to_hbm [thread:$0]  %s3168, 512, %s3170, [#allocation5], 128, 128, 8
    $region137: #{tpu_custom_call.1} parent=1 // pred_fallthru
      _
    // Predicated region
    $region138: #{tpu_custom_call.1} parent=1 // pred_check
      _
    $region139: #{tpu_custom_call.1} parent=1 // pred_check_branch
      %3177 = sbr.rel (0) target = $region141
    $region140: #{tpu_custom_call.1} parent=1 // pred_region
      %3179 = dma.done [#allocation5], 512
    $region141: #{tpu_custom_call.1} parent=1 // pred_fallthru
      _
    %3180 = vsyncpa [#allocation4], 1
    %3181 = vsyncpa [#allocation7], 1
    %3182 = vsyncpa [#allocation10], 1
    %3183 = vsyncpa [#allocation13], 1
    %3184 = vsyncpa [#allocation16], 1
    %3185 = vsyncpa [#allocation19], 1
    %3186 = vsyncpa [#allocation22], 1
    %3187 = vsyncpa [#allocation5], 1

</llo_original>
